<compile_context>
chip_gen: v7x
topology: tpu7x:2x2x1
jax: 0.10.0
libtpu: 0.0.40
codegen_flags: <defaults>
</compile_context>

<pallas_src>
import functools

import jax
import jax.numpy as jnp
from jax.experimental import pallas as pl
from jax.experimental.pallas import tpu as pltpu


def _round_up(x, m):
    return ((x + m - 1) // m) * m


def concat_net3_kernel(
    img_ref, aud_ref,          # bf16 activation blocks: (tm, tk_img), (tm, tk_aud)
    w2_ref, w1_ref,            # resident bf16 weights: (ki, tk_img, 512), (ka, tk_aud, 512)
    b2_ref, b1_ref,            # (1, 512) f32 biases
    w3i_ref, w3a_ref, b3_ref,  # fc3 split into img/audio halves: (512,128) x2, (1,128)
    w4_ref, b4_ref,            # fc4: (128, 64), (1, 64)
    wm5_ref, bm5_ref,          # folded fc5+merge_fc: (64, 8), (1, 8)
    out_ref,                   # (tm, 8) f32
    acc_img, acc_aud,          # f32 VMEM accumulators, (tm, 512) each
    *, k_img_tiles,
):
    f32 = jnp.float32
    k = pl.program_id(1)
    k_total = pl.num_programs(1)

    @pl.when(k == 0)
    def _init():
        acc_img[...] = jnp.zeros_like(acc_img)
        acc_aud[...] = jnp.zeros_like(acc_aud)

    # Image-feature K tiles come first on the reduction axis.
    @pl.when(k < k_img_tiles)
    def _img_step():
        acc_img[...] += jnp.dot(img_ref[...], w2_ref[k],
                                preferred_element_type=f32)

    # Audio-feature K tiles follow.
    @pl.when(k >= k_img_tiles)
    def _aud_step():
        acc_aud[...] += jnp.dot(aud_ref[...], w1_ref[k - k_img_tiles],
                                preferred_element_type=f32)

    # Tail network runs once, on the last reduction step.
    @pl.when(k == k_total - 1)
    def _tail():
        # dropout_5 / dropout_2 are identity in eval mode.
        h_img = jnp.maximum(acc_img[...] + b2_ref[...], 0.0)
        h_aud = jnp.maximum(acc_aud[...] + b1_ref[...], 0.0)
        # fc3 on cat(h_img, h_aud) expressed as two matmuls (no concat copy).
        h3 = jnp.maximum(
            jnp.dot(h_img, w3i_ref[...], preferred_element_type=f32)
            + jnp.dot(h_aud, w3a_ref[...], preferred_element_type=f32)
            + b3_ref[...], 0.0)
        h4 = jnp.maximum(
            jnp.dot(h3, w4_ref[...], preferred_element_type=f32) + b4_ref[...],
            0.0)
        # Folded fc5_img|fc5_audio -> merge_fc (64 -> 8), img columns first.
        out_ref[...] = (
            jnp.dot(h4, wm5_ref[...], preferred_element_type=f32) + bm5_ref[...]
        ).astype(out_ref.dtype)


def prepare_params(params, *, tk_img=2048, tk_aud=4096,
                   stream_dtype=jnp.bfloat16):
    """One-time weight prep (call at model-load time, NOT per forward)."""
    f32 = jnp.float32

    def row(b):
        return jnp.asarray(b, f32).reshape(1, -1)

    w2 = jnp.asarray(params["fc2_w"], f32).T          # (Kimg, 512)
    w1 = jnp.asarray(params["fc1_w"], f32).T          # (Kaud, 512)
    k_img, k_aud = int(w2.shape[0]), int(w1.shape[0])

    # K tile sizes: lane-dense (multiple of 128), capped.
    tk_i = min(tk_img, _round_up(k_img, 128))
    tk_a = min(tk_aud, _round_up(k_aud, 128))
    k_img_pad = _round_up(k_img, tk_i)
    k_aud_pad = _round_up(k_aud, tk_a)
    ki = k_img_pad // tk_i
    ka = k_aud_pad // tk_a

    # Zero-pad K (exact: padded weight rows are 0 so padded activation columns
    # contribute nothing), cast streaming weights to bf16, and pre-slice into
    # (num_tiles, tk, 512) slabs so the kernel indexes the resident VMEM copy
    # along the leading axis.
    w2 = jnp.pad(w2, ((0, k_img_pad - k_img), (0, 0)))
    w1 = jnp.pad(w1, ((0, k_aud_pad - k_aud), (0, 0)))
    w2 = w2.reshape(ki, tk_i, 512).astype(stream_dtype)
    w1 = w1.reshape(ka, tk_a, 512).astype(stream_dtype)

    w3 = jnp.asarray(params["fc3_w"], f32).T           # (1024, 128)

    # Fuse the two 64->32 heads (img columns first = cat order), then fold the
    # fused fc5 into merge_fc:  out = h4 @ (w5 @ wm) + (b5 @ wm + bm).
    w5 = jnp.concatenate(
        [jnp.asarray(params["fc5_img_w"], f32).T,
         jnp.asarray(params["fc5_audio_w"], f32).T], axis=1)        # (64, 64)
    b5 = jnp.concatenate(
        [jnp.asarray(params["fc5_img_b"], f32),
         jnp.asarray(params["fc5_audio_b"], f32)])                  # (64,)
    wm = jnp.asarray(params["merge_fc_w"], f32).T                   # (64, 8)
    wm5 = w5 @ wm                                                   # (64, 8)
    bm5 = (b5 @ wm + jnp.asarray(params["merge_fc_b"], f32)).reshape(1, -1)

    return dict(
        w2=w2, b2=row(params["fc2_b"]),
        w1=w1, b1=row(params["fc1_b"]),
        w3i=w3[:512], w3a=w3[512:], b3=row(params["fc3_b"]),
        w4=jnp.asarray(params["fc4_w"], f32).T, b4=row(params["fc4_b"]),
        wm5=wm5, bm5=bm5,
        # static metadata
        k_img=k_img, k_aud=k_aud,
        k_img_pad=k_img_pad, k_aud_pad=k_aud_pad,
        tk_img=tk_i, tk_aud=tk_a, ki=ki, ka=ka,
    )


def build_forward(prep):
    """Return jitted forward(img_feats, audio_feats) using prepared weights."""
    tk_i, tk_a = prep["tk_img"], prep["tk_aud"]
    ki, ka = prep["ki"], prep["ka"]
    kt = ki + ka                      # total reduction steps
    k_img, k_aud = prep["k_img"], prep["k_aud"]
    k_img_pad, k_aud_pad = prep["k_img_pad"], prep["k_aud_pad"]

    weights = (
        prep["w2"], prep["w1"], prep["b2"], prep["b1"],
        prep["w3i"], prep["w3a"], prep["b3"],
        prep["w4"], prep["b4"], prep["wm5"], prep["bm5"],
    )

    def forward(img_feats, audio_feats):
        B = img_feats.shape[0]
        # Batch tile: 256 fills the 256-wide MXU on v6e/v7x at large batch;
        # small batches collapse to one 16-multiple tile (bf16 sublane pack).
        if B >= 512:
            tm = 256
        elif B >= 128:
            tm = 128
        else:
            tm = _round_up(B, 16)
        b_pad = _round_up(B, tm)
        nb = b_pad // tm

        # bf16 cast + zero pad fuse into a single XLA op under jit (no extra
        # HBM pass for the ragged audio K axis).
        img = jnp.pad(jnp.asarray(img_feats, jnp.bfloat16),
                      ((0, b_pad - B), (0, k_img_pad - k_img)))
        aud = jnp.pad(jnp.asarray(audio_feats, jnp.bfloat16),
                      ((0, b_pad - B), (0, k_aud_pad - k_aud)))

        # Clamped index maps: while a stream is inactive its block index does
        # not change, so Pallas skips re-DMA of that operand on those steps.
        img_map = lambda b, k: (b, jnp.minimum(k, ki - 1))
        aud_map = lambda b, k: (b, jnp.maximum(k - ki, 0))
        const2 = lambda b, k: (0, 0)
        const3 = lambda b, k: (0, 0, 0)   # resident weights: one DMA per core

        in_specs = [
            pl.BlockSpec((tm, tk_i), img_map),          # img activation block
            pl.BlockSpec((tm, tk_a), aud_map),          # audio activation block
            pl.BlockSpec((ki, tk_i, 512), const3),      # w2 resident (bf16)
            pl.BlockSpec((ka, tk_a, 512), const3),      # w1 resident (bf16)
            pl.BlockSpec((1, 512), const2),             # b2
            pl.BlockSpec((1, 512), const2),             # b1
            pl.BlockSpec((512, 128), const2),           # w3 img half
            pl.BlockSpec((512, 128), const2),           # w3 audio half
            pl.BlockSpec((1, 128), const2),             # b3
            pl.BlockSpec((128, 64), const2),            # w4
            pl.BlockSpec((1, 64), const2),              # b4
            pl.BlockSpec((64, 8), const2),              # folded fc5+merge w
            pl.BlockSpec((1, 8), const2),               # folded fc5+merge b
        ]

        args = (img, aud) + weights

        flops = 2 * b_pad * (
            k_img_pad * 512 + k_aud_pad * 512
            + 512 * 128 * 2 + 128 * 64 + 64 * 8)
        bytes_accessed = (sum(int(a.size) * a.dtype.itemsize for a in args)
                          + b_pad * 8 * 4)
        cost = pl.CostEstimate(flops=flops, transcendentals=0,
                               bytes_accessed=bytes_accessed)

        # Working-set estimate (resident weights are double-buffer allocated
        # but DMA'd only once).  Floor 32 MiB (v5e default is 16 MiB), cap
        # 56 MiB (v7x physical VMEM is 64 MiB).
        vmem_est = (
            2 * 2 * (prep["w2"].size + prep["w1"].size)      # bf16 weights x2
            + 2 * 2 * tm * (tk_i + tk_a)                     # bf16 act blocks x2
            + 2 * 4 * tm * 512                               # f32 accumulators
            + 2 * 4 * (2 * 512 + 2 * 512 * 128 + 128
                       + 128 * 64 + 64 + 64 * 8 + 8)         # small f32 weights
            + 2 * 4 * tm * 8)                                # output block
        vmem_limit = int(min(max(vmem_est + (8 << 20), 32 << 20), 56 << 20))

        out = pl.pallas_call(
            functools.partial(concat_net3_kernel, k_img_tiles=ki),
            out_shape=jax.ShapeDtypeStruct((b_pad, 8), jnp.float32),
            grid_spec=pltpu.PrefetchScalarGridSpec(
                num_scalar_prefetch=0,
                grid=(nb, kt),
                in_specs=in_specs,
                out_specs=pl.BlockSpec((tm, 8), lambda b, k: (b, 0)),
                scratch_shapes=[pltpu.VMEM((tm, 512), jnp.float32),
                                pltpu.VMEM((tm, 512), jnp.float32)],
            ),
            compiler_params=pltpu.CompilerParams(
                dimension_semantics=("parallel", "arbitrary"),
                vmem_limit_bytes=vmem_limit),
            cost_estimate=cost,
        )(*args)
        return out[:B]

    return jax.jit(forward)


def _reference(img, aud, params):
    """Pure-JAX eval-mode reference mirroring the kernel's bf16 first stage
    (but keeping fc5/merge_fc unfused to validate the algebraic fold)."""
    relu = lambda x: jnp.maximum(x, 0.0)
    hi = jax.lax.Precision.HIGHEST
    bf = jnp.bfloat16
    w2 = jnp.asarray(params["fc2_w"], jnp.float32).T.astype(bf)
    w1 = jnp.asarray(params["fc1_w"], jnp.float32).T.astype(bf)
    h_img = relu(jnp.dot(img.astype(bf), w2,
                         preferred_element_type=jnp.float32) + params["fc2_b"])
    h_aud = relu(jnp.dot(aud.astype(bf), w1,
                         preferred_element_type=jnp.float32) + params["fc1_b"])
    cat1 = jnp.concatenate([h_img, h_aud], axis=1)
    h3 = relu(jnp.dot(cat1, params["fc3_w"].T, precision=hi) + params["fc3_b"])
    h4 = relu(jnp.dot(h3, params["fc4_w"].T, precision=hi) + params["fc4_b"])
    o_img = jnp.dot(h4, params["fc5_img_w"].T, precision=hi) + params["fc5_img_b"]
    o_aud = jnp.dot(h4, params["fc5_audio_w"].T, precision=hi) + params["fc5_audio_b"]
    cat2 = jnp.concatenate([o_img, o_aud], axis=1)
    return jnp.dot(cat2, params["merge_fc_w"].T, precision=hi) + params["merge_fc_b"]


if __name__ == "__main__":
    # Small, kernel-friendly instantiation of the module's dims
    # (module defaults are img=8192, audio=3887; scaled down but keeping a
    #  non-128-multiple audio K axis so the ragged-K path is exercised).
    B = 8
    IMG_DIM = 2048
    AUD_DIM = 486

    key = jax.random.PRNGKey(0)
    keys = jax.random.split(key, 16)

    def init_w(k, out_f, in_f):
        bound = 1.0 / jnp.sqrt(in_f)
        return jax.random.uniform(k, (out_f, in_f), jnp.float32, -bound, bound)

    def init_b(k, out_f, in_f):
        bound = 1.0 / jnp.sqrt(in_f)
        return jax.random.uniform(k, (out_f,), jnp.float32, -bound, bound)

    params = {
        "fc1_w": init_w(keys[0], 512, AUD_DIM), "fc1_b": init_b(keys[1], 512, AUD_DIM),
        "fc2_w": init_w(keys[2], 512, IMG_DIM), "fc2_b": init_b(keys[3], 512, IMG_DIM),
        "fc3_w": init_w(keys[4], 128, 1024),    "fc3_b": init_b(keys[5], 128, 1024),
        "fc4_w": init_w(keys[6], 64, 128),      "fc4_b": init_b(keys[7], 64, 128),
        "fc5_audio_w": init_w(keys[8], 32, 64), "fc5_audio_b": init_b(keys[9], 32, 64),
        "fc5_img_w": init_w(keys[10], 32, 64),  "fc5_img_b": init_b(keys[11], 32, 64),
        "merge_fc_w": init_w(keys[12], 8, 64),  "merge_fc_b": init_b(keys[13], 8, 64),
    }

    img_feats = jax.random.normal(keys[14], (B, IMG_DIM), jnp.float32)
    audio_feats = jax.random.normal(keys[15], (B, AUD_DIM), jnp.float32)

    prepared = prepare_params(params)          # one-time weight prep
    forward = build_forward(prepared)

    out = forward(img_feats, audio_feats)
    out = jax.block_until_ready(out)

    ref = _reference(img_feats, audio_feats, params)
    assert out.shape == (B, 8) and out.dtype == jnp.float32
    # bf16 weight/activation streaming on fc1/fc2 + folded fc5/merge dominate
    # the (small) deviation from the fp32 reference.
    assert jnp.allclose(out, ref, atol=5e-3, rtol=5e-3), "mismatch vs reference"

    print("KERNEL_OK")
</pallas_src>

<mosaic_0001>
module attributes {stable_mosaic.version = 11 : i64} {
  func.func @concat_net3_kernel(%arg0: i32, %arg1: i32, %arg2: memref<16x2048xbf16, #tpu.memory_space<vmem>>, %arg3: memref<16x512xbf16, #tpu.memory_space<vmem>>, %arg4: memref<1x2048x512xbf16, #tpu.memory_space<vmem>>, %arg5: memref<1x512x512xbf16, #tpu.memory_space<vmem>>, %arg6: memref<1x512xf32, #tpu.memory_space<vmem>>, %arg7: memref<1x512xf32, #tpu.memory_space<vmem>>, %arg8: memref<512x128xf32, #tpu.memory_space<vmem>>, %arg9: memref<512x128xf32, #tpu.memory_space<vmem>>, %arg10: memref<1x128xf32, #tpu.memory_space<vmem>>, %arg11: memref<128x64xf32, #tpu.memory_space<vmem>>, %arg12: memref<1x64xf32, #tpu.memory_space<vmem>>, %arg13: memref<64x8xf32, #tpu.memory_space<vmem>>, %arg14: memref<1x8xf32, #tpu.memory_space<vmem>>, %arg15: memref<16x8xf32, #tpu.memory_space<vmem>>, %arg16: memref<16x512xf32, #tpu.memory_space<vmem>>, %arg17: memref<16x512xf32, #tpu.memory_space<vmem>>) attributes {dimension_semantics = [#tpu.dimension_semantics<parallel>, #tpu.dimension_semantics<arbitrary>], iteration_bounds = array<i64: 1, 2>, scalar_prefetch = 0 : i64, scratch_operands = 2 : i64, tpu.core_type = #tpu.core_type<tc>, window_params = [{transform_indices = @transform_0, window_bounds = array<i64: 16, 2048>}, {transform_indices = @transform_1, window_bounds = array<i64: 16, 512>}, {pipeline_mode = #tpu.pipeline_mode<synchronous>, transform_indices = @transform_2, window_bounds = array<i64: 1, 2048, 512>}, {pipeline_mode = #tpu.pipeline_mode<synchronous>, transform_indices = @transform_3, window_bounds = array<i64: 1, 512, 512>}, {pipeline_mode = #tpu.pipeline_mode<synchronous>, transform_indices = @transform_4, window_bounds = array<i64: 1, 512>}, {pipeline_mode = #tpu.pipeline_mode<synchronous>, transform_indices = @transform_5, window_bounds = array<i64: 1, 512>}, {pipeline_mode = #tpu.pipeline_mode<synchronous>, transform_indices = @transform_6, window_bounds = array<i64: 512, 128>}, {pipeline_mode = #tpu.pipeline_mode<synchronous>, transform_indices = @transform_7, window_bounds = array<i64: 512, 128>}, {pipeline_mode = #tpu.pipeline_mode<synchronous>, transform_indices = @transform_8, window_bounds = array<i64: 1, 128>}, {pipeline_mode = #tpu.pipeline_mode<synchronous>, transform_indices = @transform_9, window_bounds = array<i64: 128, 64>}, {pipeline_mode = #tpu.pipeline_mode<synchronous>, transform_indices = @transform_10, window_bounds = array<i64: 1, 64>}, {pipeline_mode = #tpu.pipeline_mode<synchronous>, transform_indices = @transform_11, window_bounds = array<i64: 64, 8>}, {pipeline_mode = #tpu.pipeline_mode<synchronous>, transform_indices = @transform_12, window_bounds = array<i64: 1, 8>}, {transform_indices = @transform_13, window_bounds = array<i64: 16, 8>}]} {
    %c0_i32 = arith.constant 0 : i32
    %0 = arith.cmpi eq, %arg1, %c0_i32 : i32
    %1 = arith.extui %0 : i1 to i32
    %c0_i32_0 = arith.constant 0 : i32
    %2 = arith.cmpi ne, %1, %c0_i32_0 : i32
    scf.if %2 {
      %cst = arith.constant 0.000000e+00 : f32
      %12 = vector.broadcast %cst : f32 to vector<16x512xf32>
      %c0 = arith.constant 0 : index
      %c0_6 = arith.constant 0 : index
      %13 = vector.load %arg16[%c0, %c0_6] : memref<16x512xf32, #tpu.memory_space<vmem>>, vector<16x512xf32>
      tpu.vector_store %arg16[%c0, %c0_6], %12 {strides = array<i32>} : memref<16x512xf32, #tpu.memory_space<vmem>>, vector<16x512xf32>,
      %cst_7 = arith.constant 0.000000e+00 : f32
      %14 = vector.broadcast %cst_7 : f32 to vector<16x512xf32>
      %c0_8 = arith.constant 0 : index
      %c0_9 = arith.constant 0 : index
      %15 = vector.load %arg17[%c0_8, %c0_9] : memref<16x512xf32, #tpu.memory_space<vmem>>, vector<16x512xf32>
      tpu.vector_store %arg17[%c0_8, %c0_9], %14 {strides = array<i32>} : memref<16x512xf32, #tpu.memory_space<vmem>>, vector<16x512xf32>,
    } else {
    }
    %c1_i32 = arith.constant 1 : i32
    %3 = arith.cmpi slt, %arg1, %c1_i32 : i32
    %4 = arith.extui %3 : i1 to i32
    %c0_i32_1 = arith.constant 0 : i32
    %5 = arith.cmpi ne, %4, %c0_i32_1 : i32
    scf.if %5 {
      %c0 = arith.constant 0 : index
      %c0_6 = arith.constant 0 : index
      %12 = vector.load %arg16[%c0, %c0_6] : memref<16x512xf32, #tpu.memory_space<vmem>>, vector<16x512xf32>
      %c0_7 = arith.constant 0 : index
      %c0_8 = arith.constant 0 : index
      %13 = vector.load %arg2[%c0_7, %c0_8] : memref<16x2048xbf16, #tpu.memory_space<vmem>>, vector<16x2048xbf16>
      %14 = arith.index_cast %arg1 : i32 to index
      %c0_9 = arith.constant 0 : index
      %c0_10 = arith.constant 0 : index
      %15 = vector.load %arg4[%14, %c0_9, %c0_10] : memref<1x2048x512xbf16, #tpu.memory_space<vmem>>, vector<1x2048x512xbf16>
      %16 = vector.shape_cast %15 : vector<1x2048x512xbf16> to vector<2048x512xbf16>
      %cst = arith.constant dense<0.000000e+00> : vector<16x512xf32>
      %17 = tpu.matmul %13, %16, %cst {dimension_numbers = #tpu.dot_dimension_numbers<[1], [0], [0], [1], [0, 0, 1, 1], [], []>} : vector<16x2048xbf16>, vector<2048x512xbf16>, vector<16x512xf32> -> vector<16x512xf32>
      %18 = arith.addf %12, %17 : vector<16x512xf32>
      %c0_11 = arith.constant 0 : index
      %c0_12 = arith.constant 0 : index
      %19 = vector.load %arg16[%c0_11, %c0_12] : memref<16x512xf32, #tpu.memory_space<vmem>>, vector<16x512xf32>
      tpu.vector_store %arg16[%c0_11, %c0_12], %18 {strides = array<i32>} : memref<16x512xf32, #tpu.memory_space<vmem>>, vector<16x512xf32>,
    } else {
    }
    %c1_i32_2 = arith.constant 1 : i32
    %6 = arith.cmpi sge, %arg1, %c1_i32_2 : i32
    %7 = arith.extui %6 : i1 to i32
    %c0_i32_3 = arith.constant 0 : i32
    %8 = arith.cmpi ne, %7, %c0_i32_3 : i32
    scf.if %8 {
      %c0 = arith.constant 0 : index
      %c0_6 = arith.constant 0 : index
      %12 = vector.load %arg17[%c0, %c0_6] : memref<16x512xf32, #tpu.memory_space<vmem>>, vector<16x512xf32>
      %c0_7 = arith.constant 0 : index
      %c0_8 = arith.constant 0 : index
      %13 = vector.load %arg3[%c0_7, %c0_8] : memref<16x512xbf16, #tpu.memory_space<vmem>>, vector<16x512xbf16>
      %c1_i32_9 = arith.constant 1 : i32
      %14 = arith.subi %arg1, %c1_i32_9 : i32
      %15 = arith.index_cast %14 : i32 to index
      %c0_10 = arith.constant 0 : index
      %c0_11 = arith.constant 0 : index
      %16 = vector.load %arg5[%15, %c0_10, %c0_11] : memref<1x512x512xbf16, #tpu.memory_space<vmem>>, vector<1x512x512xbf16>
      %17 = vector.shape_cast %16 : vector<1x512x512xbf16> to vector<512x512xbf16>
      %cst = arith.constant dense<0.000000e+00> : vector<16x512xf32>
      %18 = tpu.matmul %13, %17, %cst {dimension_numbers = #tpu.dot_dimension_numbers<[1], [0], [0], [1], [0, 0, 1, 1], [], []>} : vector<16x512xbf16>, vector<512x512xbf16>, vector<16x512xf32> -> vector<16x512xf32>
      %19 = arith.addf %12, %18 : vector<16x512xf32>
      %c0_12 = arith.constant 0 : index
      %c0_13 = arith.constant 0 : index
      %20 = vector.load %arg17[%c0_12, %c0_13] : memref<16x512xf32, #tpu.memory_space<vmem>>, vector<16x512xf32>
      tpu.vector_store %arg17[%c0_12, %c0_13], %19 {strides = array<i32>} : memref<16x512xf32, #tpu.memory_space<vmem>>, vector<16x512xf32>,
    } else {
    }
    %c1_i32_4 = arith.constant 1 : i32
    %9 = arith.cmpi eq, %arg1, %c1_i32_4 : i32
    %10 = arith.extui %9 : i1 to i32
    %c0_i32_5 = arith.constant 0 : i32
    %11 = arith.cmpi ne, %10, %c0_i32_5 : i32
    scf.if %11 {
      %c0 = arith.constant 0 : index
      %c0_6 = arith.constant 0 : index
      %12 = vector.load %arg16[%c0, %c0_6] : memref<16x512xf32, #tpu.memory_space<vmem>>, vector<16x512xf32>
      %c0_7 = arith.constant 0 : index
      %c0_8 = arith.constant 0 : index
      %13 = vector.load %arg6[%c0_7, %c0_8] : memref<1x512xf32, #tpu.memory_space<vmem>>, vector<1x512xf32>
      %14 = vector.broadcast %13 : vector<1x512xf32> to vector<16x512xf32>
      %15 = arith.addf %12, %14 : vector<16x512xf32>
      %cst = arith.constant 0.000000e+00 : f32
      %16 = vector.broadcast %cst : f32 to vector<16x512xf32>
      %17 = arith.maximumf %15, %16 : vector<16x512xf32>
      %c0_9 = arith.constant 0 : index
      %c0_10 = arith.constant 0 : index
      %18 = vector.load %arg17[%c0_9, %c0_10] : memref<16x512xf32, #tpu.memory_space<vmem>>, vector<16x512xf32>
      %c0_11 = arith.constant 0 : index
      %c0_12 = arith.constant 0 : index
      %19 = vector.load %arg7[%c0_11, %c0_12] : memref<1x512xf32, #tpu.memory_space<vmem>>, vector<1x512xf32>
      %20 = vector.broadcast %19 : vector<1x512xf32> to vector<16x512xf32>
      %21 = arith.addf %18, %20 : vector<16x512xf32>
      %cst_13 = arith.constant 0.000000e+00 : f32
      %22 = vector.broadcast %cst_13 : f32 to vector<16x512xf32>
      %23 = arith.maximumf %21, %22 : vector<16x512xf32>
      %c0_14 = arith.constant 0 : index
      %c0_15 = arith.constant 0 : index
      %24 = vector.load %arg8[%c0_14, %c0_15] : memref<512x128xf32, #tpu.memory_space<vmem>>, vector<512x128xf32>
      %cst_16 = arith.constant dense<0.000000e+00> : vector<16x128xf32>
      %25 = tpu.matmul %17, %24, %cst_16 {dimension_numbers = #tpu.dot_dimension_numbers<[1], [0], [0], [1], [0, 0, 1, 1], [], []>} : vector<16x512xf32>, vector<512x128xf32>, vector<16x128xf32> -> vector<16x128xf32>
      %c0_17 = arith.constant 0 : index
      %c0_18 = arith.constant 0 : index
      %26 = vector.load %arg9[%c0_17, %c0_18] : memref<512x128xf32, #tpu.memory_space<vmem>>, vector<512x128xf32>
      %cst_19 = arith.constant dense<0.000000e+00> : vector<16x128xf32>
      %27 = tpu.matmul %23, %26, %cst_19 {dimension_numbers = #tpu.dot_dimension_numbers<[1], [0], [0], [1], [0, 0, 1, 1], [], []>} : vector<16x512xf32>, vector<512x128xf32>, vector<16x128xf32> -> vector<16x128xf32>
      %28 = arith.addf %25, %27 : vector<16x128xf32>
      %c0_20 = arith.constant 0 : index
      %c0_21 = arith.constant 0 : index
      %29 = vector.load %arg10[%c0_20, %c0_21] : memref<1x128xf32, #tpu.memory_space<vmem>>, vector<1x128xf32>
      %30 = vector.broadcast %29 : vector<1x128xf32> to vector<16x128xf32>
      %31 = arith.addf %28, %30 : vector<16x128xf32>
      %cst_22 = arith.constant 0.000000e+00 : f32
      %32 = vector.broadcast %cst_22 : f32 to vector<16x128xf32>
      %33 = arith.maximumf %31, %32 : vector<16x128xf32>
      %c0_23 = arith.constant 0 : index
      %c0_24 = arith.constant 0 : index
      %34 = vector.load %arg11[%c0_23, %c0_24] : memref<128x64xf32, #tpu.memory_space<vmem>>, vector<128x64xf32>
      %cst_25 = arith.constant dense<0.000000e+00> : vector<16x64xf32>
      %35 = tpu.matmul %33, %34, %cst_25 {dimension_numbers = #tpu.dot_dimension_numbers<[1], [0], [0], [1], [0, 0, 1, 1], [], []>} : vector<16x128xf32>, vector<128x64xf32>, vector<16x64xf32> -> vector<16x64xf32>
      %c0_26 = arith.constant 0 : index
      %c0_27 = arith.constant 0 : index
      %36 = vector.load %arg12[%c0_26, %c0_27] : memref<1x64xf32, #tpu.memory_space<vmem>>, vector<1x64xf32>
      %37 = vector.broadcast %36 : vector<1x64xf32> to vector<16x64xf32>
      %38 = arith.addf %35, %37 : vector<16x64xf32>
      %cst_28 = arith.constant 0.000000e+00 : f32
      %39 = vector.broadcast %cst_28 : f32 to vector<16x64xf32>
      %40 = arith.maximumf %38, %39 : vector<16x64xf32>
      %c0_29 = arith.constant 0 : index
      %c0_30 = arith.constant 0 : index
      %41 = vector.load %arg13[%c0_29, %c0_30] : memref<64x8xf32, #tpu.memory_space<vmem>>, vector<64x8xf32>
      %cst_31 = arith.constant dense<0.000000e+00> : vector<16x8xf32>
      %42 = tpu.matmul %40, %41, %cst_31 {dimension_numbers = #tpu.dot_dimension_numbers<[1], [0], [0], [1], [0, 0, 1, 1], [], []>} : vector<16x64xf32>, vector<64x8xf32>, vector<16x8xf32> -> vector<16x8xf32>
      %c0_32 = arith.constant 0 : index
      %c0_33 = arith.constant 0 : index
      %43 = vector.load %arg14[%c0_32, %c0_33] : memref<1x8xf32, #tpu.memory_space<vmem>>, vector<1x8xf32>
      %44 = vector.broadcast %43 : vector<1x8xf32> to vector<16x8xf32>
      %45 = arith.addf %42, %44 : vector<16x8xf32>
      %c0_34 = arith.constant 0 : index
      %c0_35 = arith.constant 0 : index
      %46 = vector.load %arg15[%c0_34, %c0_35] : memref<16x8xf32, #tpu.memory_space<vmem>>, vector<16x8xf32>
      tpu.vector_store %arg15[%c0_34, %c0_35], %45 {strides = array<i32>} : memref<16x8xf32, #tpu.memory_space<vmem>>, vector<16x8xf32>,
    } else {
    }
    return
  }
  func.func @transform_0(%arg0: i32, %arg1: i32) -> (i32, i32) {
    %c0_i32 = arith.constant 0 : i32
    %0 = arith.minsi %arg1, %c0_i32 : i32
    %c0_i32_0 = arith.constant 0 : i32
    return %arg0, %0 : i32, i32
  }
  func.func @transform_1(%arg0: i32, %arg1: i32) -> (i32, i32) {
    %c1_i32 = arith.constant 1 : i32
    %0 = arith.subi %arg1, %c1_i32 : i32
    %c0_i32 = arith.constant 0 : i32
    %1 = arith.maxsi %0, %c0_i32 : i32
    %c0_i32_0 = arith.constant 0 : i32
    return %arg0, %1 : i32, i32
  }
  func.func @transform_2(%arg0: i32, %arg1: i32) -> (i32, i32, i32) {
    %c0_i32 = arith.constant 0 : i32
    %c0_i32_0 = arith.constant 0 : i32
    %c0_i32_1 = arith.constant 0 : i32
    %c0_i32_2 = arith.constant 0 : i32
    return %c0_i32, %c0_i32_0, %c0_i32_1 : i32, i32, i32
  }
  func.func @transform_3(%arg0: i32, %arg1: i32) -> (i32, i32, i32) {
    %c0_i32 = arith.constant 0 : i32
    %c0_i32_0 = arith.constant 0 : i32
    %c0_i32_1 = arith.constant 0 : i32
    %c0_i32_2 = arith.constant 0 : i32
    return %c0_i32, %c0_i32_0, %c0_i32_1 : i32, i32, i32
  }
  func.func @transform_4(%arg0: i32, %arg1: i32) -> (i32, i32) {
    %c0_i32 = arith.constant 0 : i32
    %c0_i32_0 = arith.constant 0 : i32
    %c0_i32_1 = arith.constant 0 : i32
    return %c0_i32, %c0_i32_0 : i32, i32
  }
  func.func @transform_5(%arg0: i32, %arg1: i32) -> (i32, i32) {
    %c0_i32 = arith.constant 0 : i32
    %c0_i32_0 = arith.constant 0 : i32
    %c0_i32_1 = arith.constant 0 : i32
    return %c0_i32, %c0_i32_0 : i32, i32
  }
  func.func @transform_6(%arg0: i32, %arg1: i32) -> (i32, i32) {
    %c0_i32 = arith.constant 0 : i32
    %c0_i32_0 = arith.constant 0 : i32
    %c0_i32_1 = arith.constant 0 : i32
    return %c0_i32, %c0_i32_0 : i32, i32
  }
  func.func @transform_7(%arg0: i32, %arg1: i32) -> (i32, i32) {
    %c0_i32 = arith.constant 0 : i32
    %c0_i32_0 = arith.constant 0 : i32
    %c0_i32_1 = arith.constant 0 : i32
    return %c0_i32, %c0_i32_0 : i32, i32
  }
  func.func @transform_8(%arg0: i32, %arg1: i32) -> (i32, i32) {
    %c0_i32 = arith.constant 0 : i32
    %c0_i32_0 = arith.constant 0 : i32
    %c0_i32_1 = arith.constant 0 : i32
    return %c0_i32, %c0_i32_0 : i32, i32
  }
  func.func @transform_9(%arg0: i32, %arg1: i32) -> (i32, i32) {
    %c0_i32 = arith.constant 0 : i32
    %c0_i32_0 = arith.constant 0 : i32
    %c0_i32_1 = arith.constant 0 : i32
    return %c0_i32, %c0_i32_0 : i32, i32
  }
  func.func @transform_10(%arg0: i32, %arg1: i32) -> (i32, i32) {
    %c0_i32 = arith.constant 0 : i32
    %c0_i32_0 = arith.constant 0 : i32
    %c0_i32_1 = arith.constant 0 : i32
    return %c0_i32, %c0_i32_0 : i32, i32
  }
  func.func @transform_11(%arg0: i32, %arg1: i32) -> (i32, i32) {
    %c0_i32 = arith.constant 0 : i32
    %c0_i32_0 = arith.constant 0 : i32
    %c0_i32_1 = arith.constant 0 : i32
    return %c0_i32, %c0_i32_0 : i32, i32
  }
  func.func @transform_12(%arg0: i32, %arg1: i32) -> (i32, i32) {
    %c0_i32 = arith.constant 0 : i32
    %c0_i32_0 = arith.constant 0 : i32
    %c0_i32_1 = arith.constant 0 : i32
    return %c0_i32, %c0_i32_0 : i32, i32
  }
  func.func @transform_13(%arg0: i32, %arg1: i32) -> (i32, i32) {
    %c0_i32 = arith.constant 0 : i32
    %c0_i32_0 = arith.constant 0 : i32
    return %arg0, %c0_i32 : i32, i32
  }
}

</mosaic_0001>

<llo_original>
// kernel: forward.1
$region0: #{forward.1}
  #allocation0 [shape = 'u32[]', space=smem, size = 0x4, offset = 0x4, fixed_abs, tag = 'smem constant byte address 0x4 - core index']
  #allocation1 [shape = 'u32[144,128]{1,0:T(1,128)}', space=vmem, size = 0x12000, scoped, tag = 'internal scratch']
  #allocation2 [shape = 'f32[16,512]{1,0:T(8,128)}', space=vmem, size = 0x8000, scoped, tag = 'scratch operand']
  #allocation3 [shape = 'f32[16,512]{1,0:T(8,128)}', space=vmem, size = 0x8000, scoped, tag = 'scratch operand']
  %s0 = inlined_call_operand.vmem [shape: bf16[16,2048], index: 0, kind: input, shape index: {}]
  %s1 = inlined_call_operand.vmem [shape: bf16[16,512], index: 1, kind: input, shape index: {}]
  %s2 = inlined_call_operand.vmem [shape: bf16[1,2048,512], index: 2, kind: input, shape index: {}]
  %s3 = inlined_call_operand.vmem [shape: bf16[1,512,512], index: 3, kind: input, shape index: {}]
  %s4 = inlined_call_operand.vmem [shape: f32[1,512], index: 4, kind: input, shape index: {}]
  %s5 = inlined_call_operand.vmem [shape: f32[1,512], index: 5, kind: input, shape index: {}]
  %s6 = inlined_call_operand.vmem [shape: f32[512,128], index: 6, kind: input, shape index: {}]
  %s7 = inlined_call_operand.vmem [shape: f32[512,128], index: 7, kind: input, shape index: {}]
  %s8 = inlined_call_operand.vmem [shape: f32[1,128], index: 8, kind: input, shape index: {}]
  %s9 = inlined_call_operand.vmem [shape: f32[128,64], index: 9, kind: input, shape index: {}]
  %s10 = inlined_call_operand.vmem [shape: f32[1,64], index: 10, kind: input, shape index: {}]
  %s11 = inlined_call_operand.vmem [shape: f32[64,8], index: 11, kind: input, shape index: {}]
  %s12 = inlined_call_operand.vmem [shape: f32[1,8], index: 12, kind: input, shape index: {}]
  %s13 = inlined_call_operand.vmem [shape: f32[16,8], index: 13, kind: output, shape index: {}]
  %s14 = sld [smem:[#allocation0]]
  $region101: #{forward.1} parent=0
    _
  %s16 = ssub.s32 1, %s14
  %s17 = scalar_select 0, %s16, %s14
  loop: start=0, step=1, limit=4
  $region2: #{forward.1} parent=0 // loop_pre_header
    _
  $region3: #{forward.1} parent=0 // loop_header
    %s19 = sphi 0, %s23
    %p20 = scmp.ge.s32.totalorder %s19, 4
    %s26 = sphi 0, %s38
    %s27 = sphi 0, %s34
    %s28 = sphi 0, %s26
    %s29 = sphi 0, %s27
    %s30 = sphi 0, %s28
    %s31 = sphi 0, %s29
    %s47 = sphi 0, %s49
    %s50 = sphi 0, %s47
    %s51 = sphi 0, %s50
    %s67 = sphi 0, %s51
    %s81 = sphi 0, %s83
    %s84 = sphi 0, %s81
    %s85 = sphi 0, %s84
    %s101 = sphi 0, %s85
    %s105 = sphi 0, %s105
    %s107 = sphi 0, %s105
    %s108 = sphi 0, %s107
    %s122 = sphi 0, %s108
    %s126 = sphi 0, %s126
    %s128 = sphi 0, %s126
    %s129 = sphi 0, %s128
    %s143 = sphi 0, %s129
    %s147 = sphi 0, %s147
    %s149 = sphi 0, %s147
    %s150 = sphi 0, %s149
    %s164 = sphi 0, %s150
    %s168 = sphi 0, %s168
    %s170 = sphi 0, %s168
    %s171 = sphi 0, %s170
    %s185 = sphi 0, %s171
    %s189 = sphi 0, %s189
    %s191 = sphi 0, %s189
    %s192 = sphi 0, %s191
    %s206 = sphi 0, %s192
    %s210 = sphi 0, %s210
    %s212 = sphi 0, %s210
    %s213 = sphi 0, %s212
    %s227 = sphi 0, %s213
    %s231 = sphi 0, %s231
    %s233 = sphi 0, %s231
    %s234 = sphi 0, %s233
    %s248 = sphi 0, %s234
    %s252 = sphi 0, %s252
    %s254 = sphi 0, %s252
    %s255 = sphi 0, %s254
    %s269 = sphi 0, %s255
    %s273 = sphi 0, %s273
    %s275 = sphi 0, %s273
    %s276 = sphi 0, %s275
    %s290 = sphi 0, %s276
    %s294 = sphi 0, %s294
    %s296 = sphi 0, %s294
    %s297 = sphi 0, %s296
    %s311 = sphi 0, %s297
    %s315 = sphi 0, %s315
    %s317 = sphi 0, %s315
    %s318 = sphi 0, %s317
    %s332 = sphi 0, %s318
    %s338 = sphi 0, %s340
    %s341 = sphi 0, %s338
    %s342 = sphi 0, %s341
    %s358 = sphi 0, %s342
  $region4: #{forward.1} parent=0 // loop_header_branch
    %22 = sbr.rel (%p20) target = $region8
  $region5: #{forward.1} parent=0 // loop_body
    %s24 = ssub.s32 %s19, 1
    %s25 = ssub.s32 %s19, 2
    %s32 = sadd.s32 1, %s27
    %p33 = scmp.ge.s32.totalorder %s32, 2
    %s34 = scalar_select %p33, 0, %s32
    %s35 = sadd.s32 1, %s26
    %s36 = scalar_select %p33, %s35, %s26
    %p37 = scmp.ge.s32.totalorder %s36, 1
    %s38 = scalar_select %p37, 0, %s36
    %p39 = scmp.lt.s32.totalorder %s27, 0
    %s40 = scalar_select %p39, %s27, 0
    %p41 = scmp.lt.s32.totalorder %s34, 0
    %s42 = scalar_select %p41, %s34, 0
    %s43 = ssub.s32 %s26, %s38
    %s44 = ssub.s32 %s40, %s42
    %s45 = sor.u32 %s43, %s44
    %p46 = scmp.eq.s32.totalorder %s45, 0
    %s48 = sadd.s32 %s47, 1
    %s49 = scalar_select %p46, %s47, %s48
    %p52 = pneg %p46
    %p53 = scmp.eq.s32.totalorder %s19, 1
    %p54 = por %p52, %p53
    %p55 = scmp.ne.s32.totalorder %s47, %s50
    %p56 = scmp.eq.s32.totalorder %s19, 0
    %p57 = por %p55, %p56
    %p58 = scmp.ne.s32.totalorder %s47, %s50
    %p59 = scmp.eq.s32.totalorder %s24, 1
    %p60 = por %p58, %p59
    %p61 = scmp.ne.s32.totalorder %s50, %s51
    %p62 = scmp.eq.s32.totalorder %s24, 0
    %p63 = por %p61, %p62
    %p64 = scmp.ne.s32.totalorder %s50, %s51
    %p65 = scmp.eq.s32.totalorder %s25, 1
    %p66 = por %p64, %p65
    %p68 = scmp.ne.s32.totalorder %s51, %s67
    %p69 = scmp.eq.s32.totalorder %s25, 0
    %p70 = por %p68, %p69
    %s71 = ssub.s32 %s27, 1
    %p72 = scmp.gt.s32.totalorder %s71, 0
    %s73 = scalar_select %p72, %s71, 0
    %s74 = ssub.s32 %s34, 1
    %p75 = scmp.gt.s32.totalorder %s74, 0
    %s76 = scalar_select %p75, %s74, 0
    %s77 = ssub.s32 %s26, %s38
    %s78 = ssub.s32 %s73, %s76
    %s79 = sor.u32 %s77, %s78
    %p80 = scmp.eq.s32.totalorder %s79, 0
    %s82 = sadd.s32 %s81, 1
    %s83 = scalar_select %p80, %s81, %s82
    %p86 = pneg %p80
    %p87 = scmp.eq.s32.totalorder %s19, 1
    %p88 = por %p86, %p87
    %p89 = scmp.ne.s32.totalorder %s81, %s84
    %p90 = scmp.eq.s32.totalorder %s19, 0
    %p91 = por %p89, %p90
    %p92 = scmp.ne.s32.totalorder %s81, %s84
    %p93 = scmp.eq.s32.totalorder %s24, 1
    %p94 = por %p92, %p93
    %p95 = scmp.ne.s32.totalorder %s84, %s85
    %p96 = scmp.eq.s32.totalorder %s24, 0
    %p97 = por %p95, %p96
    %p98 = scmp.ne.s32.totalorder %s84, %s85
    %p99 = scmp.eq.s32.totalorder %s25, 1
    %p100 = por %p98, %p99
    %p102 = scmp.ne.s32.totalorder %s85, %s101
    %p103 = scmp.eq.s32.totalorder %s25, 0
    %p104 = por %p102, %p103
    %s106 = sadd.s32 %s105, 1
    %p109 = scmp.eq.s32.totalorder %s19, 1
    %p110 = scmp.ne.s32.totalorder %s105, %s107
    %p111 = scmp.eq.s32.totalorder %s19, 0
    %p112 = por %p110, %p111
    %p113 = scmp.ne.s32.totalorder %s105, %s107
    %p114 = scmp.eq.s32.totalorder %s24, 1
    %p115 = por %p113, %p114
    %p116 = scmp.ne.s32.totalorder %s107, %s108
    %p117 = scmp.eq.s32.totalorder %s24, 0
    %p118 = por %p116, %p117
    %p119 = scmp.ne.s32.totalorder %s107, %s108
    %p120 = scmp.eq.s32.totalorder %s25, 1
    %p121 = por %p119, %p120
    %p123 = scmp.ne.s32.totalorder %s108, %s122
    %p124 = scmp.eq.s32.totalorder %s25, 0
    %p125 = por %p123, %p124
    %s127 = sadd.s32 %s126, 1
    %p130 = scmp.eq.s32.totalorder %s19, 1
    %p131 = scmp.ne.s32.totalorder %s126, %s128
    %p132 = scmp.eq.s32.totalorder %s19, 0
    %p133 = por %p131, %p132
    %p134 = scmp.ne.s32.totalorder %s126, %s128
    %p135 = scmp.eq.s32.totalorder %s24, 1
    %p136 = por %p134, %p135
    %p137 = scmp.ne.s32.totalorder %s128, %s129
    %p138 = scmp.eq.s32.totalorder %s24, 0
    %p139 = por %p137, %p138
    %p140 = scmp.ne.s32.totalorder %s128, %s129
    %p141 = scmp.eq.s32.totalorder %s25, 1
    %p142 = por %p140, %p141
    %p144 = scmp.ne.s32.totalorder %s129, %s143
    %p145 = scmp.eq.s32.totalorder %s25, 0
    %p146 = por %p144, %p145
    %s148 = sadd.s32 %s147, 1
    %p151 = scmp.eq.s32.totalorder %s19, 1
    %p152 = scmp.ne.s32.totalorder %s147, %s149
    %p153 = scmp.eq.s32.totalorder %s19, 0
    %p154 = por %p152, %p153
    %p155 = scmp.ne.s32.totalorder %s147, %s149
    %p156 = scmp.eq.s32.totalorder %s24, 1
    %p157 = por %p155, %p156
    %p158 = scmp.ne.s32.totalorder %s149, %s150
    %p159 = scmp.eq.s32.totalorder %s24, 0
    %p160 = por %p158, %p159
    %p161 = scmp.ne.s32.totalorder %s149, %s150
    %p162 = scmp.eq.s32.totalorder %s25, 1
    %p163 = por %p161, %p162
    %p165 = scmp.ne.s32.totalorder %s150, %s164
    %p166 = scmp.eq.s32.totalorder %s25, 0
    %p167 = por %p165, %p166
    %s169 = sadd.s32 %s168, 1
    %p172 = scmp.eq.s32.totalorder %s19, 1
    %p173 = scmp.ne.s32.totalorder %s168, %s170
    %p174 = scmp.eq.s32.totalorder %s19, 0
    %p175 = por %p173, %p174
    %p176 = scmp.ne.s32.totalorder %s168, %s170
    %p177 = scmp.eq.s32.totalorder %s24, 1
    %p178 = por %p176, %p177
    %p179 = scmp.ne.s32.totalorder %s170, %s171
    %p180 = scmp.eq.s32.totalorder %s24, 0
    %p181 = por %p179, %p180
    %p182 = scmp.ne.s32.totalorder %s170, %s171
    %p183 = scmp.eq.s32.totalorder %s25, 1
    %p184 = por %p182, %p183
    %p186 = scmp.ne.s32.totalorder %s171, %s185
    %p187 = scmp.eq.s32.totalorder %s25, 0
    %p188 = por %p186, %p187
    %s190 = sadd.s32 %s189, 1
    %p193 = scmp.eq.s32.totalorder %s19, 1
    %p194 = scmp.ne.s32.totalorder %s189, %s191
    %p195 = scmp.eq.s32.totalorder %s19, 0
    %p196 = por %p194, %p195
    %p197 = scmp.ne.s32.totalorder %s189, %s191
    %p198 = scmp.eq.s32.totalorder %s24, 1
    %p199 = por %p197, %p198
    %p200 = scmp.ne.s32.totalorder %s191, %s192
    %p201 = scmp.eq.s32.totalorder %s24, 0
    %p202 = por %p200, %p201
    %p203 = scmp.ne.s32.totalorder %s191, %s192
    %p204 = scmp.eq.s32.totalorder %s25, 1
    %p205 = por %p203, %p204
    %p207 = scmp.ne.s32.totalorder %s192, %s206
    %p208 = scmp.eq.s32.totalorder %s25, 0
    %p209 = por %p207, %p208
    %s211 = sadd.s32 %s210, 1
    %p214 = scmp.eq.s32.totalorder %s19, 1
    %p215 = scmp.ne.s32.totalorder %s210, %s212
    %p216 = scmp.eq.s32.totalorder %s19, 0
    %p217 = por %p215, %p216
    %p218 = scmp.ne.s32.totalorder %s210, %s212
    %p219 = scmp.eq.s32.totalorder %s24, 1
    %p220 = por %p218, %p219
    %p221 = scmp.ne.s32.totalorder %s212, %s213
    %p222 = scmp.eq.s32.totalorder %s24, 0
    %p223 = por %p221, %p222
    %p224 = scmp.ne.s32.totalorder %s212, %s213
    %p225 = scmp.eq.s32.totalorder %s25, 1
    %p226 = por %p224, %p225
    %p228 = scmp.ne.s32.totalorder %s213, %s227
    %p229 = scmp.eq.s32.totalorder %s25, 0
    %p230 = por %p228, %p229
    %s232 = sadd.s32 %s231, 1
    %p235 = scmp.eq.s32.totalorder %s19, 1
    %p236 = scmp.ne.s32.totalorder %s231, %s233
    %p237 = scmp.eq.s32.totalorder %s19, 0
    %p238 = por %p236, %p237
    %p239 = scmp.ne.s32.totalorder %s231, %s233
    %p240 = scmp.eq.s32.totalorder %s24, 1
    %p241 = por %p239, %p240
    %p242 = scmp.ne.s32.totalorder %s233, %s234
    %p243 = scmp.eq.s32.totalorder %s24, 0
    %p244 = por %p242, %p243
    %p245 = scmp.ne.s32.totalorder %s233, %s234
    %p246 = scmp.eq.s32.totalorder %s25, 1
    %p247 = por %p245, %p246
    %p249 = scmp.ne.s32.totalorder %s234, %s248
    %p250 = scmp.eq.s32.totalorder %s25, 0
    %p251 = por %p249, %p250
    %s253 = sadd.s32 %s252, 1
    %p256 = scmp.eq.s32.totalorder %s19, 1
    %p257 = scmp.ne.s32.totalorder %s252, %s254
    %p258 = scmp.eq.s32.totalorder %s19, 0
    %p259 = por %p257, %p258
    %p260 = scmp.ne.s32.totalorder %s252, %s254
    %p261 = scmp.eq.s32.totalorder %s24, 1
    %p262 = por %p260, %p261
    %p263 = scmp.ne.s32.totalorder %s254, %s255
    %p264 = scmp.eq.s32.totalorder %s24, 0
    %p265 = por %p263, %p264
    %p266 = scmp.ne.s32.totalorder %s254, %s255
    %p267 = scmp.eq.s32.totalorder %s25, 1
    %p268 = por %p266, %p267
    %p270 = scmp.ne.s32.totalorder %s255, %s269
    %p271 = scmp.eq.s32.totalorder %s25, 0
    %p272 = por %p270, %p271
    %s274 = sadd.s32 %s273, 1
    %p277 = scmp.eq.s32.totalorder %s19, 1
    %p278 = scmp.ne.s32.totalorder %s273, %s275
    %p279 = scmp.eq.s32.totalorder %s19, 0
    %p280 = por %p278, %p279
    %p281 = scmp.ne.s32.totalorder %s273, %s275
    %p282 = scmp.eq.s32.totalorder %s24, 1
    %p283 = por %p281, %p282
    %p284 = scmp.ne.s32.totalorder %s275, %s276
    %p285 = scmp.eq.s32.totalorder %s24, 0
    %p286 = por %p284, %p285
    %p287 = scmp.ne.s32.totalorder %s275, %s276
    %p288 = scmp.eq.s32.totalorder %s25, 1
    %p289 = por %p287, %p288
    %p291 = scmp.ne.s32.totalorder %s276, %s290
    %p292 = scmp.eq.s32.totalorder %s25, 0
    %p293 = por %p291, %p292
    %s295 = sadd.s32 %s294, 1
    %p298 = scmp.eq.s32.totalorder %s19, 1
    %p299 = scmp.ne.s32.totalorder %s294, %s296
    %p300 = scmp.eq.s32.totalorder %s19, 0
    %p301 = por %p299, %p300
    %p302 = scmp.ne.s32.totalorder %s294, %s296
    %p303 = scmp.eq.s32.totalorder %s24, 1
    %p304 = por %p302, %p303
    %p305 = scmp.ne.s32.totalorder %s296, %s297
    %p306 = scmp.eq.s32.totalorder %s24, 0
    %p307 = por %p305, %p306
    %p308 = scmp.ne.s32.totalorder %s296, %s297
    %p309 = scmp.eq.s32.totalorder %s25, 1
    %p310 = por %p308, %p309
    %p312 = scmp.ne.s32.totalorder %s297, %s311
    %p313 = scmp.eq.s32.totalorder %s25, 0
    %p314 = por %p312, %p313
    %s316 = sadd.s32 %s315, 1
    %p319 = scmp.eq.s32.totalorder %s19, 1
    %p320 = scmp.ne.s32.totalorder %s315, %s317
    %p321 = scmp.eq.s32.totalorder %s19, 0
    %p322 = por %p320, %p321
    %p323 = scmp.ne.s32.totalorder %s315, %s317
    %p324 = scmp.eq.s32.totalorder %s24, 1
    %p325 = por %p323, %p324
    %p326 = scmp.ne.s32.totalorder %s317, %s318
    %p327 = scmp.eq.s32.totalorder %s24, 0
    %p328 = por %p326, %p327
    %p329 = scmp.ne.s32.totalorder %s317, %s318
    %p330 = scmp.eq.s32.totalorder %s25, 1
    %p331 = por %p329, %p330
    %p333 = scmp.ne.s32.totalorder %s318, %s332
    %p334 = scmp.eq.s32.totalorder %s25, 0
    %p335 = por %p333, %p334
    %s336 = ssub.s32 %s26, %s38
    %p337 = scmp.eq.s32.totalorder %s336, 0
    %s339 = sadd.s32 %s338, 1
    %s340 = scalar_select %p337, %s338, %s339
    %p343 = pneg %p337
    %p344 = scmp.eq.s32.totalorder %s19, 1
    %p345 = por %p343, %p344
    %p346 = scmp.ne.s32.totalorder %s338, %s341
    %p347 = scmp.eq.s32.totalorder %s19, 0
    %p348 = por %p346, %p347
    %p349 = scmp.ne.s32.totalorder %s338, %s341
    %p350 = scmp.eq.s32.totalorder %s24, 1
    %p351 = por %p349, %p350
    %p352 = scmp.ne.s32.totalorder %s341, %s342
    %p353 = scmp.eq.s32.totalorder %s24, 0
    %p354 = por %p352, %p353
    %p355 = scmp.ne.s32.totalorder %s341, %s342
    %p356 = scmp.eq.s32.totalorder %s25, 1
    %p357 = por %p355, %p356
    %p359 = scmp.ne.s32.totalorder %s342, %s358
    %p360 = scmp.eq.s32.totalorder %s25, 0
    %p361 = por %p359, %p360
    %p362 = scmp.le.s32.totalorder 1, %s19
    %p363 = scmp.lt.s32.totalorder %s19, 3
    %p364 = pnand %p362, %p363
    %p365 = pneg %p364
    // Predicated region
    $region9: #{forward.1} parent=5 // pred_check
      _
    $region10: #{forward.1} parent=5 // pred_check_branch
      %367 = sbr.rel (%p364) target = $region12
    $region11: #{forward.1} parent=5 // pred_region
      %s368 = ssub.s32 %s19, 1
      // Predicated region
      $region13: #{forward.1} parent=11 // pred_check
        %p369 = pneg %p118
      $region14: #{forward.1} parent=11 // pred_check_branch
        %371 = sbr.rel (%p369) target = $region16
      $region15: #{forward.1} parent=11 // pred_region
        _
      $region16: #{forward.1} parent=11 // pred_fallthru
        _
      // Predicated region
      $region17: #{forward.1} parent=11 // pred_check
        %p372 = pneg %p139
      $region18: #{forward.1} parent=11 // pred_check_branch
        %374 = sbr.rel (%p372) target = $region20
      $region19: #{forward.1} parent=11 // pred_region
        _
      $region20: #{forward.1} parent=11 // pred_fallthru
        _
      // Predicated region
      $region21: #{forward.1} parent=11 // pred_check
        %p375 = pneg %p160
      $region22: #{forward.1} parent=11 // pred_check_branch
        %377 = sbr.rel (%p375) target = $region24
      $region23: #{forward.1} parent=11 // pred_region
        _
      $region24: #{forward.1} parent=11 // pred_fallthru
        _
      // Predicated region
      $region25: #{forward.1} parent=11 // pred_check
        %p378 = pneg %p181
      $region26: #{forward.1} parent=11 // pred_check_branch
        %380 = sbr.rel (%p378) target = $region28
      $region27: #{forward.1} parent=11 // pred_region
        _
      $region28: #{forward.1} parent=11 // pred_fallthru
        _
      // Predicated region
      $region29: #{forward.1} parent=11 // pred_check
        %p381 = pneg %p202
      $region30: #{forward.1} parent=11 // pred_check_branch
        %383 = sbr.rel (%p381) target = $region32
      $region31: #{forward.1} parent=11 // pred_region
        _
      $region32: #{forward.1} parent=11 // pred_fallthru
        _
      // Predicated region
      $region33: #{forward.1} parent=11 // pred_check
        %p384 = pneg %p223
      $region34: #{forward.1} parent=11 // pred_check_branch
        %386 = sbr.rel (%p384) target = $region36
      $region35: #{forward.1} parent=11 // pred_region
        _
      $region36: #{forward.1} parent=11 // pred_fallthru
        _
      // Predicated region
      $region37: #{forward.1} parent=11 // pred_check
        %p387 = pneg %p244
      $region38: #{forward.1} parent=11 // pred_check_branch
        %389 = sbr.rel (%p387) target = $region40
      $region39: #{forward.1} parent=11 // pred_region
        _
      $region40: #{forward.1} parent=11 // pred_fallthru
        _
      // Predicated region
      $region41: #{forward.1} parent=11 // pred_check
        %p390 = pneg %p265
      $region42: #{forward.1} parent=11 // pred_check_branch
        %392 = sbr.rel (%p390) target = $region44
      $region43: #{forward.1} parent=11 // pred_region
        _
      $region44: #{forward.1} parent=11 // pred_fallthru
        _
      // Predicated region
      $region45: #{forward.1} parent=11 // pred_check
        %p393 = pneg %p286
      $region46: #{forward.1} parent=11 // pred_check_branch
        %395 = sbr.rel (%p393) target = $region48
      $region47: #{forward.1} parent=11 // pred_region
        _
      $region48: #{forward.1} parent=11 // pred_fallthru
        _
      // Predicated region
      $region49: #{forward.1} parent=11 // pred_check
        %p396 = pneg %p307
      $region50: #{forward.1} parent=11 // pred_check_branch
        %398 = sbr.rel (%p396) target = $region52
      $region51: #{forward.1} parent=11 // pred_region
        _
      $region52: #{forward.1} parent=11 // pred_fallthru
        _
      // Predicated region
      $region53: #{forward.1} parent=11 // pred_check
        %p399 = pneg %p328
      $region54: #{forward.1} parent=11 // pred_check_branch
        %401 = sbr.rel (%p399) target = $region56
      $region55: #{forward.1} parent=11 // pred_region
        _
      $region56: #{forward.1} parent=11 // pred_fallthru
        _
    $region12: #{forward.1} parent=5 // pred_fallthru
      _
    %p402 = scmp.lt.s32.totalorder %s19, 2
    // Predicated region
    $region57: #{forward.1} parent=5 // pred_check
      %p403 = pneg %p402
    $region58: #{forward.1} parent=5 // pred_check_branch
      %405 = sbr.rel (%p403) target = $region60
    $region59: #{forward.1} parent=5 // pred_region
      // Predicated region
      $region61: #{forward.1} parent=59 // pred_check
        %p406 = pneg %p57
      $region62: #{forward.1} parent=59 // pred_check_branch
        %408 = sbr.rel (%p406) target = $region64
      $region63: #{forward.1} parent=59 // pred_region
        %p409 = scmp.lt.s32.totalorder %s27, 0
        %s410 = scalar_select %p409, %s27, 0
        %s411 = smul.u32 2, %s26
        %s412 = smul.u32 16, %s410
        %p413 = scmp.lt.s32.totalorder %s411, 1
        %s414 = scalar_select %p413, %s411, 1
        %p415 = scmp.lt.s32.totalorder %s412, 15
        %s416 = scalar_select %p415, %s412, 15
        %s417 = smul.addr %s414, 16
        %s418 = sadd.s32 %s416, %s417
        %s419 = smul.addr %s418, 4
        %s420 = scalar_lea.vmem %s0, %s419
        %p421 = scmp.lt.s32.totalorder %s27, 0
        %s422 = scalar_select %p421, %s27, 0
        %s423 = smul.u32 2, %s26
        %s424 = smul.u32 16, %s422
      $region64: #{forward.1} parent=59 // pred_fallthru
        _
      // Predicated region
      $region65: #{forward.1} parent=59 // pred_check
        %p425 = pneg %p91
      $region66: #{forward.1} parent=59 // pred_check_branch
        %427 = sbr.rel (%p425) target = $region68
      $region67: #{forward.1} parent=59 // pred_region
        %s428 = ssub.s32 %s27, 1
        %p429 = scmp.gt.s32.totalorder %s428, 0
        %s430 = scalar_select %p429, %s428, 0
        %s431 = smul.u32 2, %s26
        %s432 = smul.u32 4, %s430
        %p433 = scmp.lt.s32.totalorder %s431, 1
        %s434 = scalar_select %p433, %s431, 1
        %p435 = scmp.lt.s32.totalorder %s432, 3
        %s436 = scalar_select %p435, %s432, 3
        %s437 = smul.addr %s434, 4
        %s438 = sadd.s32 %s436, %s437
        %s439 = smul.addr %s438, 4
        %s440 = scalar_lea.vmem %s1, %s439
        %s441 = ssub.s32 %s27, 1
        %p442 = scmp.gt.s32.totalorder %s441, 0
        %s443 = scalar_select %p442, %s441, 0
        %s444 = smul.u32 2, %s26
        %s445 = smul.u32 4, %s443
      $region68: #{forward.1} parent=59 // pred_fallthru
        _
    $region60: #{forward.1} parent=5 // pred_fallthru
      _
    %p446 = scmp.le.s32.totalorder 1, %s19
    %p447 = scmp.lt.s32.totalorder %s19, 3
    %p448 = pnand %p446, %p447
    %p449 = pneg %p448
    // Predicated region
    $region69: #{forward.1} parent=5 // pred_check
      _
    $region70: #{forward.1} parent=5 // pred_check_branch
      %451 = sbr.rel (%p448) target = $region72
    $region71: #{forward.1} parent=5 // pred_region
      %s452 = ssub.s32 %s19, 1
      %p453 = scmp.lt.s32.totalorder %s29, 0
      %s454 = scalar_select %p453, %s29, 0
      %s455 = smul.u32 2, %s28
      %s456 = smul.u32 16, %s454
      %p457 = scmp.lt.s32.totalorder %s455, 1
      %s458 = scalar_select %p457, %s455, 1
      %p459 = scmp.lt.s32.totalorder %s456, 15
      %s460 = scalar_select %p459, %s456, 15
      %s461 = smul.addr %s458, 16
      %s462 = sadd.s32 %s460, %s461
      %s463 = smul.addr %s462, 4
      %s464 = scalar_lea.vmem %s0, %s463
      %p465 = pneg %p63
      %p466 = pneg %p60
      %s467 = ssub.s32 %s29, 1
      %p468 = scmp.gt.s32.totalorder %s467, 0
      %s469 = scalar_select %p468, %s467, 0
      %s470 = smul.u32 2, %s28
      %s471 = smul.u32 4, %s469
      %p472 = scmp.lt.s32.totalorder %s470, 1
      %s473 = scalar_select %p472, %s470, 1
      %p474 = scmp.lt.s32.totalorder %s471, 3
      %s475 = scalar_select %p474, %s471, 3
      %s476 = smul.addr %s473, 4
      %s477 = sadd.s32 %s475, %s476
      %s478 = smul.addr %s477, 4
      %s479 = scalar_lea.vmem %s1, %s478
      %p480 = pneg %p97
      %p481 = pneg %p94
      %p482 = pneg %p118
      %p483 = pneg %p115
      %p484 = pneg %p139
      %p485 = pneg %p136
      %p486 = pneg %p160
      %p487 = pneg %p157
      %p488 = pneg %p181
      %p489 = pneg %p178
      %p490 = pneg %p202
      %p491 = pneg %p199
      %p492 = pneg %p223
      %p493 = pneg %p220
      %p494 = pneg %p244
      %p495 = pneg %p241
      %p496 = pneg %p265
      %p497 = pneg %p262
      %p498 = pneg %p286
      %p499 = pneg %p283
      %p500 = pneg %p307
      %p501 = pneg %p304
      %p502 = pneg %p328
      %p503 = pneg %p325
      %p504 = pneg %p354
      %p505 = pneg %p351
      %s506 = smul.u32 2, %s28
      %p507 = scmp.lt.s32.totalorder %s506, 1
      %s508 = scalar_select %p507, %s506, 1
      %s509 = smul.addr %s508, 8
      %s510 = scalar_lea.vmem %s13, %s509
      %p511 = scmp.lt.s32.totalorder %s29, 0
      %s512 = scalar_select %p511, %s29, 0
      %s513 = smul.u32 2, %s28
      %s514 = smul.u32 16, %s512
      %p515 = scmp.lt.s32.totalorder %s513, 1
      %s516 = scalar_select %p515, %s513, 1
      %p517 = scmp.lt.s32.totalorder %s514, 15
      %s518 = scalar_select %p517, %s514, 15
      %s519 = smul.addr %s516, 16
      %s520 = sadd.s32 %s518, %s519
      %s521 = smul.addr %s520, 4
      %s522 = scalar_lea.vmem %s0, %s521
      %p523 = scmp.lt.s32.totalorder %s29, 0
      %s524 = scalar_select %p523, %s29, 0
      %s525 = smul.u32 2, %s28
      %s526 = smul.u32 16, %s524
      %s527 = ssub.s32 %s29, 1
      %p528 = scmp.gt.s32.totalorder %s527, 0
      %s529 = scalar_select %p528, %s527, 0
      %s530 = smul.u32 2, %s28
      %s531 = smul.u32 4, %s529
      %p532 = scmp.lt.s32.totalorder %s530, 1
      %s533 = scalar_select %p532, %s530, 1
      %p534 = scmp.lt.s32.totalorder %s531, 3
      %s535 = scalar_select %p534, %s531, 3
      %s536 = smul.addr %s533, 4
      %s537 = sadd.s32 %s535, %s536
      %s538 = smul.addr %s537, 4
      %s539 = scalar_lea.vmem %s1, %s538
      %s540 = ssub.s32 %s29, 1
      %p541 = scmp.gt.s32.totalorder %s540, 0
      %s542 = scalar_select %p541, %s540, 0
      %s543 = smul.u32 2, %s28
      %s544 = smul.u32 4, %s542
      %s545 = smul.u32 2, %s28
      %p546 = scmp.lt.s32.totalorder %s545, 1
      %s547 = scalar_select %p546, %s545, 1
      %s548 = smul.addr %s547, 8
      %s549 = scalar_lea.vmem %s13, %s548
      %s550 = smul.u32 2, %s28
      %p551 = scmp.eq.s32.totalorder %s29, 0
      // Predicated region
      $region73: #{forward.1} parent=71 // pred_check
        %p552 = pneg %p551
      $region74: #{forward.1} parent=71 // pred_check_branch
        %554 = sbr.rel (%p552) target = $region76
      $region75: #{forward.1} parent=71 // pred_region
        %555 = vst [vmem:[#allocation2] sm:$0xff] 0.0
        %556 = vst [vmem:[#allocation2 + $0x8] sm:$0xff] 0.0
        %557 = vst [vmem:[#allocation2 + $0x10] sm:$0xff] 0.0
        %558 = vst [vmem:[#allocation2 + $0x18] sm:$0xff] 0.0
        %559 = vst [vmem:[#allocation2 + $0x20] sm:$0xff] 0.0
        %560 = vst [vmem:[#allocation2 + $0x28] sm:$0xff] 0.0
        %561 = vst [vmem:[#allocation2 + $0x30] sm:$0xff] 0.0
        %562 = vst [vmem:[#allocation2 + $0x38] sm:$0xff] 0.0
        %563 = vst [vmem:[#allocation3] sm:$0xff] 0.0
        %564 = vst [vmem:[#allocation3 + $0x8] sm:$0xff] 0.0
        %565 = vst [vmem:[#allocation3 + $0x10] sm:$0xff] 0.0
        %566 = vst [vmem:[#allocation3 + $0x18] sm:$0xff] 0.0
        %567 = vst [vmem:[#allocation3 + $0x20] sm:$0xff] 0.0
        %568 = vst [vmem:[#allocation3 + $0x28] sm:$0xff] 0.0
        %569 = vst [vmem:[#allocation3 + $0x30] sm:$0xff] 0.0
        %570 = vst [vmem:[#allocation3 + $0x38] sm:$0xff] 0.0
      $region76: #{forward.1} parent=71 // pred_fallthru
        _
      %p571 = scmp.lt.s32.totalorder %s29, 1
      // Predicated region
      $region77: #{forward.1} parent=71 // pred_check
        %p572 = pneg %p571
      $region78: #{forward.1} parent=71 // pred_check_branch
        %574 = sbr.rel (%p572) target = $region80
      $region79: #{forward.1} parent=71 // pred_region
        %v575 = vld [vmem:[#allocation2] sm:$0xff]
        %v576 = vld [vmem:[#allocation2 + $0x8] sm:$0xff]
        %v577 = vld [vmem:[#allocation2 + $0x10] sm:$0xff]
        %v578 = vld [vmem:[#allocation2 + $0x18] sm:$0xff]
        %v579 = vld [vmem:[#allocation2 + $0x20] sm:$0xff]
        %v580 = vld [vmem:[#allocation2 + $0x28] sm:$0xff]
        %v581 = vld [vmem:[#allocation2 + $0x30] sm:$0xff]
        %v582 = vld [vmem:[#allocation2 + $0x38] sm:$0xff]
        %v583 = vld [vmem:[%s522] sm:$0xff]
        %v584 = vld [vmem:[%s522 + $0x8] sm:$0xff]
        %v585 = vld [vmem:[%s522 + $0x10] sm:$0xff]
        %v586 = vld [vmem:[%s522 + $0x18] sm:$0xff]
        %v587 = vld [vmem:[%s522 + $0x20] sm:$0xff]
        %v588 = vld [vmem:[%s522 + $0x28] sm:$0xff]
        %v589 = vld [vmem:[%s522 + $0x30] sm:$0xff]
        %v590 = vld [vmem:[%s522 + $0x38] sm:$0xff]
        %v591 = vld [vmem:[%s522 + $0x40] sm:$0xff]
        %v592 = vld [vmem:[%s522 + $0x48] sm:$0xff]
        %v593 = vld [vmem:[%s522 + $0x50] sm:$0xff]
        %v594 = vld [vmem:[%s522 + $0x58] sm:$0xff]
        %v595 = vld [vmem:[%s522 + $0x60] sm:$0xff]
        %v596 = vld [vmem:[%s522 + $0x68] sm:$0xff]
        %v597 = vld [vmem:[%s522 + $0x70] sm:$0xff]
        %v598 = vld [vmem:[%s522 + $0x78] sm:$0xff]
        %s599 = smul.u32 %s29, 1024
        %s600 = smul.addr %s599, 4
        %s601 = scalar_lea.vmem %s2, %s600
        %v602 = vld [vmem:[%s601] sm:$0xff]
        %v603 = vld [vmem:[%s601 + $0x8] sm:$0xff]
        %v604 = vld [vmem:[%s601 + $0x10] sm:$0xff]
        %v605 = vld [vmem:[%s601 + $0x18] sm:$0xff]
        %v606 = vld [vmem:[%s601 + $0x20] sm:$0xff]
        %v607 = vld [vmem:[%s601 + $0x28] sm:$0xff]
        %v608 = vld [vmem:[%s601 + $0x30] sm:$0xff]
        %v609 = vld [vmem:[%s601 + $0x38] sm:$0xff]
        %v610 = vld [vmem:[%s601 + $0x40] sm:$0xff]
        %v611 = vld [vmem:[%s601 + $0x48] sm:$0xff]
        %v612 = vld [vmem:[%s601 + $0x50] sm:$0xff]
        %v613 = vld [vmem:[%s601 + $0x58] sm:$0xff]
        %v614 = vld [vmem:[%s601 + $0x60] sm:$0xff]
        %v615 = vld [vmem:[%s601 + $0x68] sm:$0xff]
        %v616 = vld [vmem:[%s601 + $0x70] sm:$0xff]
        %v617 = vld [vmem:[%s601 + $0x78] sm:$0xff]
        %v618 = vld [vmem:[%s601 + $0x80] sm:$0xff]
        %v619 = vld [vmem:[%s601 + $0x88] sm:$0xff]
        %v620 = vld [vmem:[%s601 + $0x90] sm:$0xff]
        %v621 = vld [vmem:[%s601 + $0x98] sm:$0xff]
        %v622 = vld [vmem:[%s601 + $0xa0] sm:$0xff]
        %v623 = vld [vmem:[%s601 + $0xa8] sm:$0xff]
        %v624 = vld [vmem:[%s601 + $0xb0] sm:$0xff]
        %v625 = vld [vmem:[%s601 + $0xb8] sm:$0xff]
        %v626 = vld [vmem:[%s601 + $0xc0] sm:$0xff]
        %v627 = vld [vmem:[%s601 + $0xc8] sm:$0xff]
        %v628 = vld [vmem:[%s601 + $0xd0] sm:$0xff]
        %v629 = vld [vmem:[%s601 + $0xd8] sm:$0xff]
        %v630 = vld [vmem:[%s601 + $0xe0] sm:$0xff]
        %v631 = vld [vmem:[%s601 + $0xe8] sm:$0xff]
        %v632 = vld [vmem:[%s601 + $0xf0] sm:$0xff]
        %v633 = vld [vmem:[%s601 + $0xf8] sm:$0xff]
        %v634 = vld [vmem:[%s601 + $0x100] sm:$0xff]
        %v635 = vld [vmem:[%s601 + $0x108] sm:$0xff]
        %v636 = vld [vmem:[%s601 + $0x110] sm:$0xff]
        %v637 = vld [vmem:[%s601 + $0x118] sm:$0xff]
        %v638 = vld [vmem:[%s601 + $0x120] sm:$0xff]
        %v639 = vld [vmem:[%s601 + $0x128] sm:$0xff]
        %v640 = vld [vmem:[%s601 + $0x130] sm:$0xff]
        %v641 = vld [vmem:[%s601 + $0x138] sm:$0xff]
        %v642 = vld [vmem:[%s601 + $0x140] sm:$0xff]
        %v643 = vld [vmem:[%s601 + $0x148] sm:$0xff]
        %v644 = vld [vmem:[%s601 + $0x150] sm:$0xff]
        %v645 = vld [vmem:[%s601 + $0x158] sm:$0xff]
        %v646 = vld [vmem:[%s601 + $0x160] sm:$0xff]
        %v647 = vld [vmem:[%s601 + $0x168] sm:$0xff]
        %v648 = vld [vmem:[%s601 + $0x170] sm:$0xff]
        %v649 = vld [vmem:[%s601 + $0x178] sm:$0xff]
        %v650 = vld [vmem:[%s601 + $0x180] sm:$0xff]
        %v651 = vld [vmem:[%s601 + $0x188] sm:$0xff]
        %v652 = vld [vmem:[%s601 + $0x190] sm:$0xff]
        %v653 = vld [vmem:[%s601 + $0x198] sm:$0xff]
        %v654 = vld [vmem:[%s601 + $0x1a0] sm:$0xff]
        %v655 = vld [vmem:[%s601 + $0x1a8] sm:$0xff]
        %v656 = vld [vmem:[%s601 + $0x1b0] sm:$0xff]
        %v657 = vld [vmem:[%s601 + $0x1b8] sm:$0xff]
        %v658 = vld [vmem:[%s601 + $0x1c0] sm:$0xff]
        %v659 = vld [vmem:[%s601 + $0x1c8] sm:$0xff]
        %v660 = vld [vmem:[%s601 + $0x1d0] sm:$0xff]
        %v661 = vld [vmem:[%s601 + $0x1d8] sm:$0xff]
        %v662 = vld [vmem:[%s601 + $0x1e0] sm:$0xff]
        %v663 = vld [vmem:[%s601 + $0x1e8] sm:$0xff]
        %v664 = vld [vmem:[%s601 + $0x1f0] sm:$0xff]
        %v665 = vld [vmem:[%s601 + $0x1f8] sm:$0xff]
        %v666 = vld [vmem:[%s601 + $0x200] sm:$0xff]
        %v667 = vld [vmem:[%s601 + $0x208] sm:$0xff]
        %v668 = vld [vmem:[%s601 + $0x210] sm:$0xff]
        %v669 = vld [vmem:[%s601 + $0x218] sm:$0xff]
        %v670 = vld [vmem:[%s601 + $0x220] sm:$0xff]
        %v671 = vld [vmem:[%s601 + $0x228] sm:$0xff]
        %v672 = vld [vmem:[%s601 + $0x230] sm:$0xff]
        %v673 = vld [vmem:[%s601 + $0x238] sm:$0xff]
        %v674 = vld [vmem:[%s601 + $0x240] sm:$0xff]
        %v675 = vld [vmem:[%s601 + $0x248] sm:$0xff]
        %v676 = vld [vmem:[%s601 + $0x250] sm:$0xff]
        %v677 = vld [vmem:[%s601 + $0x258] sm:$0xff]
        %v678 = vld [vmem:[%s601 + $0x260] sm:$0xff]
        %v679 = vld [vmem:[%s601 + $0x268] sm:$0xff]
        %v680 = vld [vmem:[%s601 + $0x270] sm:$0xff]
        %v681 = vld [vmem:[%s601 + $0x278] sm:$0xff]
        %v682 = vld [vmem:[%s601 + $0x280] sm:$0xff]
        %v683 = vld [vmem:[%s601 + $0x288] sm:$0xff]
        %v684 = vld [vmem:[%s601 + $0x290] sm:$0xff]
        %v685 = vld [vmem:[%s601 + $0x298] sm:$0xff]
        %v686 = vld [vmem:[%s601 + $0x2a0] sm:$0xff]
        %v687 = vld [vmem:[%s601 + $0x2a8] sm:$0xff]
        %v688 = vld [vmem:[%s601 + $0x2b0] sm:$0xff]
        %v689 = vld [vmem:[%s601 + $0x2b8] sm:$0xff]
        %v690 = vld [vmem:[%s601 + $0x2c0] sm:$0xff]
        %v691 = vld [vmem:[%s601 + $0x2c8] sm:$0xff]
        %v692 = vld [vmem:[%s601 + $0x2d0] sm:$0xff]
        %v693 = vld [vmem:[%s601 + $0x2d8] sm:$0xff]
        %v694 = vld [vmem:[%s601 + $0x2e0] sm:$0xff]
        %v695 = vld [vmem:[%s601 + $0x2e8] sm:$0xff]
        %v696 = vld [vmem:[%s601 + $0x2f0] sm:$0xff]
        %v697 = vld [vmem:[%s601 + $0x2f8] sm:$0xff]
        %v698 = vld [vmem:[%s601 + $0x300] sm:$0xff]
        %v699 = vld [vmem:[%s601 + $0x308] sm:$0xff]
        %v700 = vld [vmem:[%s601 + $0x310] sm:$0xff]
        %v701 = vld [vmem:[%s601 + $0x318] sm:$0xff]
        %v702 = vld [vmem:[%s601 + $0x320] sm:$0xff]
        %v703 = vld [vmem:[%s601 + $0x328] sm:$0xff]
        %v704 = vld [vmem:[%s601 + $0x330] sm:$0xff]
        %v705 = vld [vmem:[%s601 + $0x338] sm:$0xff]
        %v706 = vld [vmem:[%s601 + $0x340] sm:$0xff]
        %v707 = vld [vmem:[%s601 + $0x348] sm:$0xff]
        %v708 = vld [vmem:[%s601 + $0x350] sm:$0xff]
        %v709 = vld [vmem:[%s601 + $0x358] sm:$0xff]
        %v710 = vld [vmem:[%s601 + $0x360] sm:$0xff]
        %v711 = vld [vmem:[%s601 + $0x368] sm:$0xff]
        %v712 = vld [vmem:[%s601 + $0x370] sm:$0xff]
        %v713 = vld [vmem:[%s601 + $0x378] sm:$0xff]
        %v714 = vld [vmem:[%s601 + $0x380] sm:$0xff]
        %v715 = vld [vmem:[%s601 + $0x388] sm:$0xff]
        %v716 = vld [vmem:[%s601 + $0x390] sm:$0xff]
        %v717 = vld [vmem:[%s601 + $0x398] sm:$0xff]
        %v718 = vld [vmem:[%s601 + $0x3a0] sm:$0xff]
        %v719 = vld [vmem:[%s601 + $0x3a8] sm:$0xff]
        %v720 = vld [vmem:[%s601 + $0x3b0] sm:$0xff]
        %v721 = vld [vmem:[%s601 + $0x3b8] sm:$0xff]
        %v722 = vld [vmem:[%s601 + $0x3c0] sm:$0xff]
        %v723 = vld [vmem:[%s601 + $0x3c8] sm:$0xff]
        %v724 = vld [vmem:[%s601 + $0x3d0] sm:$0xff]
        %v725 = vld [vmem:[%s601 + $0x3d8] sm:$0xff]
        %v726 = vld [vmem:[%s601 + $0x3e0] sm:$0xff]
        %v727 = vld [vmem:[%s601 + $0x3e8] sm:$0xff]
        %v728 = vld [vmem:[%s601 + $0x3f0] sm:$0xff]
        %v729 = vld [vmem:[%s601 + $0x3f8] sm:$0xff]
        %v730 = vld [vmem:[%s601 + $0x400] sm:$0xff]
        %v731 = vld [vmem:[%s601 + $0x408] sm:$0xff]
        %v732 = vld [vmem:[%s601 + $0x410] sm:$0xff]
        %v733 = vld [vmem:[%s601 + $0x418] sm:$0xff]
        %v734 = vld [vmem:[%s601 + $0x420] sm:$0xff]
        %v735 = vld [vmem:[%s601 + $0x428] sm:$0xff]
        %v736 = vld [vmem:[%s601 + $0x430] sm:$0xff]
        %v737 = vld [vmem:[%s601 + $0x438] sm:$0xff]
        %v738 = vld [vmem:[%s601 + $0x440] sm:$0xff]
        %v739 = vld [vmem:[%s601 + $0x448] sm:$0xff]
        %v740 = vld [vmem:[%s601 + $0x450] sm:$0xff]
        %v741 = vld [vmem:[%s601 + $0x458] sm:$0xff]
        %v742 = vld [vmem:[%s601 + $0x460] sm:$0xff]
        %v743 = vld [vmem:[%s601 + $0x468] sm:$0xff]
        %v744 = vld [vmem:[%s601 + $0x470] sm:$0xff]
        %v745 = vld [vmem:[%s601 + $0x478] sm:$0xff]
        %v746 = vld [vmem:[%s601 + $0x480] sm:$0xff]
        %v747 = vld [vmem:[%s601 + $0x488] sm:$0xff]
        %v748 = vld [vmem:[%s601 + $0x490] sm:$0xff]
        %v749 = vld [vmem:[%s601 + $0x498] sm:$0xff]
        %v750 = vld [vmem:[%s601 + $0x4a0] sm:$0xff]
        %v751 = vld [vmem:[%s601 + $0x4a8] sm:$0xff]
        %v752 = vld [vmem:[%s601 + $0x4b0] sm:$0xff]
        %v753 = vld [vmem:[%s601 + $0x4b8] sm:$0xff]
        %v754 = vld [vmem:[%s601 + $0x4c0] sm:$0xff]
        %v755 = vld [vmem:[%s601 + $0x4c8] sm:$0xff]
        %v756 = vld [vmem:[%s601 + $0x4d0] sm:$0xff]
        %v757 = vld [vmem:[%s601 + $0x4d8] sm:$0xff]
        %v758 = vld [vmem:[%s601 + $0x4e0] sm:$0xff]
        %v759 = vld [vmem:[%s601 + $0x4e8] sm:$0xff]
        %v760 = vld [vmem:[%s601 + $0x4f0] sm:$0xff]
        %v761 = vld [vmem:[%s601 + $0x4f8] sm:$0xff]
        %v762 = vld [vmem:[%s601 + $0x500] sm:$0xff]
        %v763 = vld [vmem:[%s601 + $0x508] sm:$0xff]
        %v764 = vld [vmem:[%s601 + $0x510] sm:$0xff]
        %v765 = vld [vmem:[%s601 + $0x518] sm:$0xff]
        %v766 = vld [vmem:[%s601 + $0x520] sm:$0xff]
        %v767 = vld [vmem:[%s601 + $0x528] sm:$0xff]
        %v768 = vld [vmem:[%s601 + $0x530] sm:$0xff]
        %v769 = vld [vmem:[%s601 + $0x538] sm:$0xff]
        %v770 = vld [vmem:[%s601 + $0x540] sm:$0xff]
        %v771 = vld [vmem:[%s601 + $0x548] sm:$0xff]
        %v772 = vld [vmem:[%s601 + $0x550] sm:$0xff]
        %v773 = vld [vmem:[%s601 + $0x558] sm:$0xff]
        %v774 = vld [vmem:[%s601 + $0x560] sm:$0xff]
        %v775 = vld [vmem:[%s601 + $0x568] sm:$0xff]
        %v776 = vld [vmem:[%s601 + $0x570] sm:$0xff]
        %v777 = vld [vmem:[%s601 + $0x578] sm:$0xff]
        %v778 = vld [vmem:[%s601 + $0x580] sm:$0xff]
        %v779 = vld [vmem:[%s601 + $0x588] sm:$0xff]
        %v780 = vld [vmem:[%s601 + $0x590] sm:$0xff]
        %v781 = vld [vmem:[%s601 + $0x598] sm:$0xff]
        %v782 = vld [vmem:[%s601 + $0x5a0] sm:$0xff]
        %v783 = vld [vmem:[%s601 + $0x5a8] sm:$0xff]
        %v784 = vld [vmem:[%s601 + $0x5b0] sm:$0xff]
        %v785 = vld [vmem:[%s601 + $0x5b8] sm:$0xff]
        %v786 = vld [vmem:[%s601 + $0x5c0] sm:$0xff]
        %v787 = vld [vmem:[%s601 + $0x5c8] sm:$0xff]
        %v788 = vld [vmem:[%s601 + $0x5d0] sm:$0xff]
        %v789 = vld [vmem:[%s601 + $0x5d8] sm:$0xff]
        %v790 = vld [vmem:[%s601 + $0x5e0] sm:$0xff]
        %v791 = vld [vmem:[%s601 + $0x5e8] sm:$0xff]
        %v792 = vld [vmem:[%s601 + $0x5f0] sm:$0xff]
        %v793 = vld [vmem:[%s601 + $0x5f8] sm:$0xff]
        %v794 = vld [vmem:[%s601 + $0x600] sm:$0xff]
        %v795 = vld [vmem:[%s601 + $0x608] sm:$0xff]
        %v796 = vld [vmem:[%s601 + $0x610] sm:$0xff]
        %v797 = vld [vmem:[%s601 + $0x618] sm:$0xff]
        %v798 = vld [vmem:[%s601 + $0x620] sm:$0xff]
        %v799 = vld [vmem:[%s601 + $0x628] sm:$0xff]
        %v800 = vld [vmem:[%s601 + $0x630] sm:$0xff]
        %v801 = vld [vmem:[%s601 + $0x638] sm:$0xff]
        %v802 = vld [vmem:[%s601 + $0x640] sm:$0xff]
        %v803 = vld [vmem:[%s601 + $0x648] sm:$0xff]
        %v804 = vld [vmem:[%s601 + $0x650] sm:$0xff]
        %v805 = vld [vmem:[%s601 + $0x658] sm:$0xff]
        %v806 = vld [vmem:[%s601 + $0x660] sm:$0xff]
        %v807 = vld [vmem:[%s601 + $0x668] sm:$0xff]
        %v808 = vld [vmem:[%s601 + $0x670] sm:$0xff]
        %v809 = vld [vmem:[%s601 + $0x678] sm:$0xff]
        %v810 = vld [vmem:[%s601 + $0x680] sm:$0xff]
        %v811 = vld [vmem:[%s601 + $0x688] sm:$0xff]
        %v812 = vld [vmem:[%s601 + $0x690] sm:$0xff]
        %v813 = vld [vmem:[%s601 + $0x698] sm:$0xff]
        %v814 = vld [vmem:[%s601 + $0x6a0] sm:$0xff]
        %v815 = vld [vmem:[%s601 + $0x6a8] sm:$0xff]
        %v816 = vld [vmem:[%s601 + $0x6b0] sm:$0xff]
        %v817 = vld [vmem:[%s601 + $0x6b8] sm:$0xff]
        %v818 = vld [vmem:[%s601 + $0x6c0] sm:$0xff]
        %v819 = vld [vmem:[%s601 + $0x6c8] sm:$0xff]
        %v820 = vld [vmem:[%s601 + $0x6d0] sm:$0xff]
        %v821 = vld [vmem:[%s601 + $0x6d8] sm:$0xff]
        %v822 = vld [vmem:[%s601 + $0x6e0] sm:$0xff]
        %v823 = vld [vmem:[%s601 + $0x6e8] sm:$0xff]
        %v824 = vld [vmem:[%s601 + $0x6f0] sm:$0xff]
        %v825 = vld [vmem:[%s601 + $0x6f8] sm:$0xff]
        %v826 = vld [vmem:[%s601 + $0x700] sm:$0xff]
        %v827 = vld [vmem:[%s601 + $0x708] sm:$0xff]
        %v828 = vld [vmem:[%s601 + $0x710] sm:$0xff]
        %v829 = vld [vmem:[%s601 + $0x718] sm:$0xff]
        %v830 = vld [vmem:[%s601 + $0x720] sm:$0xff]
        %v831 = vld [vmem:[%s601 + $0x728] sm:$0xff]
        %v832 = vld [vmem:[%s601 + $0x730] sm:$0xff]
        %v833 = vld [vmem:[%s601 + $0x738] sm:$0xff]
        %v834 = vld [vmem:[%s601 + $0x740] sm:$0xff]
        %v835 = vld [vmem:[%s601 + $0x748] sm:$0xff]
        %v836 = vld [vmem:[%s601 + $0x750] sm:$0xff]
        %v837 = vld [vmem:[%s601 + $0x758] sm:$0xff]
        %v838 = vld [vmem:[%s601 + $0x760] sm:$0xff]
        %v839 = vld [vmem:[%s601 + $0x768] sm:$0xff]
        %v840 = vld [vmem:[%s601 + $0x770] sm:$0xff]
        %v841 = vld [vmem:[%s601 + $0x778] sm:$0xff]
        %v842 = vld [vmem:[%s601 + $0x780] sm:$0xff]
        %v843 = vld [vmem:[%s601 + $0x788] sm:$0xff]
        %v844 = vld [vmem:[%s601 + $0x790] sm:$0xff]
        %v845 = vld [vmem:[%s601 + $0x798] sm:$0xff]
        %v846 = vld [vmem:[%s601 + $0x7a0] sm:$0xff]
        %v847 = vld [vmem:[%s601 + $0x7a8] sm:$0xff]
        %v848 = vld [vmem:[%s601 + $0x7b0] sm:$0xff]
        %v849 = vld [vmem:[%s601 + $0x7b8] sm:$0xff]
        %v850 = vld [vmem:[%s601 + $0x7c0] sm:$0xff]
        %v851 = vld [vmem:[%s601 + $0x7c8] sm:$0xff]
        %v852 = vld [vmem:[%s601 + $0x7d0] sm:$0xff]
        %v853 = vld [vmem:[%s601 + $0x7d8] sm:$0xff]
        %v854 = vld [vmem:[%s601 + $0x7e0] sm:$0xff]
        %v855 = vld [vmem:[%s601 + $0x7e8] sm:$0xff]
        %v856 = vld [vmem:[%s601 + $0x7f0] sm:$0xff]
        %v857 = vld [vmem:[%s601 + $0x7f8] sm:$0xff]
        %v858 = vld [vmem:[%s601 + $0x800] sm:$0xff]
        %v859 = vld [vmem:[%s601 + $0x808] sm:$0xff]
        %v860 = vld [vmem:[%s601 + $0x810] sm:$0xff]
        %v861 = vld [vmem:[%s601 + $0x818] sm:$0xff]
        %v862 = vld [vmem:[%s601 + $0x820] sm:$0xff]
        %v863 = vld [vmem:[%s601 + $0x828] sm:$0xff]
        %v864 = vld [vmem:[%s601 + $0x830] sm:$0xff]
        %v865 = vld [vmem:[%s601 + $0x838] sm:$0xff]
        %v866 = vld [vmem:[%s601 + $0x840] sm:$0xff]
        %v867 = vld [vmem:[%s601 + $0x848] sm:$0xff]
        %v868 = vld [vmem:[%s601 + $0x850] sm:$0xff]
        %v869 = vld [vmem:[%s601 + $0x858] sm:$0xff]
        %v870 = vld [vmem:[%s601 + $0x860] sm:$0xff]
        %v871 = vld [vmem:[%s601 + $0x868] sm:$0xff]
        %v872 = vld [vmem:[%s601 + $0x870] sm:$0xff]
        %v873 = vld [vmem:[%s601 + $0x878] sm:$0xff]
        %v874 = vld [vmem:[%s601 + $0x880] sm:$0xff]
        %v875 = vld [vmem:[%s601 + $0x888] sm:$0xff]
        %v876 = vld [vmem:[%s601 + $0x890] sm:$0xff]
        %v877 = vld [vmem:[%s601 + $0x898] sm:$0xff]
        %v878 = vld [vmem:[%s601 + $0x8a0] sm:$0xff]
        %v879 = vld [vmem:[%s601 + $0x8a8] sm:$0xff]
        %v880 = vld [vmem:[%s601 + $0x8b0] sm:$0xff]
        %v881 = vld [vmem:[%s601 + $0x8b8] sm:$0xff]
        %v882 = vld [vmem:[%s601 + $0x8c0] sm:$0xff]
        %v883 = vld [vmem:[%s601 + $0x8c8] sm:$0xff]
        %v884 = vld [vmem:[%s601 + $0x8d0] sm:$0xff]
        %v885 = vld [vmem:[%s601 + $0x8d8] sm:$0xff]
        %v886 = vld [vmem:[%s601 + $0x8e0] sm:$0xff]
        %v887 = vld [vmem:[%s601 + $0x8e8] sm:$0xff]
        %v888 = vld [vmem:[%s601 + $0x8f0] sm:$0xff]
        %v889 = vld [vmem:[%s601 + $0x8f8] sm:$0xff]
        %v890 = vld [vmem:[%s601 + $0x900] sm:$0xff]
        %v891 = vld [vmem:[%s601 + $0x908] sm:$0xff]
        %v892 = vld [vmem:[%s601 + $0x910] sm:$0xff]
        %v893 = vld [vmem:[%s601 + $0x918] sm:$0xff]
        %v894 = vld [vmem:[%s601 + $0x920] sm:$0xff]
        %v895 = vld [vmem:[%s601 + $0x928] sm:$0xff]
        %v896 = vld [vmem:[%s601 + $0x930] sm:$0xff]
        %v897 = vld [vmem:[%s601 + $0x938] sm:$0xff]
        %v898 = vld [vmem:[%s601 + $0x940] sm:$0xff]
        %v899 = vld [vmem:[%s601 + $0x948] sm:$0xff]
        %v900 = vld [vmem:[%s601 + $0x950] sm:$0xff]
        %v901 = vld [vmem:[%s601 + $0x958] sm:$0xff]
        %v902 = vld [vmem:[%s601 + $0x960] sm:$0xff]
        %v903 = vld [vmem:[%s601 + $0x968] sm:$0xff]
        %v904 = vld [vmem:[%s601 + $0x970] sm:$0xff]
        %v905 = vld [vmem:[%s601 + $0x978] sm:$0xff]
        %v906 = vld [vmem:[%s601 + $0x980] sm:$0xff]
        %v907 = vld [vmem:[%s601 + $0x988] sm:$0xff]
        %v908 = vld [vmem:[%s601 + $0x990] sm:$0xff]
        %v909 = vld [vmem:[%s601 + $0x998] sm:$0xff]
        %v910 = vld [vmem:[%s601 + $0x9a0] sm:$0xff]
        %v911 = vld [vmem:[%s601 + $0x9a8] sm:$0xff]
        %v912 = vld [vmem:[%s601 + $0x9b0] sm:$0xff]
        %v913 = vld [vmem:[%s601 + $0x9b8] sm:$0xff]
        %v914 = vld [vmem:[%s601 + $0x9c0] sm:$0xff]
        %v915 = vld [vmem:[%s601 + $0x9c8] sm:$0xff]
        %v916 = vld [vmem:[%s601 + $0x9d0] sm:$0xff]
        %v917 = vld [vmem:[%s601 + $0x9d8] sm:$0xff]
        %v918 = vld [vmem:[%s601 + $0x9e0] sm:$0xff]
        %v919 = vld [vmem:[%s601 + $0x9e8] sm:$0xff]
        %v920 = vld [vmem:[%s601 + $0x9f0] sm:$0xff]
        %v921 = vld [vmem:[%s601 + $0x9f8] sm:$0xff]
        %v922 = vld [vmem:[%s601 + $0xa00] sm:$0xff]
        %v923 = vld [vmem:[%s601 + $0xa08] sm:$0xff]
        %v924 = vld [vmem:[%s601 + $0xa10] sm:$0xff]
        %v925 = vld [vmem:[%s601 + $0xa18] sm:$0xff]
        %v926 = vld [vmem:[%s601 + $0xa20] sm:$0xff]
        %v927 = vld [vmem:[%s601 + $0xa28] sm:$0xff]
        %v928 = vld [vmem:[%s601 + $0xa30] sm:$0xff]
        %v929 = vld [vmem:[%s601 + $0xa38] sm:$0xff]
        %v930 = vld [vmem:[%s601 + $0xa40] sm:$0xff]
        %v931 = vld [vmem:[%s601 + $0xa48] sm:$0xff]
        %v932 = vld [vmem:[%s601 + $0xa50] sm:$0xff]
        %v933 = vld [vmem:[%s601 + $0xa58] sm:$0xff]
        %v934 = vld [vmem:[%s601 + $0xa60] sm:$0xff]
        %v935 = vld [vmem:[%s601 + $0xa68] sm:$0xff]
        %v936 = vld [vmem:[%s601 + $0xa70] sm:$0xff]
        %v937 = vld [vmem:[%s601 + $0xa78] sm:$0xff]
        %v938 = vld [vmem:[%s601 + $0xa80] sm:$0xff]
        %v939 = vld [vmem:[%s601 + $0xa88] sm:$0xff]
        %v940 = vld [vmem:[%s601 + $0xa90] sm:$0xff]
        %v941 = vld [vmem:[%s601 + $0xa98] sm:$0xff]
        %v942 = vld [vmem:[%s601 + $0xaa0] sm:$0xff]
        %v943 = vld [vmem:[%s601 + $0xaa8] sm:$0xff]
        %v944 = vld [vmem:[%s601 + $0xab0] sm:$0xff]
        %v945 = vld [vmem:[%s601 + $0xab8] sm:$0xff]
        %v946 = vld [vmem:[%s601 + $0xac0] sm:$0xff]
        %v947 = vld [vmem:[%s601 + $0xac8] sm:$0xff]
        %v948 = vld [vmem:[%s601 + $0xad0] sm:$0xff]
        %v949 = vld [vmem:[%s601 + $0xad8] sm:$0xff]
        %v950 = vld [vmem:[%s601 + $0xae0] sm:$0xff]
        %v951 = vld [vmem:[%s601 + $0xae8] sm:$0xff]
        %v952 = vld [vmem:[%s601 + $0xaf0] sm:$0xff]
        %v953 = vld [vmem:[%s601 + $0xaf8] sm:$0xff]
        %v954 = vld [vmem:[%s601 + $0xb00] sm:$0xff]
        %v955 = vld [vmem:[%s601 + $0xb08] sm:$0xff]
        %v956 = vld [vmem:[%s601 + $0xb10] sm:$0xff]
        %v957 = vld [vmem:[%s601 + $0xb18] sm:$0xff]
        %v958 = vld [vmem:[%s601 + $0xb20] sm:$0xff]
        %v959 = vld [vmem:[%s601 + $0xb28] sm:$0xff]
        %v960 = vld [vmem:[%s601 + $0xb30] sm:$0xff]
        %v961 = vld [vmem:[%s601 + $0xb38] sm:$0xff]
        %v962 = vld [vmem:[%s601 + $0xb40] sm:$0xff]
        %v963 = vld [vmem:[%s601 + $0xb48] sm:$0xff]
        %v964 = vld [vmem:[%s601 + $0xb50] sm:$0xff]
        %v965 = vld [vmem:[%s601 + $0xb58] sm:$0xff]
        %v966 = vld [vmem:[%s601 + $0xb60] sm:$0xff]
        %v967 = vld [vmem:[%s601 + $0xb68] sm:$0xff]
        %v968 = vld [vmem:[%s601 + $0xb70] sm:$0xff]
        %v969 = vld [vmem:[%s601 + $0xb78] sm:$0xff]
        %v970 = vld [vmem:[%s601 + $0xb80] sm:$0xff]
        %v971 = vld [vmem:[%s601 + $0xb88] sm:$0xff]
        %v972 = vld [vmem:[%s601 + $0xb90] sm:$0xff]
        %v973 = vld [vmem:[%s601 + $0xb98] sm:$0xff]
        %v974 = vld [vmem:[%s601 + $0xba0] sm:$0xff]
        %v975 = vld [vmem:[%s601 + $0xba8] sm:$0xff]
        %v976 = vld [vmem:[%s601 + $0xbb0] sm:$0xff]
        %v977 = vld [vmem:[%s601 + $0xbb8] sm:$0xff]
        %v978 = vld [vmem:[%s601 + $0xbc0] sm:$0xff]
        %v979 = vld [vmem:[%s601 + $0xbc8] sm:$0xff]
        %v980 = vld [vmem:[%s601 + $0xbd0] sm:$0xff]
        %v981 = vld [vmem:[%s601 + $0xbd8] sm:$0xff]
        %v982 = vld [vmem:[%s601 + $0xbe0] sm:$0xff]
        %v983 = vld [vmem:[%s601 + $0xbe8] sm:$0xff]
        %v984 = vld [vmem:[%s601 + $0xbf0] sm:$0xff]
        %v985 = vld [vmem:[%s601 + $0xbf8] sm:$0xff]
        %v986 = vld [vmem:[%s601 + $0xc00] sm:$0xff]
        %v987 = vld [vmem:[%s601 + $0xc08] sm:$0xff]
        %v988 = vld [vmem:[%s601 + $0xc10] sm:$0xff]
        %v989 = vld [vmem:[%s601 + $0xc18] sm:$0xff]
        %v990 = vld [vmem:[%s601 + $0xc20] sm:$0xff]
        %v991 = vld [vmem:[%s601 + $0xc28] sm:$0xff]
        %v992 = vld [vmem:[%s601 + $0xc30] sm:$0xff]
        %v993 = vld [vmem:[%s601 + $0xc38] sm:$0xff]
        %v994 = vld [vmem:[%s601 + $0xc40] sm:$0xff]
        %v995 = vld [vmem:[%s601 + $0xc48] sm:$0xff]
        %v996 = vld [vmem:[%s601 + $0xc50] sm:$0xff]
        %v997 = vld [vmem:[%s601 + $0xc58] sm:$0xff]
        %v998 = vld [vmem:[%s601 + $0xc60] sm:$0xff]
        %v999 = vld [vmem:[%s601 + $0xc68] sm:$0xff]
        %v1000 = vld [vmem:[%s601 + $0xc70] sm:$0xff]
        %v1001 = vld [vmem:[%s601 + $0xc78] sm:$0xff]
        %v1002 = vld [vmem:[%s601 + $0xc80] sm:$0xff]
        %v1003 = vld [vmem:[%s601 + $0xc88] sm:$0xff]
        %v1004 = vld [vmem:[%s601 + $0xc90] sm:$0xff]
        %v1005 = vld [vmem:[%s601 + $0xc98] sm:$0xff]
        %v1006 = vld [vmem:[%s601 + $0xca0] sm:$0xff]
        %v1007 = vld [vmem:[%s601 + $0xca8] sm:$0xff]
        %v1008 = vld [vmem:[%s601 + $0xcb0] sm:$0xff]
        %v1009 = vld [vmem:[%s601 + $0xcb8] sm:$0xff]
        %v1010 = vld [vmem:[%s601 + $0xcc0] sm:$0xff]
        %v1011 = vld [vmem:[%s601 + $0xcc8] sm:$0xff]
        %v1012 = vld [vmem:[%s601 + $0xcd0] sm:$0xff]
        %v1013 = vld [vmem:[%s601 + $0xcd8] sm:$0xff]
        %v1014 = vld [vmem:[%s601 + $0xce0] sm:$0xff]
        %v1015 = vld [vmem:[%s601 + $0xce8] sm:$0xff]
        %v1016 = vld [vmem:[%s601 + $0xcf0] sm:$0xff]
        %v1017 = vld [vmem:[%s601 + $0xcf8] sm:$0xff]
        %v1018 = vld [vmem:[%s601 + $0xd00] sm:$0xff]
        %v1019 = vld [vmem:[%s601 + $0xd08] sm:$0xff]
        %v1020 = vld [vmem:[%s601 + $0xd10] sm:$0xff]
        %v1021 = vld [vmem:[%s601 + $0xd18] sm:$0xff]
        %v1022 = vld [vmem:[%s601 + $0xd20] sm:$0xff]
        %v1023 = vld [vmem:[%s601 + $0xd28] sm:$0xff]
        %v1024 = vld [vmem:[%s601 + $0xd30] sm:$0xff]
        %v1025 = vld [vmem:[%s601 + $0xd38] sm:$0xff]
        %v1026 = vld [vmem:[%s601 + $0xd40] sm:$0xff]
        %v1027 = vld [vmem:[%s601 + $0xd48] sm:$0xff]
        %v1028 = vld [vmem:[%s601 + $0xd50] sm:$0xff]
        %v1029 = vld [vmem:[%s601 + $0xd58] sm:$0xff]
        %v1030 = vld [vmem:[%s601 + $0xd60] sm:$0xff]
        %v1031 = vld [vmem:[%s601 + $0xd68] sm:$0xff]
        %v1032 = vld [vmem:[%s601 + $0xd70] sm:$0xff]
        %v1033 = vld [vmem:[%s601 + $0xd78] sm:$0xff]
        %v1034 = vld [vmem:[%s601 + $0xd80] sm:$0xff]
        %v1035 = vld [vmem:[%s601 + $0xd88] sm:$0xff]
        %v1036 = vld [vmem:[%s601 + $0xd90] sm:$0xff]
        %v1037 = vld [vmem:[%s601 + $0xd98] sm:$0xff]
        %v1038 = vld [vmem:[%s601 + $0xda0] sm:$0xff]
        %v1039 = vld [vmem:[%s601 + $0xda8] sm:$0xff]
        %v1040 = vld [vmem:[%s601 + $0xdb0] sm:$0xff]
        %v1041 = vld [vmem:[%s601 + $0xdb8] sm:$0xff]
        %v1042 = vld [vmem:[%s601 + $0xdc0] sm:$0xff]
        %v1043 = vld [vmem:[%s601 + $0xdc8] sm:$0xff]
        %v1044 = vld [vmem:[%s601 + $0xdd0] sm:$0xff]
        %v1045 = vld [vmem:[%s601 + $0xdd8] sm:$0xff]
        %v1046 = vld [vmem:[%s601 + $0xde0] sm:$0xff]
        %v1047 = vld [vmem:[%s601 + $0xde8] sm:$0xff]
        %v1048 = vld [vmem:[%s601 + $0xdf0] sm:$0xff]
        %v1049 = vld [vmem:[%s601 + $0xdf8] sm:$0xff]
        %v1050 = vld [vmem:[%s601 + $0xe00] sm:$0xff]
        %v1051 = vld [vmem:[%s601 + $0xe08] sm:$0xff]
        %v1052 = vld [vmem:[%s601 + $0xe10] sm:$0xff]
        %v1053 = vld [vmem:[%s601 + $0xe18] sm:$0xff]
        %v1054 = vld [vmem:[%s601 + $0xe20] sm:$0xff]
        %v1055 = vld [vmem:[%s601 + $0xe28] sm:$0xff]
        %v1056 = vld [vmem:[%s601 + $0xe30] sm:$0xff]
        %v1057 = vld [vmem:[%s601 + $0xe38] sm:$0xff]
        %v1058 = vld [vmem:[%s601 + $0xe40] sm:$0xff]
        %v1059 = vld [vmem:[%s601 + $0xe48] sm:$0xff]
        %v1060 = vld [vmem:[%s601 + $0xe50] sm:$0xff]
        %v1061 = vld [vmem:[%s601 + $0xe58] sm:$0xff]
        %v1062 = vld [vmem:[%s601 + $0xe60] sm:$0xff]
        %v1063 = vld [vmem:[%s601 + $0xe68] sm:$0xff]
        %v1064 = vld [vmem:[%s601 + $0xe70] sm:$0xff]
        %v1065 = vld [vmem:[%s601 + $0xe78] sm:$0xff]
        %v1066 = vld [vmem:[%s601 + $0xe80] sm:$0xff]
        %v1067 = vld [vmem:[%s601 + $0xe88] sm:$0xff]
        %v1068 = vld [vmem:[%s601 + $0xe90] sm:$0xff]
        %v1069 = vld [vmem:[%s601 + $0xe98] sm:$0xff]
        %v1070 = vld [vmem:[%s601 + $0xea0] sm:$0xff]
        %v1071 = vld [vmem:[%s601 + $0xea8] sm:$0xff]
        %v1072 = vld [vmem:[%s601 + $0xeb0] sm:$0xff]
        %v1073 = vld [vmem:[%s601 + $0xeb8] sm:$0xff]
        %v1074 = vld [vmem:[%s601 + $0xec0] sm:$0xff]
        %v1075 = vld [vmem:[%s601 + $0xec8] sm:$0xff]
        %v1076 = vld [vmem:[%s601 + $0xed0] sm:$0xff]
        %v1077 = vld [vmem:[%s601 + $0xed8] sm:$0xff]
        %v1078 = vld [vmem:[%s601 + $0xee0] sm:$0xff]
        %v1079 = vld [vmem:[%s601 + $0xee8] sm:$0xff]
        %v1080 = vld [vmem:[%s601 + $0xef0] sm:$0xff]
        %v1081 = vld [vmem:[%s601 + $0xef8] sm:$0xff]
        %v1082 = vld [vmem:[%s601 + $0xf00] sm:$0xff]
        %v1083 = vld [vmem:[%s601 + $0xf08] sm:$0xff]
        %v1084 = vld [vmem:[%s601 + $0xf10] sm:$0xff]
        %v1085 = vld [vmem:[%s601 + $0xf18] sm:$0xff]
        %v1086 = vld [vmem:[%s601 + $0xf20] sm:$0xff]
        %v1087 = vld [vmem:[%s601 + $0xf28] sm:$0xff]
        %v1088 = vld [vmem:[%s601 + $0xf30] sm:$0xff]
        %v1089 = vld [vmem:[%s601 + $0xf38] sm:$0xff]
        %v1090 = vld [vmem:[%s601 + $0xf40] sm:$0xff]
        %v1091 = vld [vmem:[%s601 + $0xf48] sm:$0xff]
        %v1092 = vld [vmem:[%s601 + $0xf50] sm:$0xff]
        %v1093 = vld [vmem:[%s601 + $0xf58] sm:$0xff]
        %v1094 = vld [vmem:[%s601 + $0xf60] sm:$0xff]
        %v1095 = vld [vmem:[%s601 + $0xf68] sm:$0xff]
        %v1096 = vld [vmem:[%s601 + $0xf70] sm:$0xff]
        %v1097 = vld [vmem:[%s601 + $0xf78] sm:$0xff]
        %v1098 = vld [vmem:[%s601 + $0xf80] sm:$0xff]
        %v1099 = vld [vmem:[%s601 + $0xf88] sm:$0xff]
        %v1100 = vld [vmem:[%s601 + $0xf90] sm:$0xff]
        %v1101 = vld [vmem:[%s601 + $0xf98] sm:$0xff]
        %v1102 = vld [vmem:[%s601 + $0xfa0] sm:$0xff]
        %v1103 = vld [vmem:[%s601 + $0xfa8] sm:$0xff]
        %v1104 = vld [vmem:[%s601 + $0xfb0] sm:$0xff]
        %v1105 = vld [vmem:[%s601 + $0xfb8] sm:$0xff]
        %v1106 = vld [vmem:[%s601 + $0xfc0] sm:$0xff]
        %v1107 = vld [vmem:[%s601 + $0xfc8] sm:$0xff]
        %v1108 = vld [vmem:[%s601 + $0xfd0] sm:$0xff]
        %v1109 = vld [vmem:[%s601 + $0xfd8] sm:$0xff]
        %v1110 = vld [vmem:[%s601 + $0xfe0] sm:$0xff]
        %v1111 = vld [vmem:[%s601 + $0xfe8] sm:$0xff]
        %v1112 = vld [vmem:[%s601 + $0xff0] sm:$0xff]
        %v1113 = vld [vmem:[%s601 + $0xff8] sm:$0xff]
        %v1130 = vunpack.c.l.b16 %v583
        %v1131 = vunpack.c.h.b16 %v583
        %v1132 = vunpack.c.l.b16 %v584
        %v1133 = vunpack.c.h.b16 %v584
        %v1134 = vunpack.c.l.b16 %v585
        %v1135 = vunpack.c.h.b16 %v585
        %v1136 = vunpack.c.l.b16 %v586
        %v1137 = vunpack.c.h.b16 %v586
        %v1138 = vunpack.c.l.b16 %v587
        %v1139 = vunpack.c.h.b16 %v587
        %v1140 = vunpack.c.l.b16 %v588
        %v1141 = vunpack.c.h.b16 %v588
        %v1142 = vunpack.c.l.b16 %v589
        %v1143 = vunpack.c.h.b16 %v589
        %v1144 = vunpack.c.l.b16 %v590
        %v1145 = vunpack.c.h.b16 %v590
        %v1146 = vunpack.c.l.b16 %v591
        %v1147 = vunpack.c.h.b16 %v591
        %v1148 = vunpack.c.l.b16 %v592
        %v1149 = vunpack.c.h.b16 %v592
        %v1150 = vunpack.c.l.b16 %v593
        %v1151 = vunpack.c.h.b16 %v593
        %v1152 = vunpack.c.l.b16 %v594
        %v1153 = vunpack.c.h.b16 %v594
        %v1154 = vunpack.c.l.b16 %v595
        %v1155 = vunpack.c.h.b16 %v595
        %v1156 = vunpack.c.l.b16 %v596
        %v1157 = vunpack.c.h.b16 %v596
        %v1158 = vunpack.c.l.b16 %v597
        %v1159 = vunpack.c.h.b16 %v597
        %v1160 = vunpack.c.l.b16 %v598
        %v1161 = vunpack.c.h.b16 %v598
        %v1162 = vpack.c.b16 %v1146, %v1130
        %v1163 = vpack.c.b16 %v1147, %v1131
        %v1164 = vpack.c.b16 %v1148, %v1132
        %v1165 = vpack.c.b16 %v1149, %v1133
        %v1166 = vpack.c.b16 %v1150, %v1134
        %v1167 = vpack.c.b16 %v1151, %v1135
        %v1168 = vpack.c.b16 %v1152, %v1136
        %v1169 = vpack.c.b16 %v1153, %v1137
        %v1170 = vpack.c.b16 %v1154, %v1138
        %v1171 = vpack.c.b16 %v1155, %v1139
        %v1172 = vpack.c.b16 %v1156, %v1140
        %v1173 = vpack.c.b16 %v1157, %v1141
        %v1174 = vpack.c.b16 %v1158, %v1142
        %v1175 = vpack.c.b16 %v1159, %v1143
        %v1176 = vpack.c.b16 %v1160, %v1144
        %v1177 = vpack.c.b16 %v1161, %v1145
        %v1706 = vunpack.c.l.b16 %v602
        %v1707 = vunpack.c.h.b16 %v602
        %v1708 = vunpack.c.l.b16 %v603
        %v1709 = vunpack.c.h.b16 %v603
        %v1710 = vunpack.c.l.b16 %v604
        %v1711 = vunpack.c.h.b16 %v604
        %v1712 = vunpack.c.l.b16 %v605
        %v1713 = vunpack.c.h.b16 %v605
        %v1714 = vunpack.c.l.b16 %v606
        %v1715 = vunpack.c.h.b16 %v606
        %v1716 = vunpack.c.l.b16 %v607
        %v1717 = vunpack.c.h.b16 %v607
        %v1718 = vunpack.c.l.b16 %v608
        %v1719 = vunpack.c.h.b16 %v608
        %v1720 = vunpack.c.l.b16 %v609
        %v1721 = vunpack.c.h.b16 %v609
        %v1722 = vunpack.c.l.b16 %v610
        %v1723 = vunpack.c.h.b16 %v610
        %v1724 = vunpack.c.l.b16 %v611
        %v1725 = vunpack.c.h.b16 %v611
        %v1726 = vunpack.c.l.b16 %v612
        %v1727 = vunpack.c.h.b16 %v612
        %v1728 = vunpack.c.l.b16 %v613
        %v1729 = vunpack.c.h.b16 %v613
        %v1730 = vunpack.c.l.b16 %v614
        %v1731 = vunpack.c.h.b16 %v614
        %v1732 = vunpack.c.l.b16 %v615
        %v1733 = vunpack.c.h.b16 %v615
        %v1734 = vunpack.c.l.b16 %v616
        %v1735 = vunpack.c.h.b16 %v616
        %v1736 = vunpack.c.l.b16 %v617
        %v1737 = vunpack.c.h.b16 %v617
        %v1738 = vunpack.c.l.b16 %v618
        %v1739 = vunpack.c.h.b16 %v618
        %v1740 = vunpack.c.l.b16 %v619
        %v1741 = vunpack.c.h.b16 %v619
        %v1742 = vunpack.c.l.b16 %v620
        %v1743 = vunpack.c.h.b16 %v620
        %v1744 = vunpack.c.l.b16 %v621
        %v1745 = vunpack.c.h.b16 %v621
        %v1746 = vunpack.c.l.b16 %v622
        %v1747 = vunpack.c.h.b16 %v622
        %v1748 = vunpack.c.l.b16 %v623
        %v1749 = vunpack.c.h.b16 %v623
        %v1750 = vunpack.c.l.b16 %v624
        %v1751 = vunpack.c.h.b16 %v624
        %v1752 = vunpack.c.l.b16 %v625
        %v1753 = vunpack.c.h.b16 %v625
        %v1754 = vunpack.c.l.b16 %v626
        %v1755 = vunpack.c.h.b16 %v626
        %v1756 = vunpack.c.l.b16 %v627
        %v1757 = vunpack.c.h.b16 %v627
        %v1758 = vunpack.c.l.b16 %v628
        %v1759 = vunpack.c.h.b16 %v628
        %v1760 = vunpack.c.l.b16 %v629
        %v1761 = vunpack.c.h.b16 %v629
        %v1762 = vunpack.c.l.b16 %v630
        %v1763 = vunpack.c.h.b16 %v630
        %v1764 = vunpack.c.l.b16 %v631
        %v1765 = vunpack.c.h.b16 %v631
        %v1766 = vunpack.c.l.b16 %v632
        %v1767 = vunpack.c.h.b16 %v632
        %v1768 = vunpack.c.l.b16 %v633
        %v1769 = vunpack.c.h.b16 %v633
        %v1770 = vunpack.c.l.b16 %v634
        %v1771 = vunpack.c.h.b16 %v634
        %v1772 = vunpack.c.l.b16 %v635
        %v1773 = vunpack.c.h.b16 %v635
        %v1774 = vunpack.c.l.b16 %v636
        %v1775 = vunpack.c.h.b16 %v636
        %v1776 = vunpack.c.l.b16 %v637
        %v1777 = vunpack.c.h.b16 %v637
        %v1778 = vunpack.c.l.b16 %v638
        %v1779 = vunpack.c.h.b16 %v638
        %v1780 = vunpack.c.l.b16 %v639
        %v1781 = vunpack.c.h.b16 %v639
        %v1782 = vunpack.c.l.b16 %v640
        %v1783 = vunpack.c.h.b16 %v640
        %v1784 = vunpack.c.l.b16 %v641
        %v1785 = vunpack.c.h.b16 %v641
        %v1786 = vunpack.c.l.b16 %v642
        %v1787 = vunpack.c.h.b16 %v642
        %v1788 = vunpack.c.l.b16 %v643
        %v1789 = vunpack.c.h.b16 %v643
        %v1790 = vunpack.c.l.b16 %v644
        %v1791 = vunpack.c.h.b16 %v644
        %v1792 = vunpack.c.l.b16 %v645
        %v1793 = vunpack.c.h.b16 %v645
        %v1794 = vunpack.c.l.b16 %v646
        %v1795 = vunpack.c.h.b16 %v646
        %v1796 = vunpack.c.l.b16 %v647
        %v1797 = vunpack.c.h.b16 %v647
        %v1798 = vunpack.c.l.b16 %v648
        %v1799 = vunpack.c.h.b16 %v648
        %v1800 = vunpack.c.l.b16 %v649
        %v1801 = vunpack.c.h.b16 %v649
        %v1802 = vunpack.c.l.b16 %v650
        %v1803 = vunpack.c.h.b16 %v650
        %v1804 = vunpack.c.l.b16 %v651
        %v1805 = vunpack.c.h.b16 %v651
        %v1806 = vunpack.c.l.b16 %v652
        %v1807 = vunpack.c.h.b16 %v652
        %v1808 = vunpack.c.l.b16 %v653
        %v1809 = vunpack.c.h.b16 %v653
        %v1810 = vunpack.c.l.b16 %v654
        %v1811 = vunpack.c.h.b16 %v654
        %v1812 = vunpack.c.l.b16 %v655
        %v1813 = vunpack.c.h.b16 %v655
        %v1814 = vunpack.c.l.b16 %v656
        %v1815 = vunpack.c.h.b16 %v656
        %v1816 = vunpack.c.l.b16 %v657
        %v1817 = vunpack.c.h.b16 %v657
        %v1818 = vunpack.c.l.b16 %v658
        %v1819 = vunpack.c.h.b16 %v658
        %v1820 = vunpack.c.l.b16 %v659
        %v1821 = vunpack.c.h.b16 %v659
        %v1822 = vunpack.c.l.b16 %v660
        %v1823 = vunpack.c.h.b16 %v660
        %v1824 = vunpack.c.l.b16 %v661
        %v1825 = vunpack.c.h.b16 %v661
        %v1826 = vunpack.c.l.b16 %v662
        %v1827 = vunpack.c.h.b16 %v662
        %v1828 = vunpack.c.l.b16 %v663
        %v1829 = vunpack.c.h.b16 %v663
        %v1830 = vunpack.c.l.b16 %v664
        %v1831 = vunpack.c.h.b16 %v664
        %v1832 = vunpack.c.l.b16 %v665
        %v1833 = vunpack.c.h.b16 %v665
        %v1834 = vunpack.c.l.b16 %v666
        %v1835 = vunpack.c.h.b16 %v666
        %v1836 = vunpack.c.l.b16 %v667
        %v1837 = vunpack.c.h.b16 %v667
        %v1838 = vunpack.c.l.b16 %v668
        %v1839 = vunpack.c.h.b16 %v668
        %v1840 = vunpack.c.l.b16 %v669
        %v1841 = vunpack.c.h.b16 %v669
        %v1842 = vunpack.c.l.b16 %v670
        %v1843 = vunpack.c.h.b16 %v670
        %v1844 = vunpack.c.l.b16 %v671
        %v1845 = vunpack.c.h.b16 %v671
        %v1846 = vunpack.c.l.b16 %v672
        %v1847 = vunpack.c.h.b16 %v672
        %v1848 = vunpack.c.l.b16 %v673
        %v1849 = vunpack.c.h.b16 %v673
        %v1850 = vunpack.c.l.b16 %v674
        %v1851 = vunpack.c.h.b16 %v674
        %v1852 = vunpack.c.l.b16 %v675
        %v1853 = vunpack.c.h.b16 %v675
        %v1854 = vunpack.c.l.b16 %v676
        %v1855 = vunpack.c.h.b16 %v676
        %v1856 = vunpack.c.l.b16 %v677
        %v1857 = vunpack.c.h.b16 %v677
        %v1858 = vunpack.c.l.b16 %v678
        %v1859 = vunpack.c.h.b16 %v678
        %v1860 = vunpack.c.l.b16 %v679
        %v1861 = vunpack.c.h.b16 %v679
        %v1862 = vunpack.c.l.b16 %v680
        %v1863 = vunpack.c.h.b16 %v680
        %v1864 = vunpack.c.l.b16 %v681
        %v1865 = vunpack.c.h.b16 %v681
        %v1866 = vunpack.c.l.b16 %v682
        %v1867 = vunpack.c.h.b16 %v682
        %v1868 = vunpack.c.l.b16 %v683
        %v1869 = vunpack.c.h.b16 %v683
        %v1870 = vunpack.c.l.b16 %v684
        %v1871 = vunpack.c.h.b16 %v684
        %v1872 = vunpack.c.l.b16 %v685
        %v1873 = vunpack.c.h.b16 %v685
        %v1874 = vunpack.c.l.b16 %v686
        %v1875 = vunpack.c.h.b16 %v686
        %v1876 = vunpack.c.l.b16 %v687
        %v1877 = vunpack.c.h.b16 %v687
        %v1878 = vunpack.c.l.b16 %v688
        %v1879 = vunpack.c.h.b16 %v688
        %v1880 = vunpack.c.l.b16 %v689
        %v1881 = vunpack.c.h.b16 %v689
        %v1882 = vunpack.c.l.b16 %v690
        %v1883 = vunpack.c.h.b16 %v690
        %v1884 = vunpack.c.l.b16 %v691
        %v1885 = vunpack.c.h.b16 %v691
        %v1886 = vunpack.c.l.b16 %v692
        %v1887 = vunpack.c.h.b16 %v692
        %v1888 = vunpack.c.l.b16 %v693
        %v1889 = vunpack.c.h.b16 %v693
        %v1890 = vunpack.c.l.b16 %v694
        %v1891 = vunpack.c.h.b16 %v694
        %v1892 = vunpack.c.l.b16 %v695
        %v1893 = vunpack.c.h.b16 %v695
        %v1894 = vunpack.c.l.b16 %v696
        %v1895 = vunpack.c.h.b16 %v696
        %v1896 = vunpack.c.l.b16 %v697
        %v1897 = vunpack.c.h.b16 %v697
        %v1898 = vunpack.c.l.b16 %v698
        %v1899 = vunpack.c.h.b16 %v698
        %v1900 = vunpack.c.l.b16 %v699
        %v1901 = vunpack.c.h.b16 %v699
        %v1902 = vunpack.c.l.b16 %v700
        %v1903 = vunpack.c.h.b16 %v700
        %v1904 = vunpack.c.l.b16 %v701
        %v1905 = vunpack.c.h.b16 %v701
        %v1906 = vunpack.c.l.b16 %v702
        %v1907 = vunpack.c.h.b16 %v702
        %v1908 = vunpack.c.l.b16 %v703
        %v1909 = vunpack.c.h.b16 %v703
        %v1910 = vunpack.c.l.b16 %v704
        %v1911 = vunpack.c.h.b16 %v704
        %v1912 = vunpack.c.l.b16 %v705
        %v1913 = vunpack.c.h.b16 %v705
        %v1914 = vunpack.c.l.b16 %v706
        %v1915 = vunpack.c.h.b16 %v706
        %v1916 = vunpack.c.l.b16 %v707
        %v1917 = vunpack.c.h.b16 %v707
        %v1918 = vunpack.c.l.b16 %v708
        %v1919 = vunpack.c.h.b16 %v708
        %v1920 = vunpack.c.l.b16 %v709
        %v1921 = vunpack.c.h.b16 %v709
        %v1922 = vunpack.c.l.b16 %v710
        %v1923 = vunpack.c.h.b16 %v710
        %v1924 = vunpack.c.l.b16 %v711
        %v1925 = vunpack.c.h.b16 %v711
        %v1926 = vunpack.c.l.b16 %v712
        %v1927 = vunpack.c.h.b16 %v712
        %v1928 = vunpack.c.l.b16 %v713
        %v1929 = vunpack.c.h.b16 %v713
        %v1930 = vunpack.c.l.b16 %v714
        %v1931 = vunpack.c.h.b16 %v714
        %v1932 = vunpack.c.l.b16 %v715
        %v1933 = vunpack.c.h.b16 %v715
        %v1934 = vunpack.c.l.b16 %v716
        %v1935 = vunpack.c.h.b16 %v716
        %v1936 = vunpack.c.l.b16 %v717
        %v1937 = vunpack.c.h.b16 %v717
        %v1938 = vunpack.c.l.b16 %v718
        %v1939 = vunpack.c.h.b16 %v718
        %v1940 = vunpack.c.l.b16 %v719
        %v1941 = vunpack.c.h.b16 %v719
        %v1942 = vunpack.c.l.b16 %v720
        %v1943 = vunpack.c.h.b16 %v720
        %v1944 = vunpack.c.l.b16 %v721
        %v1945 = vunpack.c.h.b16 %v721
        %v1946 = vunpack.c.l.b16 %v722
        %v1947 = vunpack.c.h.b16 %v722
        %v1948 = vunpack.c.l.b16 %v723
        %v1949 = vunpack.c.h.b16 %v723
        %v1950 = vunpack.c.l.b16 %v724
        %v1951 = vunpack.c.h.b16 %v724
        %v1952 = vunpack.c.l.b16 %v725
        %v1953 = vunpack.c.h.b16 %v725
        %v1954 = vunpack.c.l.b16 %v726
        %v1955 = vunpack.c.h.b16 %v726
        %v1956 = vunpack.c.l.b16 %v727
        %v1957 = vunpack.c.h.b16 %v727
        %v1958 = vunpack.c.l.b16 %v728
        %v1959 = vunpack.c.h.b16 %v728
        %v1960 = vunpack.c.l.b16 %v729
        %v1961 = vunpack.c.h.b16 %v729
        %v1962 = vunpack.c.l.b16 %v730
        %v1963 = vunpack.c.h.b16 %v730
        %v1964 = vunpack.c.l.b16 %v731
        %v1965 = vunpack.c.h.b16 %v731
        %v1966 = vunpack.c.l.b16 %v732
        %v1967 = vunpack.c.h.b16 %v732
        %v1968 = vunpack.c.l.b16 %v733
        %v1969 = vunpack.c.h.b16 %v733
        %v1970 = vunpack.c.l.b16 %v734
        %v1971 = vunpack.c.h.b16 %v734
        %v1972 = vunpack.c.l.b16 %v735
        %v1973 = vunpack.c.h.b16 %v735
        %v1974 = vunpack.c.l.b16 %v736
        %v1975 = vunpack.c.h.b16 %v736
        %v1976 = vunpack.c.l.b16 %v737
        %v1977 = vunpack.c.h.b16 %v737
        %v1978 = vunpack.c.l.b16 %v738
        %v1979 = vunpack.c.h.b16 %v738
        %v1980 = vunpack.c.l.b16 %v739
        %v1981 = vunpack.c.h.b16 %v739
        %v1982 = vunpack.c.l.b16 %v740
        %v1983 = vunpack.c.h.b16 %v740
        %v1984 = vunpack.c.l.b16 %v741
        %v1985 = vunpack.c.h.b16 %v741
        %v1986 = vunpack.c.l.b16 %v742
        %v1987 = vunpack.c.h.b16 %v742
        %v1988 = vunpack.c.l.b16 %v743
        %v1989 = vunpack.c.h.b16 %v743
        %v1990 = vunpack.c.l.b16 %v744
        %v1991 = vunpack.c.h.b16 %v744
        %v1992 = vunpack.c.l.b16 %v745
        %v1993 = vunpack.c.h.b16 %v745
        %v1994 = vunpack.c.l.b16 %v746
        %v1995 = vunpack.c.h.b16 %v746
        %v1996 = vunpack.c.l.b16 %v747
        %v1997 = vunpack.c.h.b16 %v747
        %v1998 = vunpack.c.l.b16 %v748
        %v1999 = vunpack.c.h.b16 %v748
        %v2000 = vunpack.c.l.b16 %v749
        %v2001 = vunpack.c.h.b16 %v749
        %v2002 = vunpack.c.l.b16 %v750
        %v2003 = vunpack.c.h.b16 %v750
        %v2004 = vunpack.c.l.b16 %v751
        %v2005 = vunpack.c.h.b16 %v751
        %v2006 = vunpack.c.l.b16 %v752
        %v2007 = vunpack.c.h.b16 %v752
        %v2008 = vunpack.c.l.b16 %v753
        %v2009 = vunpack.c.h.b16 %v753
        %v2010 = vunpack.c.l.b16 %v754
        %v2011 = vunpack.c.h.b16 %v754
        %v2012 = vunpack.c.l.b16 %v755
        %v2013 = vunpack.c.h.b16 %v755
        %v2014 = vunpack.c.l.b16 %v756
        %v2015 = vunpack.c.h.b16 %v756
        %v2016 = vunpack.c.l.b16 %v757
        %v2017 = vunpack.c.h.b16 %v757
        %v2018 = vunpack.c.l.b16 %v758
        %v2019 = vunpack.c.h.b16 %v758
        %v2020 = vunpack.c.l.b16 %v759
        %v2021 = vunpack.c.h.b16 %v759
        %v2022 = vunpack.c.l.b16 %v760
        %v2023 = vunpack.c.h.b16 %v760
        %v2024 = vunpack.c.l.b16 %v761
        %v2025 = vunpack.c.h.b16 %v761
        %v2026 = vunpack.c.l.b16 %v762
        %v2027 = vunpack.c.h.b16 %v762
        %v2028 = vunpack.c.l.b16 %v763
        %v2029 = vunpack.c.h.b16 %v763
        %v2030 = vunpack.c.l.b16 %v764
        %v2031 = vunpack.c.h.b16 %v764
        %v2032 = vunpack.c.l.b16 %v765
        %v2033 = vunpack.c.h.b16 %v765
        %v2034 = vunpack.c.l.b16 %v766
        %v2035 = vunpack.c.h.b16 %v766
        %v2036 = vunpack.c.l.b16 %v767
        %v2037 = vunpack.c.h.b16 %v767
        %v2038 = vunpack.c.l.b16 %v768
        %v2039 = vunpack.c.h.b16 %v768
        %v2040 = vunpack.c.l.b16 %v769
        %v2041 = vunpack.c.h.b16 %v769
        %v2042 = vunpack.c.l.b16 %v770
        %v2043 = vunpack.c.h.b16 %v770
        %v2044 = vunpack.c.l.b16 %v771
        %v2045 = vunpack.c.h.b16 %v771
        %v2046 = vunpack.c.l.b16 %v772
        %v2047 = vunpack.c.h.b16 %v772
        %v2048 = vunpack.c.l.b16 %v773
        %v2049 = vunpack.c.h.b16 %v773
        %v2050 = vunpack.c.l.b16 %v774
        %v2051 = vunpack.c.h.b16 %v774
        %v2052 = vunpack.c.l.b16 %v775
        %v2053 = vunpack.c.h.b16 %v775
        %v2054 = vunpack.c.l.b16 %v776
        %v2055 = vunpack.c.h.b16 %v776
        %v2056 = vunpack.c.l.b16 %v777
        %v2057 = vunpack.c.h.b16 %v777
        %v2058 = vunpack.c.l.b16 %v778
        %v2059 = vunpack.c.h.b16 %v778
        %v2060 = vunpack.c.l.b16 %v779
        %v2061 = vunpack.c.h.b16 %v779
        %v2062 = vunpack.c.l.b16 %v780
        %v2063 = vunpack.c.h.b16 %v780
        %v2064 = vunpack.c.l.b16 %v781
        %v2065 = vunpack.c.h.b16 %v781
        %v2066 = vunpack.c.l.b16 %v782
        %v2067 = vunpack.c.h.b16 %v782
        %v2068 = vunpack.c.l.b16 %v783
        %v2069 = vunpack.c.h.b16 %v783
        %v2070 = vunpack.c.l.b16 %v784
        %v2071 = vunpack.c.h.b16 %v784
        %v2072 = vunpack.c.l.b16 %v785
        %v2073 = vunpack.c.h.b16 %v785
        %v2074 = vunpack.c.l.b16 %v786
        %v2075 = vunpack.c.h.b16 %v786
        %v2076 = vunpack.c.l.b16 %v787
        %v2077 = vunpack.c.h.b16 %v787
        %v2078 = vunpack.c.l.b16 %v788
        %v2079 = vunpack.c.h.b16 %v788
        %v2080 = vunpack.c.l.b16 %v789
        %v2081 = vunpack.c.h.b16 %v789
        %v2082 = vunpack.c.l.b16 %v790
        %v2083 = vunpack.c.h.b16 %v790
        %v2084 = vunpack.c.l.b16 %v791
        %v2085 = vunpack.c.h.b16 %v791
        %v2086 = vunpack.c.l.b16 %v792
        %v2087 = vunpack.c.h.b16 %v792
        %v2088 = vunpack.c.l.b16 %v793
        %v2089 = vunpack.c.h.b16 %v793
        %v2090 = vunpack.c.l.b16 %v794
        %v2091 = vunpack.c.h.b16 %v794
        %v2092 = vunpack.c.l.b16 %v795
        %v2093 = vunpack.c.h.b16 %v795
        %v2094 = vunpack.c.l.b16 %v796
        %v2095 = vunpack.c.h.b16 %v796
        %v2096 = vunpack.c.l.b16 %v797
        %v2097 = vunpack.c.h.b16 %v797
        %v2098 = vunpack.c.l.b16 %v798
        %v2099 = vunpack.c.h.b16 %v798
        %v2100 = vunpack.c.l.b16 %v799
        %v2101 = vunpack.c.h.b16 %v799
        %v2102 = vunpack.c.l.b16 %v800
        %v2103 = vunpack.c.h.b16 %v800
        %v2104 = vunpack.c.l.b16 %v801
        %v2105 = vunpack.c.h.b16 %v801
        %v2106 = vunpack.c.l.b16 %v802
        %v2107 = vunpack.c.h.b16 %v802
        %v2108 = vunpack.c.l.b16 %v803
        %v2109 = vunpack.c.h.b16 %v803
        %v2110 = vunpack.c.l.b16 %v804
        %v2111 = vunpack.c.h.b16 %v804
        %v2112 = vunpack.c.l.b16 %v805
        %v2113 = vunpack.c.h.b16 %v805
        %v2114 = vunpack.c.l.b16 %v806
        %v2115 = vunpack.c.h.b16 %v806
        %v2116 = vunpack.c.l.b16 %v807
        %v2117 = vunpack.c.h.b16 %v807
        %v2118 = vunpack.c.l.b16 %v808
        %v2119 = vunpack.c.h.b16 %v808
        %v2120 = vunpack.c.l.b16 %v809
        %v2121 = vunpack.c.h.b16 %v809
        %v2122 = vunpack.c.l.b16 %v810
        %v2123 = vunpack.c.h.b16 %v810
        %v2124 = vunpack.c.l.b16 %v811
        %v2125 = vunpack.c.h.b16 %v811
        %v2126 = vunpack.c.l.b16 %v812
        %v2127 = vunpack.c.h.b16 %v812
        %v2128 = vunpack.c.l.b16 %v813
        %v2129 = vunpack.c.h.b16 %v813
        %v2130 = vunpack.c.l.b16 %v814
        %v2131 = vunpack.c.h.b16 %v814
        %v2132 = vunpack.c.l.b16 %v815
        %v2133 = vunpack.c.h.b16 %v815
        %v2134 = vunpack.c.l.b16 %v816
        %v2135 = vunpack.c.h.b16 %v816
        %v2136 = vunpack.c.l.b16 %v817
        %v2137 = vunpack.c.h.b16 %v817
        %v2138 = vunpack.c.l.b16 %v818
        %v2139 = vunpack.c.h.b16 %v818
        %v2140 = vunpack.c.l.b16 %v819
        %v2141 = vunpack.c.h.b16 %v819
        %v2142 = vunpack.c.l.b16 %v820
        %v2143 = vunpack.c.h.b16 %v820
        %v2144 = vunpack.c.l.b16 %v821
        %v2145 = vunpack.c.h.b16 %v821
        %v2146 = vunpack.c.l.b16 %v822
        %v2147 = vunpack.c.h.b16 %v822
        %v2148 = vunpack.c.l.b16 %v823
        %v2149 = vunpack.c.h.b16 %v823
        %v2150 = vunpack.c.l.b16 %v824
        %v2151 = vunpack.c.h.b16 %v824
        %v2152 = vunpack.c.l.b16 %v825
        %v2153 = vunpack.c.h.b16 %v825
        %v2154 = vunpack.c.l.b16 %v826
        %v2155 = vunpack.c.h.b16 %v826
        %v2156 = vunpack.c.l.b16 %v827
        %v2157 = vunpack.c.h.b16 %v827
        %v2158 = vunpack.c.l.b16 %v828
        %v2159 = vunpack.c.h.b16 %v828
        %v2160 = vunpack.c.l.b16 %v829
        %v2161 = vunpack.c.h.b16 %v829
        %v2162 = vunpack.c.l.b16 %v830
        %v2163 = vunpack.c.h.b16 %v830
        %v2164 = vunpack.c.l.b16 %v831
        %v2165 = vunpack.c.h.b16 %v831
        %v2166 = vunpack.c.l.b16 %v832
        %v2167 = vunpack.c.h.b16 %v832
        %v2168 = vunpack.c.l.b16 %v833
        %v2169 = vunpack.c.h.b16 %v833
        %v2170 = vunpack.c.l.b16 %v834
        %v2171 = vunpack.c.h.b16 %v834
        %v2172 = vunpack.c.l.b16 %v835
        %v2173 = vunpack.c.h.b16 %v835
        %v2174 = vunpack.c.l.b16 %v836
        %v2175 = vunpack.c.h.b16 %v836
        %v2176 = vunpack.c.l.b16 %v837
        %v2177 = vunpack.c.h.b16 %v837
        %v2178 = vunpack.c.l.b16 %v838
        %v2179 = vunpack.c.h.b16 %v838
        %v2180 = vunpack.c.l.b16 %v839
        %v2181 = vunpack.c.h.b16 %v839
        %v2182 = vunpack.c.l.b16 %v840
        %v2183 = vunpack.c.h.b16 %v840
        %v2184 = vunpack.c.l.b16 %v841
        %v2185 = vunpack.c.h.b16 %v841
        %v2186 = vunpack.c.l.b16 %v842
        %v2187 = vunpack.c.h.b16 %v842
        %v2188 = vunpack.c.l.b16 %v843
        %v2189 = vunpack.c.h.b16 %v843
        %v2190 = vunpack.c.l.b16 %v844
        %v2191 = vunpack.c.h.b16 %v844
        %v2192 = vunpack.c.l.b16 %v845
        %v2193 = vunpack.c.h.b16 %v845
        %v2194 = vunpack.c.l.b16 %v846
        %v2195 = vunpack.c.h.b16 %v846
        %v2196 = vunpack.c.l.b16 %v847
        %v2197 = vunpack.c.h.b16 %v847
        %v2198 = vunpack.c.l.b16 %v848
        %v2199 = vunpack.c.h.b16 %v848
        %v2200 = vunpack.c.l.b16 %v849
        %v2201 = vunpack.c.h.b16 %v849
        %v2202 = vunpack.c.l.b16 %v850
        %v2203 = vunpack.c.h.b16 %v850
        %v2204 = vunpack.c.l.b16 %v851
        %v2205 = vunpack.c.h.b16 %v851
        %v2206 = vunpack.c.l.b16 %v852
        %v2207 = vunpack.c.h.b16 %v852
        %v2208 = vunpack.c.l.b16 %v853
        %v2209 = vunpack.c.h.b16 %v853
        %v2210 = vunpack.c.l.b16 %v854
        %v2211 = vunpack.c.h.b16 %v854
        %v2212 = vunpack.c.l.b16 %v855
        %v2213 = vunpack.c.h.b16 %v855
        %v2214 = vunpack.c.l.b16 %v856
        %v2215 = vunpack.c.h.b16 %v856
        %v2216 = vunpack.c.l.b16 %v857
        %v2217 = vunpack.c.h.b16 %v857
        %v2218 = vunpack.c.l.b16 %v858
        %v2219 = vunpack.c.h.b16 %v858
        %v2220 = vunpack.c.l.b16 %v859
        %v2221 = vunpack.c.h.b16 %v859
        %v2222 = vunpack.c.l.b16 %v860
        %v2223 = vunpack.c.h.b16 %v860
        %v2224 = vunpack.c.l.b16 %v861
        %v2225 = vunpack.c.h.b16 %v861
        %v2226 = vunpack.c.l.b16 %v862
        %v2227 = vunpack.c.h.b16 %v862
        %v2228 = vunpack.c.l.b16 %v863
        %v2229 = vunpack.c.h.b16 %v863
        %v2230 = vunpack.c.l.b16 %v864
        %v2231 = vunpack.c.h.b16 %v864
        %v2232 = vunpack.c.l.b16 %v865
        %v2233 = vunpack.c.h.b16 %v865
        %v2234 = vunpack.c.l.b16 %v866
        %v2235 = vunpack.c.h.b16 %v866
        %v2236 = vunpack.c.l.b16 %v867
        %v2237 = vunpack.c.h.b16 %v867
        %v2238 = vunpack.c.l.b16 %v868
        %v2239 = vunpack.c.h.b16 %v868
        %v2240 = vunpack.c.l.b16 %v869
        %v2241 = vunpack.c.h.b16 %v869
        %v2242 = vunpack.c.l.b16 %v870
        %v2243 = vunpack.c.h.b16 %v870
        %v2244 = vunpack.c.l.b16 %v871
        %v2245 = vunpack.c.h.b16 %v871
        %v2246 = vunpack.c.l.b16 %v872
        %v2247 = vunpack.c.h.b16 %v872
        %v2248 = vunpack.c.l.b16 %v873
        %v2249 = vunpack.c.h.b16 %v873
        %v2250 = vunpack.c.l.b16 %v874
        %v2251 = vunpack.c.h.b16 %v874
        %v2252 = vunpack.c.l.b16 %v875
        %v2253 = vunpack.c.h.b16 %v875
        %v2254 = vunpack.c.l.b16 %v876
        %v2255 = vunpack.c.h.b16 %v876
        %v2256 = vunpack.c.l.b16 %v877
        %v2257 = vunpack.c.h.b16 %v877
        %v2258 = vunpack.c.l.b16 %v878
        %v2259 = vunpack.c.h.b16 %v878
        %v2260 = vunpack.c.l.b16 %v879
        %v2261 = vunpack.c.h.b16 %v879
        %v2262 = vunpack.c.l.b16 %v880
        %v2263 = vunpack.c.h.b16 %v880
        %v2264 = vunpack.c.l.b16 %v881
        %v2265 = vunpack.c.h.b16 %v881
        %v2266 = vunpack.c.l.b16 %v882
        %v2267 = vunpack.c.h.b16 %v882
        %v2268 = vunpack.c.l.b16 %v883
        %v2269 = vunpack.c.h.b16 %v883
        %v2270 = vunpack.c.l.b16 %v884
        %v2271 = vunpack.c.h.b16 %v884
        %v2272 = vunpack.c.l.b16 %v885
        %v2273 = vunpack.c.h.b16 %v885
        %v2274 = vunpack.c.l.b16 %v886
        %v2275 = vunpack.c.h.b16 %v886
        %v2276 = vunpack.c.l.b16 %v887
        %v2277 = vunpack.c.h.b16 %v887
        %v2278 = vunpack.c.l.b16 %v888
        %v2279 = vunpack.c.h.b16 %v888
        %v2280 = vunpack.c.l.b16 %v889
        %v2281 = vunpack.c.h.b16 %v889
        %v2282 = vunpack.c.l.b16 %v890
        %v2283 = vunpack.c.h.b16 %v890
        %v2284 = vunpack.c.l.b16 %v891
        %v2285 = vunpack.c.h.b16 %v891
        %v2286 = vunpack.c.l.b16 %v892
        %v2287 = vunpack.c.h.b16 %v892
        %v2288 = vunpack.c.l.b16 %v893
        %v2289 = vunpack.c.h.b16 %v893
        %v2290 = vunpack.c.l.b16 %v894
        %v2291 = vunpack.c.h.b16 %v894
        %v2292 = vunpack.c.l.b16 %v895
        %v2293 = vunpack.c.h.b16 %v895
        %v2294 = vunpack.c.l.b16 %v896
        %v2295 = vunpack.c.h.b16 %v896
        %v2296 = vunpack.c.l.b16 %v897
        %v2297 = vunpack.c.h.b16 %v897
        %v2298 = vunpack.c.l.b16 %v898
        %v2299 = vunpack.c.h.b16 %v898
        %v2300 = vunpack.c.l.b16 %v899
        %v2301 = vunpack.c.h.b16 %v899
        %v2302 = vunpack.c.l.b16 %v900
        %v2303 = vunpack.c.h.b16 %v900
        %v2304 = vunpack.c.l.b16 %v901
        %v2305 = vunpack.c.h.b16 %v901
        %v2306 = vunpack.c.l.b16 %v902
        %v2307 = vunpack.c.h.b16 %v902
        %v2308 = vunpack.c.l.b16 %v903
        %v2309 = vunpack.c.h.b16 %v903
        %v2310 = vunpack.c.l.b16 %v904
        %v2311 = vunpack.c.h.b16 %v904
        %v2312 = vunpack.c.l.b16 %v905
        %v2313 = vunpack.c.h.b16 %v905
        %v2314 = vunpack.c.l.b16 %v906
        %v2315 = vunpack.c.h.b16 %v906
        %v2316 = vunpack.c.l.b16 %v907
        %v2317 = vunpack.c.h.b16 %v907
        %v2318 = vunpack.c.l.b16 %v908
        %v2319 = vunpack.c.h.b16 %v908
        %v2320 = vunpack.c.l.b16 %v909
        %v2321 = vunpack.c.h.b16 %v909
        %v2322 = vunpack.c.l.b16 %v910
        %v2323 = vunpack.c.h.b16 %v910
        %v2324 = vunpack.c.l.b16 %v911
        %v2325 = vunpack.c.h.b16 %v911
        %v2326 = vunpack.c.l.b16 %v912
        %v2327 = vunpack.c.h.b16 %v912
        %v2328 = vunpack.c.l.b16 %v913
        %v2329 = vunpack.c.h.b16 %v913
        %v2330 = vunpack.c.l.b16 %v914
        %v2331 = vunpack.c.h.b16 %v914
        %v2332 = vunpack.c.l.b16 %v915
        %v2333 = vunpack.c.h.b16 %v915
        %v2334 = vunpack.c.l.b16 %v916
        %v2335 = vunpack.c.h.b16 %v916
        %v2336 = vunpack.c.l.b16 %v917
        %v2337 = vunpack.c.h.b16 %v917
        %v2338 = vunpack.c.l.b16 %v918
        %v2339 = vunpack.c.h.b16 %v918
        %v2340 = vunpack.c.l.b16 %v919
        %v2341 = vunpack.c.h.b16 %v919
        %v2342 = vunpack.c.l.b16 %v920
        %v2343 = vunpack.c.h.b16 %v920
        %v2344 = vunpack.c.l.b16 %v921
        %v2345 = vunpack.c.h.b16 %v921
        %v2346 = vunpack.c.l.b16 %v922
        %v2347 = vunpack.c.h.b16 %v922
        %v2348 = vunpack.c.l.b16 %v923
        %v2349 = vunpack.c.h.b16 %v923
        %v2350 = vunpack.c.l.b16 %v924
        %v2351 = vunpack.c.h.b16 %v924
        %v2352 = vunpack.c.l.b16 %v925
        %v2353 = vunpack.c.h.b16 %v925
        %v2354 = vunpack.c.l.b16 %v926
        %v2355 = vunpack.c.h.b16 %v926
        %v2356 = vunpack.c.l.b16 %v927
        %v2357 = vunpack.c.h.b16 %v927
        %v2358 = vunpack.c.l.b16 %v928
        %v2359 = vunpack.c.h.b16 %v928
        %v2360 = vunpack.c.l.b16 %v929
        %v2361 = vunpack.c.h.b16 %v929
        %v2362 = vunpack.c.l.b16 %v930
        %v2363 = vunpack.c.h.b16 %v930
        %v2364 = vunpack.c.l.b16 %v931
        %v2365 = vunpack.c.h.b16 %v931
        %v2366 = vunpack.c.l.b16 %v932
        %v2367 = vunpack.c.h.b16 %v932
        %v2368 = vunpack.c.l.b16 %v933
        %v2369 = vunpack.c.h.b16 %v933
        %v2370 = vunpack.c.l.b16 %v934
        %v2371 = vunpack.c.h.b16 %v934
        %v2372 = vunpack.c.l.b16 %v935
        %v2373 = vunpack.c.h.b16 %v935
        %v2374 = vunpack.c.l.b16 %v936
        %v2375 = vunpack.c.h.b16 %v936
        %v2376 = vunpack.c.l.b16 %v937
        %v2377 = vunpack.c.h.b16 %v937
        %v2378 = vunpack.c.l.b16 %v938
        %v2379 = vunpack.c.h.b16 %v938
        %v2380 = vunpack.c.l.b16 %v939
        %v2381 = vunpack.c.h.b16 %v939
        %v2382 = vunpack.c.l.b16 %v940
        %v2383 = vunpack.c.h.b16 %v940
        %v2384 = vunpack.c.l.b16 %v941
        %v2385 = vunpack.c.h.b16 %v941
        %v2386 = vunpack.c.l.b16 %v942
        %v2387 = vunpack.c.h.b16 %v942
        %v2388 = vunpack.c.l.b16 %v943
        %v2389 = vunpack.c.h.b16 %v943
        %v2390 = vunpack.c.l.b16 %v944
        %v2391 = vunpack.c.h.b16 %v944
        %v2392 = vunpack.c.l.b16 %v945
        %v2393 = vunpack.c.h.b16 %v945
        %v2394 = vunpack.c.l.b16 %v946
        %v2395 = vunpack.c.h.b16 %v946
        %v2396 = vunpack.c.l.b16 %v947
        %v2397 = vunpack.c.h.b16 %v947
        %v2398 = vunpack.c.l.b16 %v948
        %v2399 = vunpack.c.h.b16 %v948
        %v2400 = vunpack.c.l.b16 %v949
        %v2401 = vunpack.c.h.b16 %v949
        %v2402 = vunpack.c.l.b16 %v950
        %v2403 = vunpack.c.h.b16 %v950
        %v2404 = vunpack.c.l.b16 %v951
        %v2405 = vunpack.c.h.b16 %v951
        %v2406 = vunpack.c.l.b16 %v952
        %v2407 = vunpack.c.h.b16 %v952
        %v2408 = vunpack.c.l.b16 %v953
        %v2409 = vunpack.c.h.b16 %v953
        %v2410 = vunpack.c.l.b16 %v954
        %v2411 = vunpack.c.h.b16 %v954
        %v2412 = vunpack.c.l.b16 %v955
        %v2413 = vunpack.c.h.b16 %v955
        %v2414 = vunpack.c.l.b16 %v956
        %v2415 = vunpack.c.h.b16 %v956
        %v2416 = vunpack.c.l.b16 %v957
        %v2417 = vunpack.c.h.b16 %v957
        %v2418 = vunpack.c.l.b16 %v958
        %v2419 = vunpack.c.h.b16 %v958
        %v2420 = vunpack.c.l.b16 %v959
        %v2421 = vunpack.c.h.b16 %v959
        %v2422 = vunpack.c.l.b16 %v960
        %v2423 = vunpack.c.h.b16 %v960
        %v2424 = vunpack.c.l.b16 %v961
        %v2425 = vunpack.c.h.b16 %v961
        %v2426 = vunpack.c.l.b16 %v962
        %v2427 = vunpack.c.h.b16 %v962
        %v2428 = vunpack.c.l.b16 %v963
        %v2429 = vunpack.c.h.b16 %v963
        %v2430 = vunpack.c.l.b16 %v964
        %v2431 = vunpack.c.h.b16 %v964
        %v2432 = vunpack.c.l.b16 %v965
        %v2433 = vunpack.c.h.b16 %v965
        %v2434 = vunpack.c.l.b16 %v966
        %v2435 = vunpack.c.h.b16 %v966
        %v2436 = vunpack.c.l.b16 %v967
        %v2437 = vunpack.c.h.b16 %v967
        %v2438 = vunpack.c.l.b16 %v968
        %v2439 = vunpack.c.h.b16 %v968
        %v2440 = vunpack.c.l.b16 %v969
        %v2441 = vunpack.c.h.b16 %v969
        %v2442 = vunpack.c.l.b16 %v970
        %v2443 = vunpack.c.h.b16 %v970
        %v2444 = vunpack.c.l.b16 %v971
        %v2445 = vunpack.c.h.b16 %v971
        %v2446 = vunpack.c.l.b16 %v972
        %v2447 = vunpack.c.h.b16 %v972
        %v2448 = vunpack.c.l.b16 %v973
        %v2449 = vunpack.c.h.b16 %v973
        %v2450 = vunpack.c.l.b16 %v974
        %v2451 = vunpack.c.h.b16 %v974
        %v2452 = vunpack.c.l.b16 %v975
        %v2453 = vunpack.c.h.b16 %v975
        %v2454 = vunpack.c.l.b16 %v976
        %v2455 = vunpack.c.h.b16 %v976
        %v2456 = vunpack.c.l.b16 %v977
        %v2457 = vunpack.c.h.b16 %v977
        %v2458 = vunpack.c.l.b16 %v978
        %v2459 = vunpack.c.h.b16 %v978
        %v2460 = vunpack.c.l.b16 %v979
        %v2461 = vunpack.c.h.b16 %v979
        %v2462 = vunpack.c.l.b16 %v980
        %v2463 = vunpack.c.h.b16 %v980
        %v2464 = vunpack.c.l.b16 %v981
        %v2465 = vunpack.c.h.b16 %v981
        %v2466 = vunpack.c.l.b16 %v982
        %v2467 = vunpack.c.h.b16 %v982
        %v2468 = vunpack.c.l.b16 %v983
        %v2469 = vunpack.c.h.b16 %v983
        %v2470 = vunpack.c.l.b16 %v984
        %v2471 = vunpack.c.h.b16 %v984
        %v2472 = vunpack.c.l.b16 %v985
        %v2473 = vunpack.c.h.b16 %v985
        %v2474 = vunpack.c.l.b16 %v986
        %v2475 = vunpack.c.h.b16 %v986
        %v2476 = vunpack.c.l.b16 %v987
        %v2477 = vunpack.c.h.b16 %v987
        %v2478 = vunpack.c.l.b16 %v988
        %v2479 = vunpack.c.h.b16 %v988
        %v2480 = vunpack.c.l.b16 %v989
        %v2481 = vunpack.c.h.b16 %v989
        %v2482 = vunpack.c.l.b16 %v990
        %v2483 = vunpack.c.h.b16 %v990
        %v2484 = vunpack.c.l.b16 %v991
        %v2485 = vunpack.c.h.b16 %v991
        %v2486 = vunpack.c.l.b16 %v992
        %v2487 = vunpack.c.h.b16 %v992
        %v2488 = vunpack.c.l.b16 %v993
        %v2489 = vunpack.c.h.b16 %v993
        %v2490 = vunpack.c.l.b16 %v994
        %v2491 = vunpack.c.h.b16 %v994
        %v2492 = vunpack.c.l.b16 %v995
        %v2493 = vunpack.c.h.b16 %v995
        %v2494 = vunpack.c.l.b16 %v996
        %v2495 = vunpack.c.h.b16 %v996
        %v2496 = vunpack.c.l.b16 %v997
        %v2497 = vunpack.c.h.b16 %v997
        %v2498 = vunpack.c.l.b16 %v998
        %v2499 = vunpack.c.h.b16 %v998
        %v2500 = vunpack.c.l.b16 %v999
        %v2501 = vunpack.c.h.b16 %v999
        %v2502 = vunpack.c.l.b16 %v1000
        %v2503 = vunpack.c.h.b16 %v1000
        %v2504 = vunpack.c.l.b16 %v1001
        %v2505 = vunpack.c.h.b16 %v1001
        %v2506 = vunpack.c.l.b16 %v1002
        %v2507 = vunpack.c.h.b16 %v1002
        %v2508 = vunpack.c.l.b16 %v1003
        %v2509 = vunpack.c.h.b16 %v1003
        %v2510 = vunpack.c.l.b16 %v1004
        %v2511 = vunpack.c.h.b16 %v1004
        %v2512 = vunpack.c.l.b16 %v1005
        %v2513 = vunpack.c.h.b16 %v1005
        %v2514 = vunpack.c.l.b16 %v1006
        %v2515 = vunpack.c.h.b16 %v1006
        %v2516 = vunpack.c.l.b16 %v1007
        %v2517 = vunpack.c.h.b16 %v1007
        %v2518 = vunpack.c.l.b16 %v1008
        %v2519 = vunpack.c.h.b16 %v1008
        %v2520 = vunpack.c.l.b16 %v1009
        %v2521 = vunpack.c.h.b16 %v1009
        %v2522 = vunpack.c.l.b16 %v1010
        %v2523 = vunpack.c.h.b16 %v1010
        %v2524 = vunpack.c.l.b16 %v1011
        %v2525 = vunpack.c.h.b16 %v1011
        %v2526 = vunpack.c.l.b16 %v1012
        %v2527 = vunpack.c.h.b16 %v1012
        %v2528 = vunpack.c.l.b16 %v1013
        %v2529 = vunpack.c.h.b16 %v1013
        %v2530 = vunpack.c.l.b16 %v1014
        %v2531 = vunpack.c.h.b16 %v1014
        %v2532 = vunpack.c.l.b16 %v1015
        %v2533 = vunpack.c.h.b16 %v1015
        %v2534 = vunpack.c.l.b16 %v1016
        %v2535 = vunpack.c.h.b16 %v1016
        %v2536 = vunpack.c.l.b16 %v1017
        %v2537 = vunpack.c.h.b16 %v1017
        %v2538 = vunpack.c.l.b16 %v1018
        %v2539 = vunpack.c.h.b16 %v1018
        %v2540 = vunpack.c.l.b16 %v1019
        %v2541 = vunpack.c.h.b16 %v1019
        %v2542 = vunpack.c.l.b16 %v1020
        %v2543 = vunpack.c.h.b16 %v1020
        %v2544 = vunpack.c.l.b16 %v1021
        %v2545 = vunpack.c.h.b16 %v1021
        %v2546 = vunpack.c.l.b16 %v1022
        %v2547 = vunpack.c.h.b16 %v1022
        %v2548 = vunpack.c.l.b16 %v1023
        %v2549 = vunpack.c.h.b16 %v1023
        %v2550 = vunpack.c.l.b16 %v1024
        %v2551 = vunpack.c.h.b16 %v1024
        %v2552 = vunpack.c.l.b16 %v1025
        %v2553 = vunpack.c.h.b16 %v1025
        %v2554 = vunpack.c.l.b16 %v1026
        %v2555 = vunpack.c.h.b16 %v1026
        %v2556 = vunpack.c.l.b16 %v1027
        %v2557 = vunpack.c.h.b16 %v1027
        %v2558 = vunpack.c.l.b16 %v1028
        %v2559 = vunpack.c.h.b16 %v1028
        %v2560 = vunpack.c.l.b16 %v1029
        %v2561 = vunpack.c.h.b16 %v1029
        %v2562 = vunpack.c.l.b16 %v1030
        %v2563 = vunpack.c.h.b16 %v1030
        %v2564 = vunpack.c.l.b16 %v1031
        %v2565 = vunpack.c.h.b16 %v1031
        %v2566 = vunpack.c.l.b16 %v1032
        %v2567 = vunpack.c.h.b16 %v1032
        %v2568 = vunpack.c.l.b16 %v1033
        %v2569 = vunpack.c.h.b16 %v1033
        %v2570 = vunpack.c.l.b16 %v1034
        %v2571 = vunpack.c.h.b16 %v1034
        %v2572 = vunpack.c.l.b16 %v1035
        %v2573 = vunpack.c.h.b16 %v1035
        %v2574 = vunpack.c.l.b16 %v1036
        %v2575 = vunpack.c.h.b16 %v1036
        %v2576 = vunpack.c.l.b16 %v1037
        %v2577 = vunpack.c.h.b16 %v1037
        %v2578 = vunpack.c.l.b16 %v1038
        %v2579 = vunpack.c.h.b16 %v1038
        %v2580 = vunpack.c.l.b16 %v1039
        %v2581 = vunpack.c.h.b16 %v1039
        %v2582 = vunpack.c.l.b16 %v1040
        %v2583 = vunpack.c.h.b16 %v1040
        %v2584 = vunpack.c.l.b16 %v1041
        %v2585 = vunpack.c.h.b16 %v1041
        %v2586 = vunpack.c.l.b16 %v1042
        %v2587 = vunpack.c.h.b16 %v1042
        %v2588 = vunpack.c.l.b16 %v1043
        %v2589 = vunpack.c.h.b16 %v1043
        %v2590 = vunpack.c.l.b16 %v1044
        %v2591 = vunpack.c.h.b16 %v1044
        %v2592 = vunpack.c.l.b16 %v1045
        %v2593 = vunpack.c.h.b16 %v1045
        %v2594 = vunpack.c.l.b16 %v1046
        %v2595 = vunpack.c.h.b16 %v1046
        %v2596 = vunpack.c.l.b16 %v1047
        %v2597 = vunpack.c.h.b16 %v1047
        %v2598 = vunpack.c.l.b16 %v1048
        %v2599 = vunpack.c.h.b16 %v1048
        %v2600 = vunpack.c.l.b16 %v1049
        %v2601 = vunpack.c.h.b16 %v1049
        %v2602 = vunpack.c.l.b16 %v1050
        %v2603 = vunpack.c.h.b16 %v1050
        %v2604 = vunpack.c.l.b16 %v1051
        %v2605 = vunpack.c.h.b16 %v1051
        %v2606 = vunpack.c.l.b16 %v1052
        %v2607 = vunpack.c.h.b16 %v1052
        %v2608 = vunpack.c.l.b16 %v1053
        %v2609 = vunpack.c.h.b16 %v1053
        %v2610 = vunpack.c.l.b16 %v1054
        %v2611 = vunpack.c.h.b16 %v1054
        %v2612 = vunpack.c.l.b16 %v1055
        %v2613 = vunpack.c.h.b16 %v1055
        %v2614 = vunpack.c.l.b16 %v1056
        %v2615 = vunpack.c.h.b16 %v1056
        %v2616 = vunpack.c.l.b16 %v1057
        %v2617 = vunpack.c.h.b16 %v1057
        %v2618 = vunpack.c.l.b16 %v1058
        %v2619 = vunpack.c.h.b16 %v1058
        %v2620 = vunpack.c.l.b16 %v1059
        %v2621 = vunpack.c.h.b16 %v1059
        %v2622 = vunpack.c.l.b16 %v1060
        %v2623 = vunpack.c.h.b16 %v1060
        %v2624 = vunpack.c.l.b16 %v1061
        %v2625 = vunpack.c.h.b16 %v1061
        %v2626 = vunpack.c.l.b16 %v1062
        %v2627 = vunpack.c.h.b16 %v1062
        %v2628 = vunpack.c.l.b16 %v1063
        %v2629 = vunpack.c.h.b16 %v1063
        %v2630 = vunpack.c.l.b16 %v1064
        %v2631 = vunpack.c.h.b16 %v1064
        %v2632 = vunpack.c.l.b16 %v1065
        %v2633 = vunpack.c.h.b16 %v1065
        %v2634 = vunpack.c.l.b16 %v1066
        %v2635 = vunpack.c.h.b16 %v1066
        %v2636 = vunpack.c.l.b16 %v1067
        %v2637 = vunpack.c.h.b16 %v1067
        %v2638 = vunpack.c.l.b16 %v1068
        %v2639 = vunpack.c.h.b16 %v1068
        %v2640 = vunpack.c.l.b16 %v1069
        %v2641 = vunpack.c.h.b16 %v1069
        %v2642 = vunpack.c.l.b16 %v1070
        %v2643 = vunpack.c.h.b16 %v1070
        %v2644 = vunpack.c.l.b16 %v1071
        %v2645 = vunpack.c.h.b16 %v1071
        %v2646 = vunpack.c.l.b16 %v1072
        %v2647 = vunpack.c.h.b16 %v1072
        %v2648 = vunpack.c.l.b16 %v1073
        %v2649 = vunpack.c.h.b16 %v1073
        %v2650 = vunpack.c.l.b16 %v1074
        %v2651 = vunpack.c.h.b16 %v1074
        %v2652 = vunpack.c.l.b16 %v1075
        %v2653 = vunpack.c.h.b16 %v1075
        %v2654 = vunpack.c.l.b16 %v1076
        %v2655 = vunpack.c.h.b16 %v1076
        %v2656 = vunpack.c.l.b16 %v1077
        %v2657 = vunpack.c.h.b16 %v1077
        %v2658 = vunpack.c.l.b16 %v1078
        %v2659 = vunpack.c.h.b16 %v1078
        %v2660 = vunpack.c.l.b16 %v1079
        %v2661 = vunpack.c.h.b16 %v1079
        %v2662 = vunpack.c.l.b16 %v1080
        %v2663 = vunpack.c.h.b16 %v1080
        %v2664 = vunpack.c.l.b16 %v1081
        %v2665 = vunpack.c.h.b16 %v1081
        %v2666 = vunpack.c.l.b16 %v1082
        %v2667 = vunpack.c.h.b16 %v1082
        %v2668 = vunpack.c.l.b16 %v1083
        %v2669 = vunpack.c.h.b16 %v1083
        %v2670 = vunpack.c.l.b16 %v1084
        %v2671 = vunpack.c.h.b16 %v1084
        %v2672 = vunpack.c.l.b16 %v1085
        %v2673 = vunpack.c.h.b16 %v1085
        %v2674 = vunpack.c.l.b16 %v1086
        %v2675 = vunpack.c.h.b16 %v1086
        %v2676 = vunpack.c.l.b16 %v1087
        %v2677 = vunpack.c.h.b16 %v1087
        %v2678 = vunpack.c.l.b16 %v1088
        %v2679 = vunpack.c.h.b16 %v1088
        %v2680 = vunpack.c.l.b16 %v1089
        %v2681 = vunpack.c.h.b16 %v1089
        %v2682 = vunpack.c.l.b16 %v1090
        %v2683 = vunpack.c.h.b16 %v1090
        %v2684 = vunpack.c.l.b16 %v1091
        %v2685 = vunpack.c.h.b16 %v1091
        %v2686 = vunpack.c.l.b16 %v1092
        %v2687 = vunpack.c.h.b16 %v1092
        %v2688 = vunpack.c.l.b16 %v1093
        %v2689 = vunpack.c.h.b16 %v1093
        %v2690 = vunpack.c.l.b16 %v1094
        %v2691 = vunpack.c.h.b16 %v1094
        %v2692 = vunpack.c.l.b16 %v1095
        %v2693 = vunpack.c.h.b16 %v1095
        %v2694 = vunpack.c.l.b16 %v1096
        %v2695 = vunpack.c.h.b16 %v1096
        %v2696 = vunpack.c.l.b16 %v1097
        %v2697 = vunpack.c.h.b16 %v1097
        %v2698 = vunpack.c.l.b16 %v1098
        %v2699 = vunpack.c.h.b16 %v1098
        %v2700 = vunpack.c.l.b16 %v1099
        %v2701 = vunpack.c.h.b16 %v1099
        %v2702 = vunpack.c.l.b16 %v1100
        %v2703 = vunpack.c.h.b16 %v1100
        %v2704 = vunpack.c.l.b16 %v1101
        %v2705 = vunpack.c.h.b16 %v1101
        %v2706 = vunpack.c.l.b16 %v1102
        %v2707 = vunpack.c.h.b16 %v1102
        %v2708 = vunpack.c.l.b16 %v1103
        %v2709 = vunpack.c.h.b16 %v1103
        %v2710 = vunpack.c.l.b16 %v1104
        %v2711 = vunpack.c.h.b16 %v1104
        %v2712 = vunpack.c.l.b16 %v1105
        %v2713 = vunpack.c.h.b16 %v1105
        %v2714 = vunpack.c.l.b16 %v1106
        %v2715 = vunpack.c.h.b16 %v1106
        %v2716 = vunpack.c.l.b16 %v1107
        %v2717 = vunpack.c.h.b16 %v1107
        %v2718 = vunpack.c.l.b16 %v1108
        %v2719 = vunpack.c.h.b16 %v1108
        %v2720 = vunpack.c.l.b16 %v1109
        %v2721 = vunpack.c.h.b16 %v1109
        %v2722 = vunpack.c.l.b16 %v1110
        %v2723 = vunpack.c.h.b16 %v1110
        %v2724 = vunpack.c.l.b16 %v1111
        %v2725 = vunpack.c.h.b16 %v1111
        %v2726 = vunpack.c.l.b16 %v1112
        %v2727 = vunpack.c.h.b16 %v1112
        %v2728 = vunpack.c.l.b16 %v1113
        %v2729 = vunpack.c.h.b16 %v1113
        %v2730 = vpack.c.b16 %v1710, %v1706
        %v2731 = vpack.c.b16 %v1711, %v1707
        %v2732 = vpack.c.b16 %v1712, %v1708
        %v2733 = vpack.c.b16 %v1713, %v1709
        %v2734 = vpack.c.b16 %v1718, %v1714
        %v2735 = vpack.c.b16 %v1719, %v1715
        %v2736 = vpack.c.b16 %v1720, %v1716
        %v2737 = vpack.c.b16 %v1721, %v1717
        %v2738 = vpack.c.b16 %v1726, %v1722
        %v2739 = vpack.c.b16 %v1727, %v1723
        %v2740 = vpack.c.b16 %v1728, %v1724
        %v2741 = vpack.c.b16 %v1729, %v1725
        %v2742 = vpack.c.b16 %v1734, %v1730
        %v2743 = vpack.c.b16 %v1735, %v1731
        %v2744 = vpack.c.b16 %v1736, %v1732
        %v2745 = vpack.c.b16 %v1737, %v1733
        %v2746 = vpack.c.b16 %v1742, %v1738
        %v2747 = vpack.c.b16 %v1743, %v1739
        %v2748 = vpack.c.b16 %v1744, %v1740
        %v2749 = vpack.c.b16 %v1745, %v1741
        %v2750 = vpack.c.b16 %v1750, %v1746
        %v2751 = vpack.c.b16 %v1751, %v1747
        %v2752 = vpack.c.b16 %v1752, %v1748
        %v2753 = vpack.c.b16 %v1753, %v1749
        %v2754 = vpack.c.b16 %v1758, %v1754
        %v2755 = vpack.c.b16 %v1759, %v1755
        %v2756 = vpack.c.b16 %v1760, %v1756
        %v2757 = vpack.c.b16 %v1761, %v1757
        %v2758 = vpack.c.b16 %v1766, %v1762
        %v2759 = vpack.c.b16 %v1767, %v1763
        %v2760 = vpack.c.b16 %v1768, %v1764
        %v2761 = vpack.c.b16 %v1769, %v1765
        %v2762 = vpack.c.b16 %v1774, %v1770
        %v2763 = vpack.c.b16 %v1775, %v1771
        %v2764 = vpack.c.b16 %v1776, %v1772
        %v2765 = vpack.c.b16 %v1777, %v1773
        %v2766 = vpack.c.b16 %v1782, %v1778
        %v2767 = vpack.c.b16 %v1783, %v1779
        %v2768 = vpack.c.b16 %v1784, %v1780
        %v2769 = vpack.c.b16 %v1785, %v1781
        %v2770 = vpack.c.b16 %v1790, %v1786
        %v2771 = vpack.c.b16 %v1791, %v1787
        %v2772 = vpack.c.b16 %v1792, %v1788
        %v2773 = vpack.c.b16 %v1793, %v1789
        %v2774 = vpack.c.b16 %v1798, %v1794
        %v2775 = vpack.c.b16 %v1799, %v1795
        %v2776 = vpack.c.b16 %v1800, %v1796
        %v2777 = vpack.c.b16 %v1801, %v1797
        %v2778 = vpack.c.b16 %v1806, %v1802
        %v2779 = vpack.c.b16 %v1807, %v1803
        %v2780 = vpack.c.b16 %v1808, %v1804
        %v2781 = vpack.c.b16 %v1809, %v1805
        %v2782 = vpack.c.b16 %v1814, %v1810
        %v2783 = vpack.c.b16 %v1815, %v1811
        %v2784 = vpack.c.b16 %v1816, %v1812
        %v2785 = vpack.c.b16 %v1817, %v1813
        %v2786 = vpack.c.b16 %v1822, %v1818
        %v2787 = vpack.c.b16 %v1823, %v1819
        %v2788 = vpack.c.b16 %v1824, %v1820
        %v2789 = vpack.c.b16 %v1825, %v1821
        %v2790 = vpack.c.b16 %v1830, %v1826
        %v2791 = vpack.c.b16 %v1831, %v1827
        %v2792 = vpack.c.b16 %v1832, %v1828
        %v2793 = vpack.c.b16 %v1833, %v1829
        %v2794 = vpack.c.b16 %v1838, %v1834
        %v2795 = vpack.c.b16 %v1839, %v1835
        %v2796 = vpack.c.b16 %v1840, %v1836
        %v2797 = vpack.c.b16 %v1841, %v1837
        %v2798 = vpack.c.b16 %v1846, %v1842
        %v2799 = vpack.c.b16 %v1847, %v1843
        %v2800 = vpack.c.b16 %v1848, %v1844
        %v2801 = vpack.c.b16 %v1849, %v1845
        %v2802 = vpack.c.b16 %v1854, %v1850
        %v2803 = vpack.c.b16 %v1855, %v1851
        %v2804 = vpack.c.b16 %v1856, %v1852
        %v2805 = vpack.c.b16 %v1857, %v1853
        %v2806 = vpack.c.b16 %v1862, %v1858
        %v2807 = vpack.c.b16 %v1863, %v1859
        %v2808 = vpack.c.b16 %v1864, %v1860
        %v2809 = vpack.c.b16 %v1865, %v1861
        %v2810 = vpack.c.b16 %v1870, %v1866
        %v2811 = vpack.c.b16 %v1871, %v1867
        %v2812 = vpack.c.b16 %v1872, %v1868
        %v2813 = vpack.c.b16 %v1873, %v1869
        %v2814 = vpack.c.b16 %v1878, %v1874
        %v2815 = vpack.c.b16 %v1879, %v1875
        %v2816 = vpack.c.b16 %v1880, %v1876
        %v2817 = vpack.c.b16 %v1881, %v1877
        %v2818 = vpack.c.b16 %v1886, %v1882
        %v2819 = vpack.c.b16 %v1887, %v1883
        %v2820 = vpack.c.b16 %v1888, %v1884
        %v2821 = vpack.c.b16 %v1889, %v1885
        %v2822 = vpack.c.b16 %v1894, %v1890
        %v2823 = vpack.c.b16 %v1895, %v1891
        %v2824 = vpack.c.b16 %v1896, %v1892
        %v2825 = vpack.c.b16 %v1897, %v1893
        %v2826 = vpack.c.b16 %v1902, %v1898
        %v2827 = vpack.c.b16 %v1903, %v1899
        %v2828 = vpack.c.b16 %v1904, %v1900
        %v2829 = vpack.c.b16 %v1905, %v1901
        %v2830 = vpack.c.b16 %v1910, %v1906
        %v2831 = vpack.c.b16 %v1911, %v1907
        %v2832 = vpack.c.b16 %v1912, %v1908
        %v2833 = vpack.c.b16 %v1913, %v1909
        %v2834 = vpack.c.b16 %v1918, %v1914
        %v2835 = vpack.c.b16 %v1919, %v1915
        %v2836 = vpack.c.b16 %v1920, %v1916
        %v2837 = vpack.c.b16 %v1921, %v1917
        %v2838 = vpack.c.b16 %v1926, %v1922
        %v2839 = vpack.c.b16 %v1927, %v1923
        %v2840 = vpack.c.b16 %v1928, %v1924
        %v2841 = vpack.c.b16 %v1929, %v1925
        %v2842 = vpack.c.b16 %v1934, %v1930
        %v2843 = vpack.c.b16 %v1935, %v1931
        %v2844 = vpack.c.b16 %v1936, %v1932
        %v2845 = vpack.c.b16 %v1937, %v1933
        %v2846 = vpack.c.b16 %v1942, %v1938
        %v2847 = vpack.c.b16 %v1943, %v1939
        %v2848 = vpack.c.b16 %v1944, %v1940
        %v2849 = vpack.c.b16 %v1945, %v1941
        %v2850 = vpack.c.b16 %v1950, %v1946
        %v2851 = vpack.c.b16 %v1951, %v1947
        %v2852 = vpack.c.b16 %v1952, %v1948
        %v2853 = vpack.c.b16 %v1953, %v1949
        %v2854 = vpack.c.b16 %v1958, %v1954
        %v2855 = vpack.c.b16 %v1959, %v1955
        %v2856 = vpack.c.b16 %v1960, %v1956
        %v2857 = vpack.c.b16 %v1961, %v1957
        %v2858 = vpack.c.b16 %v1966, %v1962
        %v2859 = vpack.c.b16 %v1967, %v1963
        %v2860 = vpack.c.b16 %v1968, %v1964
        %v2861 = vpack.c.b16 %v1969, %v1965
        %v2862 = vpack.c.b16 %v1974, %v1970
        %v2863 = vpack.c.b16 %v1975, %v1971
        %v2864 = vpack.c.b16 %v1976, %v1972
        %v2865 = vpack.c.b16 %v1977, %v1973
        %v2866 = vpack.c.b16 %v1982, %v1978
        %v2867 = vpack.c.b16 %v1983, %v1979
        %v2868 = vpack.c.b16 %v1984, %v1980
        %v2869 = vpack.c.b16 %v1985, %v1981
        %v2870 = vpack.c.b16 %v1990, %v1986
        %v2871 = vpack.c.b16 %v1991, %v1987
        %v2872 = vpack.c.b16 %v1992, %v1988
        %v2873 = vpack.c.b16 %v1993, %v1989
        %v2874 = vpack.c.b16 %v1998, %v1994
        %v2875 = vpack.c.b16 %v1999, %v1995
        %v2876 = vpack.c.b16 %v2000, %v1996
        %v2877 = vpack.c.b16 %v2001, %v1997
        %v2878 = vpack.c.b16 %v2006, %v2002
        %v2879 = vpack.c.b16 %v2007, %v2003
        %v2880 = vpack.c.b16 %v2008, %v2004
        %v2881 = vpack.c.b16 %v2009, %v2005
        %v2882 = vpack.c.b16 %v2014, %v2010
        %v2883 = vpack.c.b16 %v2015, %v2011
        %v2884 = vpack.c.b16 %v2016, %v2012
        %v2885 = vpack.c.b16 %v2017, %v2013
        %v2886 = vpack.c.b16 %v2022, %v2018
        %v2887 = vpack.c.b16 %v2023, %v2019
        %v2888 = vpack.c.b16 %v2024, %v2020
        %v2889 = vpack.c.b16 %v2025, %v2021
        %v2890 = vpack.c.b16 %v2030, %v2026
        %v2891 = vpack.c.b16 %v2031, %v2027
        %v2892 = vpack.c.b16 %v2032, %v2028
        %v2893 = vpack.c.b16 %v2033, %v2029
        %v2894 = vpack.c.b16 %v2038, %v2034
        %v2895 = vpack.c.b16 %v2039, %v2035
        %v2896 = vpack.c.b16 %v2040, %v2036
        %v2897 = vpack.c.b16 %v2041, %v2037
        %v2898 = vpack.c.b16 %v2046, %v2042
        %v2899 = vpack.c.b16 %v2047, %v2043
        %v2900 = vpack.c.b16 %v2048, %v2044
        %v2901 = vpack.c.b16 %v2049, %v2045
        %v2902 = vpack.c.b16 %v2054, %v2050
        %v2903 = vpack.c.b16 %v2055, %v2051
        %v2904 = vpack.c.b16 %v2056, %v2052
        %v2905 = vpack.c.b16 %v2057, %v2053
        %v2906 = vpack.c.b16 %v2062, %v2058
        %v2907 = vpack.c.b16 %v2063, %v2059
        %v2908 = vpack.c.b16 %v2064, %v2060
        %v2909 = vpack.c.b16 %v2065, %v2061
        %v2910 = vpack.c.b16 %v2070, %v2066
        %v2911 = vpack.c.b16 %v2071, %v2067
        %v2912 = vpack.c.b16 %v2072, %v2068
        %v2913 = vpack.c.b16 %v2073, %v2069
        %v2914 = vpack.c.b16 %v2078, %v2074
        %v2915 = vpack.c.b16 %v2079, %v2075
        %v2916 = vpack.c.b16 %v2080, %v2076
        %v2917 = vpack.c.b16 %v2081, %v2077
        %v2918 = vpack.c.b16 %v2086, %v2082
        %v2919 = vpack.c.b16 %v2087, %v2083
        %v2920 = vpack.c.b16 %v2088, %v2084
        %v2921 = vpack.c.b16 %v2089, %v2085
        %v2922 = vpack.c.b16 %v2094, %v2090
        %v2923 = vpack.c.b16 %v2095, %v2091
        %v2924 = vpack.c.b16 %v2096, %v2092
        %v2925 = vpack.c.b16 %v2097, %v2093
        %v2926 = vpack.c.b16 %v2102, %v2098
        %v2927 = vpack.c.b16 %v2103, %v2099
        %v2928 = vpack.c.b16 %v2104, %v2100
        %v2929 = vpack.c.b16 %v2105, %v2101
        %v2930 = vpack.c.b16 %v2110, %v2106
        %v2931 = vpack.c.b16 %v2111, %v2107
        %v2932 = vpack.c.b16 %v2112, %v2108
        %v2933 = vpack.c.b16 %v2113, %v2109
        %v2934 = vpack.c.b16 %v2118, %v2114
        %v2935 = vpack.c.b16 %v2119, %v2115
        %v2936 = vpack.c.b16 %v2120, %v2116
        %v2937 = vpack.c.b16 %v2121, %v2117
        %v2938 = vpack.c.b16 %v2126, %v2122
        %v2939 = vpack.c.b16 %v2127, %v2123
        %v2940 = vpack.c.b16 %v2128, %v2124
        %v2941 = vpack.c.b16 %v2129, %v2125
        %v2942 = vpack.c.b16 %v2134, %v2130
        %v2943 = vpack.c.b16 %v2135, %v2131
        %v2944 = vpack.c.b16 %v2136, %v2132
        %v2945 = vpack.c.b16 %v2137, %v2133
        %v2946 = vpack.c.b16 %v2142, %v2138
        %v2947 = vpack.c.b16 %v2143, %v2139
        %v2948 = vpack.c.b16 %v2144, %v2140
        %v2949 = vpack.c.b16 %v2145, %v2141
        %v2950 = vpack.c.b16 %v2150, %v2146
        %v2951 = vpack.c.b16 %v2151, %v2147
        %v2952 = vpack.c.b16 %v2152, %v2148
        %v2953 = vpack.c.b16 %v2153, %v2149
        %v2954 = vpack.c.b16 %v2158, %v2154
        %v2955 = vpack.c.b16 %v2159, %v2155
        %v2956 = vpack.c.b16 %v2160, %v2156
        %v2957 = vpack.c.b16 %v2161, %v2157
        %v2958 = vpack.c.b16 %v2166, %v2162
        %v2959 = vpack.c.b16 %v2167, %v2163
        %v2960 = vpack.c.b16 %v2168, %v2164
        %v2961 = vpack.c.b16 %v2169, %v2165
        %v2962 = vpack.c.b16 %v2174, %v2170
        %v2963 = vpack.c.b16 %v2175, %v2171
        %v2964 = vpack.c.b16 %v2176, %v2172
        %v2965 = vpack.c.b16 %v2177, %v2173
        %v2966 = vpack.c.b16 %v2182, %v2178
        %v2967 = vpack.c.b16 %v2183, %v2179
        %v2968 = vpack.c.b16 %v2184, %v2180
        %v2969 = vpack.c.b16 %v2185, %v2181
        %v2970 = vpack.c.b16 %v2190, %v2186
        %v2971 = vpack.c.b16 %v2191, %v2187
        %v2972 = vpack.c.b16 %v2192, %v2188
        %v2973 = vpack.c.b16 %v2193, %v2189
        %v2974 = vpack.c.b16 %v2198, %v2194
        %v2975 = vpack.c.b16 %v2199, %v2195
        %v2976 = vpack.c.b16 %v2200, %v2196
        %v2977 = vpack.c.b16 %v2201, %v2197
        %v2978 = vpack.c.b16 %v2206, %v2202
        %v2979 = vpack.c.b16 %v2207, %v2203
        %v2980 = vpack.c.b16 %v2208, %v2204
        %v2981 = vpack.c.b16 %v2209, %v2205
        %v2982 = vpack.c.b16 %v2214, %v2210
        %v2983 = vpack.c.b16 %v2215, %v2211
        %v2984 = vpack.c.b16 %v2216, %v2212
        %v2985 = vpack.c.b16 %v2217, %v2213
        %v2986 = vpack.c.b16 %v2222, %v2218
        %v2987 = vpack.c.b16 %v2223, %v2219
        %v2988 = vpack.c.b16 %v2224, %v2220
        %v2989 = vpack.c.b16 %v2225, %v2221
        %v2990 = vpack.c.b16 %v2230, %v2226
        %v2991 = vpack.c.b16 %v2231, %v2227
        %v2992 = vpack.c.b16 %v2232, %v2228
        %v2993 = vpack.c.b16 %v2233, %v2229
        %v2994 = vpack.c.b16 %v2238, %v2234
        %v2995 = vpack.c.b16 %v2239, %v2235
        %v2996 = vpack.c.b16 %v2240, %v2236
        %v2997 = vpack.c.b16 %v2241, %v2237
        %v2998 = vpack.c.b16 %v2246, %v2242
        %v2999 = vpack.c.b16 %v2247, %v2243
        %v3000 = vpack.c.b16 %v2248, %v2244
        %v3001 = vpack.c.b16 %v2249, %v2245
        %v3002 = vpack.c.b16 %v2254, %v2250
        %v3003 = vpack.c.b16 %v2255, %v2251
        %v3004 = vpack.c.b16 %v2256, %v2252
        %v3005 = vpack.c.b16 %v2257, %v2253
        %v3006 = vpack.c.b16 %v2262, %v2258
        %v3007 = vpack.c.b16 %v2263, %v2259
        %v3008 = vpack.c.b16 %v2264, %v2260
        %v3009 = vpack.c.b16 %v2265, %v2261
        %v3010 = vpack.c.b16 %v2270, %v2266
        %v3011 = vpack.c.b16 %v2271, %v2267
        %v3012 = vpack.c.b16 %v2272, %v2268
        %v3013 = vpack.c.b16 %v2273, %v2269
        %v3014 = vpack.c.b16 %v2278, %v2274
        %v3015 = vpack.c.b16 %v2279, %v2275
        %v3016 = vpack.c.b16 %v2280, %v2276
        %v3017 = vpack.c.b16 %v2281, %v2277
        %v3018 = vpack.c.b16 %v2286, %v2282
        %v3019 = vpack.c.b16 %v2287, %v2283
        %v3020 = vpack.c.b16 %v2288, %v2284
        %v3021 = vpack.c.b16 %v2289, %v2285
        %v3022 = vpack.c.b16 %v2294, %v2290
        %v3023 = vpack.c.b16 %v2295, %v2291
        %v3024 = vpack.c.b16 %v2296, %v2292
        %v3025 = vpack.c.b16 %v2297, %v2293
        %v3026 = vpack.c.b16 %v2302, %v2298
        %v3027 = vpack.c.b16 %v2303, %v2299
        %v3028 = vpack.c.b16 %v2304, %v2300
        %v3029 = vpack.c.b16 %v2305, %v2301
        %v3030 = vpack.c.b16 %v2310, %v2306
        %v3031 = vpack.c.b16 %v2311, %v2307
        %v3032 = vpack.c.b16 %v2312, %v2308
        %v3033 = vpack.c.b16 %v2313, %v2309
        %v3034 = vpack.c.b16 %v2318, %v2314
        %v3035 = vpack.c.b16 %v2319, %v2315
        %v3036 = vpack.c.b16 %v2320, %v2316
        %v3037 = vpack.c.b16 %v2321, %v2317
        %v3038 = vpack.c.b16 %v2326, %v2322
        %v3039 = vpack.c.b16 %v2327, %v2323
        %v3040 = vpack.c.b16 %v2328, %v2324
        %v3041 = vpack.c.b16 %v2329, %v2325
        %v3042 = vpack.c.b16 %v2334, %v2330
        %v3043 = vpack.c.b16 %v2335, %v2331
        %v3044 = vpack.c.b16 %v2336, %v2332
        %v3045 = vpack.c.b16 %v2337, %v2333
        %v3046 = vpack.c.b16 %v2342, %v2338
        %v3047 = vpack.c.b16 %v2343, %v2339
        %v3048 = vpack.c.b16 %v2344, %v2340
        %v3049 = vpack.c.b16 %v2345, %v2341
        %v3050 = vpack.c.b16 %v2350, %v2346
        %v3051 = vpack.c.b16 %v2351, %v2347
        %v3052 = vpack.c.b16 %v2352, %v2348
        %v3053 = vpack.c.b16 %v2353, %v2349
        %v3054 = vpack.c.b16 %v2358, %v2354
        %v3055 = vpack.c.b16 %v2359, %v2355
        %v3056 = vpack.c.b16 %v2360, %v2356
        %v3057 = vpack.c.b16 %v2361, %v2357
        %v3058 = vpack.c.b16 %v2366, %v2362
        %v3059 = vpack.c.b16 %v2367, %v2363
        %v3060 = vpack.c.b16 %v2368, %v2364
        %v3061 = vpack.c.b16 %v2369, %v2365
        %v3062 = vpack.c.b16 %v2374, %v2370
        %v3063 = vpack.c.b16 %v2375, %v2371
        %v3064 = vpack.c.b16 %v2376, %v2372
        %v3065 = vpack.c.b16 %v2377, %v2373
        %v3066 = vpack.c.b16 %v2382, %v2378
        %v3067 = vpack.c.b16 %v2383, %v2379
        %v3068 = vpack.c.b16 %v2384, %v2380
        %v3069 = vpack.c.b16 %v2385, %v2381
        %v3070 = vpack.c.b16 %v2390, %v2386
        %v3071 = vpack.c.b16 %v2391, %v2387
        %v3072 = vpack.c.b16 %v2392, %v2388
        %v3073 = vpack.c.b16 %v2393, %v2389
        %v3074 = vpack.c.b16 %v2398, %v2394
        %v3075 = vpack.c.b16 %v2399, %v2395
        %v3076 = vpack.c.b16 %v2400, %v2396
        %v3077 = vpack.c.b16 %v2401, %v2397
        %v3078 = vpack.c.b16 %v2406, %v2402
        %v3079 = vpack.c.b16 %v2407, %v2403
        %v3080 = vpack.c.b16 %v2408, %v2404
        %v3081 = vpack.c.b16 %v2409, %v2405
        %v3082 = vpack.c.b16 %v2414, %v2410
        %v3083 = vpack.c.b16 %v2415, %v2411
        %v3084 = vpack.c.b16 %v2416, %v2412
        %v3085 = vpack.c.b16 %v2417, %v2413
        %v3086 = vpack.c.b16 %v2422, %v2418
        %v3087 = vpack.c.b16 %v2423, %v2419
        %v3088 = vpack.c.b16 %v2424, %v2420
        %v3089 = vpack.c.b16 %v2425, %v2421
        %v3090 = vpack.c.b16 %v2430, %v2426
        %v3091 = vpack.c.b16 %v2431, %v2427
        %v3092 = vpack.c.b16 %v2432, %v2428
        %v3093 = vpack.c.b16 %v2433, %v2429
        %v3094 = vpack.c.b16 %v2438, %v2434
        %v3095 = vpack.c.b16 %v2439, %v2435
        %v3096 = vpack.c.b16 %v2440, %v2436
        %v3097 = vpack.c.b16 %v2441, %v2437
        %v3098 = vpack.c.b16 %v2446, %v2442
        %v3099 = vpack.c.b16 %v2447, %v2443
        %v3100 = vpack.c.b16 %v2448, %v2444
        %v3101 = vpack.c.b16 %v2449, %v2445
        %v3102 = vpack.c.b16 %v2454, %v2450
        %v3103 = vpack.c.b16 %v2455, %v2451
        %v3104 = vpack.c.b16 %v2456, %v2452
        %v3105 = vpack.c.b16 %v2457, %v2453
        %v3106 = vpack.c.b16 %v2462, %v2458
        %v3107 = vpack.c.b16 %v2463, %v2459
        %v3108 = vpack.c.b16 %v2464, %v2460
        %v3109 = vpack.c.b16 %v2465, %v2461
        %v3110 = vpack.c.b16 %v2470, %v2466
        %v3111 = vpack.c.b16 %v2471, %v2467
        %v3112 = vpack.c.b16 %v2472, %v2468
        %v3113 = vpack.c.b16 %v2473, %v2469
        %v3114 = vpack.c.b16 %v2478, %v2474
        %v3115 = vpack.c.b16 %v2479, %v2475
        %v3116 = vpack.c.b16 %v2480, %v2476
        %v3117 = vpack.c.b16 %v2481, %v2477
        %v3118 = vpack.c.b16 %v2486, %v2482
        %v3119 = vpack.c.b16 %v2487, %v2483
        %v3120 = vpack.c.b16 %v2488, %v2484
        %v3121 = vpack.c.b16 %v2489, %v2485
        %v3122 = vpack.c.b16 %v2494, %v2490
        %v3123 = vpack.c.b16 %v2495, %v2491
        %v3124 = vpack.c.b16 %v2496, %v2492
        %v3125 = vpack.c.b16 %v2497, %v2493
        %v3126 = vpack.c.b16 %v2502, %v2498
        %v3127 = vpack.c.b16 %v2503, %v2499
        %v3128 = vpack.c.b16 %v2504, %v2500
        %v3129 = vpack.c.b16 %v2505, %v2501
        %v3130 = vpack.c.b16 %v2510, %v2506
        %v3131 = vpack.c.b16 %v2511, %v2507
        %v3132 = vpack.c.b16 %v2512, %v2508
        %v3133 = vpack.c.b16 %v2513, %v2509
        %v3134 = vpack.c.b16 %v2518, %v2514
        %v3135 = vpack.c.b16 %v2519, %v2515
        %v3136 = vpack.c.b16 %v2520, %v2516
        %v3137 = vpack.c.b16 %v2521, %v2517
        %v3138 = vpack.c.b16 %v2526, %v2522
        %v3139 = vpack.c.b16 %v2527, %v2523
        %v3140 = vpack.c.b16 %v2528, %v2524
        %v3141 = vpack.c.b16 %v2529, %v2525
        %v3142 = vpack.c.b16 %v2534, %v2530
        %v3143 = vpack.c.b16 %v2535, %v2531
        %v3144 = vpack.c.b16 %v2536, %v2532
        %v3145 = vpack.c.b16 %v2537, %v2533
        %v3146 = vpack.c.b16 %v2542, %v2538
        %v3147 = vpack.c.b16 %v2543, %v2539
        %v3148 = vpack.c.b16 %v2544, %v2540
        %v3149 = vpack.c.b16 %v2545, %v2541
        %v3150 = vpack.c.b16 %v2550, %v2546
        %v3151 = vpack.c.b16 %v2551, %v2547
        %v3152 = vpack.c.b16 %v2552, %v2548
        %v3153 = vpack.c.b16 %v2553, %v2549
        %v3154 = vpack.c.b16 %v2558, %v2554
        %v3155 = vpack.c.b16 %v2559, %v2555
        %v3156 = vpack.c.b16 %v2560, %v2556
        %v3157 = vpack.c.b16 %v2561, %v2557
        %v3158 = vpack.c.b16 %v2566, %v2562
        %v3159 = vpack.c.b16 %v2567, %v2563
        %v3160 = vpack.c.b16 %v2568, %v2564
        %v3161 = vpack.c.b16 %v2569, %v2565
        %v3162 = vpack.c.b16 %v2574, %v2570
        %v3163 = vpack.c.b16 %v2575, %v2571
        %v3164 = vpack.c.b16 %v2576, %v2572
        %v3165 = vpack.c.b16 %v2577, %v2573
        %v3166 = vpack.c.b16 %v2582, %v2578
        %v3167 = vpack.c.b16 %v2583, %v2579
        %v3168 = vpack.c.b16 %v2584, %v2580
        %v3169 = vpack.c.b16 %v2585, %v2581
        %v3170 = vpack.c.b16 %v2590, %v2586
        %v3171 = vpack.c.b16 %v2591, %v2587
        %v3172 = vpack.c.b16 %v2592, %v2588
        %v3173 = vpack.c.b16 %v2593, %v2589
        %v3174 = vpack.c.b16 %v2598, %v2594
        %v3175 = vpack.c.b16 %v2599, %v2595
        %v3176 = vpack.c.b16 %v2600, %v2596
        %v3177 = vpack.c.b16 %v2601, %v2597
        %v3178 = vpack.c.b16 %v2606, %v2602
        %v3179 = vpack.c.b16 %v2607, %v2603
        %v3180 = vpack.c.b16 %v2608, %v2604
        %v3181 = vpack.c.b16 %v2609, %v2605
        %v3182 = vpack.c.b16 %v2614, %v2610
        %v3183 = vpack.c.b16 %v2615, %v2611
        %v3184 = vpack.c.b16 %v2616, %v2612
        %v3185 = vpack.c.b16 %v2617, %v2613
        %v3186 = vpack.c.b16 %v2622, %v2618
        %v3187 = vpack.c.b16 %v2623, %v2619
        %v3188 = vpack.c.b16 %v2624, %v2620
        %v3189 = vpack.c.b16 %v2625, %v2621
        %v3190 = vpack.c.b16 %v2630, %v2626
        %v3191 = vpack.c.b16 %v2631, %v2627
        %v3192 = vpack.c.b16 %v2632, %v2628
        %v3193 = vpack.c.b16 %v2633, %v2629
        %v3194 = vpack.c.b16 %v2638, %v2634
        %v3195 = vpack.c.b16 %v2639, %v2635
        %v3196 = vpack.c.b16 %v2640, %v2636
        %v3197 = vpack.c.b16 %v2641, %v2637
        %v3198 = vpack.c.b16 %v2646, %v2642
        %v3199 = vpack.c.b16 %v2647, %v2643
        %v3200 = vpack.c.b16 %v2648, %v2644
        %v3201 = vpack.c.b16 %v2649, %v2645
        %v3202 = vpack.c.b16 %v2654, %v2650
        %v3203 = vpack.c.b16 %v2655, %v2651
        %v3204 = vpack.c.b16 %v2656, %v2652
        %v3205 = vpack.c.b16 %v2657, %v2653
        %v3206 = vpack.c.b16 %v2662, %v2658
        %v3207 = vpack.c.b16 %v2663, %v2659
        %v3208 = vpack.c.b16 %v2664, %v2660
        %v3209 = vpack.c.b16 %v2665, %v2661
        %v3210 = vpack.c.b16 %v2670, %v2666
        %v3211 = vpack.c.b16 %v2671, %v2667
        %v3212 = vpack.c.b16 %v2672, %v2668
        %v3213 = vpack.c.b16 %v2673, %v2669
        %v3214 = vpack.c.b16 %v2678, %v2674
        %v3215 = vpack.c.b16 %v2679, %v2675
        %v3216 = vpack.c.b16 %v2680, %v2676
        %v3217 = vpack.c.b16 %v2681, %v2677
        %v3218 = vpack.c.b16 %v2686, %v2682
        %v3219 = vpack.c.b16 %v2687, %v2683
        %v3220 = vpack.c.b16 %v2688, %v2684
        %v3221 = vpack.c.b16 %v2689, %v2685
        %v3222 = vpack.c.b16 %v2694, %v2690
        %v3223 = vpack.c.b16 %v2695, %v2691
        %v3224 = vpack.c.b16 %v2696, %v2692
        %v3225 = vpack.c.b16 %v2697, %v2693
        %v3226 = vpack.c.b16 %v2702, %v2698
        %v3227 = vpack.c.b16 %v2703, %v2699
        %v3228 = vpack.c.b16 %v2704, %v2700
        %v3229 = vpack.c.b16 %v2705, %v2701
        %v3230 = vpack.c.b16 %v2710, %v2706
        %v3231 = vpack.c.b16 %v2711, %v2707
        %v3232 = vpack.c.b16 %v2712, %v2708
        %v3233 = vpack.c.b16 %v2713, %v2709
        %v3234 = vpack.c.b16 %v2718, %v2714
        %v3235 = vpack.c.b16 %v2719, %v2715
        %v3236 = vpack.c.b16 %v2720, %v2716
        %v3237 = vpack.c.b16 %v2721, %v2717
        %v3238 = vpack.c.b16 %v2726, %v2722
        %v3239 = vpack.c.b16 %v2727, %v2723
        %v3240 = vpack.c.b16 %v2728, %v2724
        %v3241 = vpack.c.b16 %v2729, %v2725
        %3754 = vmatprep.subr.bf16.mxu0 %v2731
        %3755 = vmatpush1.bf16.msra.mxu0 %v2730
        %3756 = vmatprep.subr.bf16.mxu0 %v2735
        %3757 = vmatpush1.bf16.msra.mxu0 %v2734
        %3758 = vmatprep.subr.bf16.mxu0 %v2739
        %3759 = vmatpush1.bf16.msra.mxu0 %v2738
        %3760 = vmatprep.subr.bf16.mxu0 %v2743
        %3761 = vmatpush1.bf16.msra.mxu0 %v2742
        %3762 = vmatprep.subr.bf16.mxu0 %v2747
        %3763 = vmatpush1.bf16.msra.mxu0 %v2746
        %3764 = vmatprep.subr.bf16.mxu0 %v2751
        %3765 = vmatpush1.bf16.msra.mxu0 %v2750
        %3766 = vmatprep.subr.bf16.mxu0 %v2755
        %3767 = vmatpush1.bf16.msra.mxu0 %v2754
        %3768 = vmatprep.subr.bf16.mxu0 %v2759
        %3769 = vmatpush1.bf16.msra.mxu0 %v2758
        %3770 = vmatprep.subr.bf16.mxu0 %v2763
        %3771 = vmatpush1.bf16.msra.mxu0 %v2762
        %3772 = vmatprep.subr.bf16.mxu0 %v2767
        %3773 = vmatpush1.bf16.msra.mxu0 %v2766
        %3774 = vmatprep.subr.bf16.mxu0 %v2771
        %3775 = vmatpush1.bf16.msra.mxu0 %v2770
        %3776 = vmatprep.subr.bf16.mxu0 %v2775
        %3777 = vmatpush1.bf16.msra.mxu0 %v2774
        %3778 = vmatprep.subr.bf16.mxu0 %v2779
        %3779 = vmatpush1.bf16.msra.mxu0 %v2778
        %3780 = vmatprep.subr.bf16.mxu0 %v2783
        %3781 = vmatpush1.bf16.msra.mxu0 %v2782
        %3782 = vmatprep.subr.bf16.mxu0 %v2787
        %3783 = vmatpush1.bf16.msra.mxu0 %v2786
        %3784 = vmatprep.subr.bf16.mxu0 %v2791
        %3785 = vmatpush1.bf16.msra.mxu0 %v2790
        %3786 = vmatprep.mubr.bf16.mxu0 %v1163
        %3787 = vmatmul.mubr.bf16.gmra.mrb[0].mxu0 %v1162
        %v3788 = vpop.f32.mrb[0].mxu0
        %v3789 = vadd.f32 0.0, %v3788
        %v3790 = vpop.f32.mrb[0].mxu0
        %v3791 = vadd.f32 0.0, %v3790
        %v3792 = vpop.f32.mrb[0].mxu0
        %v3793 = vadd.f32 0.0, %v3792
        %v3794 = vpop.f32.mrb[0].mxu0
        %v3795 = vadd.f32 0.0, %v3794
        %3796 = vdwg.mxu0
        %3797 = vmatprep.subr.bf16.mxu0 %v2795
        %3798 = vmatpush1.bf16.msra.mxu0 %v2794
        %3799 = vmatprep.subr.bf16.mxu0 %v2799
        %3800 = vmatpush1.bf16.msra.mxu0 %v2798
        %3801 = vmatprep.subr.bf16.mxu0 %v2803
        %3802 = vmatpush1.bf16.msra.mxu0 %v2802
        %3803 = vmatprep.subr.bf16.mxu0 %v2807
        %3804 = vmatpush1.bf16.msra.mxu0 %v2806
        %3805 = vmatprep.subr.bf16.mxu0 %v2811
        %3806 = vmatpush1.bf16.msra.mxu0 %v2810
        %3807 = vmatprep.subr.bf16.mxu0 %v2815
        %3808 = vmatpush1.bf16.msra.mxu0 %v2814
        %3809 = vmatprep.subr.bf16.mxu0 %v2819
        %3810 = vmatpush1.bf16.msra.mxu0 %v2818
        %3811 = vmatprep.subr.bf16.mxu0 %v2823
        %3812 = vmatpush1.bf16.msra.mxu0 %v2822
        %3813 = vmatprep.subr.bf16.mxu0 %v2827
        %3814 = vmatpush1.bf16.msra.mxu0 %v2826
        %3815 = vmatprep.subr.bf16.mxu0 %v2831
        %3816 = vmatpush1.bf16.msra.mxu0 %v2830
        %3817 = vmatprep.subr.bf16.mxu0 %v2835
        %3818 = vmatpush1.bf16.msra.mxu0 %v2834
        %3819 = vmatprep.subr.bf16.mxu0 %v2839
        %3820 = vmatpush1.bf16.msra.mxu0 %v2838
        %3821 = vmatprep.subr.bf16.mxu0 %v2843
        %3822 = vmatpush1.bf16.msra.mxu0 %v2842
        %3823 = vmatprep.subr.bf16.mxu0 %v2847
        %3824 = vmatpush1.bf16.msra.mxu0 %v2846
        %3825 = vmatprep.subr.bf16.mxu0 %v2851
        %3826 = vmatpush1.bf16.msra.mxu0 %v2850
        %3827 = vmatprep.subr.bf16.mxu0 %v2855
        %3828 = vmatpush1.bf16.msra.mxu0 %v2854
        %3829 = vmatprep.mubr.bf16.mxu0 %v1165
        %3830 = vmatmul.mubr.bf16.gmra.mrb[0].mxu0 %v1164
        %v3831 = vpop.f32.mrb[0].mxu0
        %v3832 = vadd.f32 %v3789, %v3831
        %v3833 = vpop.f32.mrb[0].mxu0
        %v3834 = vadd.f32 %v3791, %v3833
        %v3835 = vpop.f32.mrb[0].mxu0
        %v3836 = vadd.f32 %v3793, %v3835
        %v3837 = vpop.f32.mrb[0].mxu0
        %v3838 = vadd.f32 %v3795, %v3837
        %3839 = vdwg.mxu0
        %3840 = vmatprep.subr.bf16.mxu0 %v2859
        %3841 = vmatpush1.bf16.msra.mxu0 %v2858
        %3842 = vmatprep.subr.bf16.mxu0 %v2863
        %3843 = vmatpush1.bf16.msra.mxu0 %v2862
        %3844 = vmatprep.subr.bf16.mxu0 %v2867
        %3845 = vmatpush1.bf16.msra.mxu0 %v2866
        %3846 = vmatprep.subr.bf16.mxu0 %v2871
        %3847 = vmatpush1.bf16.msra.mxu0 %v2870
        %3848 = vmatprep.subr.bf16.mxu0 %v2875
        %3849 = vmatpush1.bf16.msra.mxu0 %v2874
        %3850 = vmatprep.subr.bf16.mxu0 %v2879
        %3851 = vmatpush1.bf16.msra.mxu0 %v2878
        %3852 = vmatprep.subr.bf16.mxu0 %v2883
        %3853 = vmatpush1.bf16.msra.mxu0 %v2882
        %3854 = vmatprep.subr.bf16.mxu0 %v2887
        %3855 = vmatpush1.bf16.msra.mxu0 %v2886
        %3856 = vmatprep.subr.bf16.mxu0 %v2891
        %3857 = vmatpush1.bf16.msra.mxu0 %v2890
        %3858 = vmatprep.subr.bf16.mxu0 %v2895
        %3859 = vmatpush1.bf16.msra.mxu0 %v2894
        %3860 = vmatprep.subr.bf16.mxu0 %v2899
        %3861 = vmatpush1.bf16.msra.mxu0 %v2898
        %3862 = vmatprep.subr.bf16.mxu0 %v2903
        %3863 = vmatpush1.bf16.msra.mxu0 %v2902
        %3864 = vmatprep.subr.bf16.mxu0 %v2907
        %3865 = vmatpush1.bf16.msra.mxu0 %v2906
        %3866 = vmatprep.subr.bf16.mxu0 %v2911
        %3867 = vmatpush1.bf16.msra.mxu0 %v2910
        %3868 = vmatprep.subr.bf16.mxu0 %v2915
        %3869 = vmatpush1.bf16.msra.mxu0 %v2914
        %3870 = vmatprep.subr.bf16.mxu0 %v2919
        %3871 = vmatpush1.bf16.msra.mxu0 %v2918
        %3872 = vmatprep.mubr.bf16.mxu0 %v1167
        %3873 = vmatmul.mubr.bf16.gmra.mrb[0].mxu0 %v1166
        %v3874 = vpop.f32.mrb[0].mxu0
        %v3875 = vadd.f32 %v3832, %v3874
        %v3876 = vpop.f32.mrb[0].mxu0
        %v3877 = vadd.f32 %v3834, %v3876
        %v3878 = vpop.f32.mrb[0].mxu0
        %v3879 = vadd.f32 %v3836, %v3878
        %v3880 = vpop.f32.mrb[0].mxu0
        %v3881 = vadd.f32 %v3838, %v3880
        %3882 = vdwg.mxu0
        %3883 = vmatprep.subr.bf16.mxu0 %v2923
        %3884 = vmatpush1.bf16.msra.mxu0 %v2922
        %3885 = vmatprep.subr.bf16.mxu0 %v2927
        %3886 = vmatpush1.bf16.msra.mxu0 %v2926
        %3887 = vmatprep.subr.bf16.mxu0 %v2931
        %3888 = vmatpush1.bf16.msra.mxu0 %v2930
        %3889 = vmatprep.subr.bf16.mxu0 %v2935
        %3890 = vmatpush1.bf16.msra.mxu0 %v2934
        %3891 = vmatprep.subr.bf16.mxu0 %v2939
        %3892 = vmatpush1.bf16.msra.mxu0 %v2938
        %3893 = vmatprep.subr.bf16.mxu0 %v2943
        %3894 = vmatpush1.bf16.msra.mxu0 %v2942
        %3895 = vmatprep.subr.bf16.mxu0 %v2947
        %3896 = vmatpush1.bf16.msra.mxu0 %v2946
        %3897 = vmatprep.subr.bf16.mxu0 %v2951
        %3898 = vmatpush1.bf16.msra.mxu0 %v2950
        %3899 = vmatprep.subr.bf16.mxu0 %v2955
        %3900 = vmatpush1.bf16.msra.mxu0 %v2954
        %3901 = vmatprep.subr.bf16.mxu0 %v2959
        %3902 = vmatpush1.bf16.msra.mxu0 %v2958
        %3903 = vmatprep.subr.bf16.mxu0 %v2963
        %3904 = vmatpush1.bf16.msra.mxu0 %v2962
        %3905 = vmatprep.subr.bf16.mxu0 %v2967
        %3906 = vmatpush1.bf16.msra.mxu0 %v2966
        %3907 = vmatprep.subr.bf16.mxu0 %v2971
        %3908 = vmatpush1.bf16.msra.mxu0 %v2970
        %3909 = vmatprep.subr.bf16.mxu0 %v2975
        %3910 = vmatpush1.bf16.msra.mxu0 %v2974
        %3911 = vmatprep.subr.bf16.mxu0 %v2979
        %3912 = vmatpush1.bf16.msra.mxu0 %v2978
        %3913 = vmatprep.subr.bf16.mxu0 %v2983
        %3914 = vmatpush1.bf16.msra.mxu0 %v2982
        %3915 = vmatprep.mubr.bf16.mxu0 %v1169
        %3916 = vmatmul.mubr.bf16.gmra.mrb[0].mxu0 %v1168
        %v3917 = vpop.f32.mrb[0].mxu0
        %v3918 = vadd.f32 %v3875, %v3917
        %v3919 = vpop.f32.mrb[0].mxu0
        %v3920 = vadd.f32 %v3877, %v3919
        %v3921 = vpop.f32.mrb[0].mxu0
        %v3922 = vadd.f32 %v3879, %v3921
        %v3923 = vpop.f32.mrb[0].mxu0
        %v3924 = vadd.f32 %v3881, %v3923
        %3925 = vdwg.mxu0
        %3926 = vmatprep.subr.bf16.mxu0 %v2987
        %3927 = vmatpush1.bf16.msra.mxu0 %v2986
        %3928 = vmatprep.subr.bf16.mxu0 %v2991
        %3929 = vmatpush1.bf16.msra.mxu0 %v2990
        %3930 = vmatprep.subr.bf16.mxu0 %v2995
        %3931 = vmatpush1.bf16.msra.mxu0 %v2994
        %3932 = vmatprep.subr.bf16.mxu0 %v2999
        %3933 = vmatpush1.bf16.msra.mxu0 %v2998
        %3934 = vmatprep.subr.bf16.mxu0 %v3003
        %3935 = vmatpush1.bf16.msra.mxu0 %v3002
        %3936 = vmatprep.subr.bf16.mxu0 %v3007
        %3937 = vmatpush1.bf16.msra.mxu0 %v3006
        %3938 = vmatprep.subr.bf16.mxu0 %v3011
        %3939 = vmatpush1.bf16.msra.mxu0 %v3010
        %3940 = vmatprep.subr.bf16.mxu0 %v3015
        %3941 = vmatpush1.bf16.msra.mxu0 %v3014
        %3942 = vmatprep.subr.bf16.mxu0 %v3019
        %3943 = vmatpush1.bf16.msra.mxu0 %v3018
        %3944 = vmatprep.subr.bf16.mxu0 %v3023
        %3945 = vmatpush1.bf16.msra.mxu0 %v3022
        %3946 = vmatprep.subr.bf16.mxu0 %v3027
        %3947 = vmatpush1.bf16.msra.mxu0 %v3026
        %3948 = vmatprep.subr.bf16.mxu0 %v3031
        %3949 = vmatpush1.bf16.msra.mxu0 %v3030
        %3950 = vmatprep.subr.bf16.mxu0 %v3035
        %3951 = vmatpush1.bf16.msra.mxu0 %v3034
        %3952 = vmatprep.subr.bf16.mxu0 %v3039
        %3953 = vmatpush1.bf16.msra.mxu0 %v3038
        %3954 = vmatprep.subr.bf16.mxu0 %v3043
        %3955 = vmatpush1.bf16.msra.mxu0 %v3042
        %3956 = vmatprep.subr.bf16.mxu0 %v3047
        %3957 = vmatpush1.bf16.msra.mxu0 %v3046
        %3958 = vmatprep.mubr.bf16.mxu0 %v1171
        %3959 = vmatmul.mubr.bf16.gmra.mrb[0].mxu0 %v1170
        %v3960 = vpop.f32.mrb[0].mxu0
        %v3961 = vadd.f32 %v3918, %v3960
        %v3962 = vpop.f32.mrb[0].mxu0
        %v3963 = vadd.f32 %v3920, %v3962
        %v3964 = vpop.f32.mrb[0].mxu0
        %v3965 = vadd.f32 %v3922, %v3964
        %v3966 = vpop.f32.mrb[0].mxu0
        %v3967 = vadd.f32 %v3924, %v3966
        %3968 = vdwg.mxu0
        %3969 = vmatprep.subr.bf16.mxu0 %v3051
        %3970 = vmatpush1.bf16.msra.mxu0 %v3050
        %3971 = vmatprep.subr.bf16.mxu0 %v3055
        %3972 = vmatpush1.bf16.msra.mxu0 %v3054
        %3973 = vmatprep.subr.bf16.mxu0 %v3059
        %3974 = vmatpush1.bf16.msra.mxu0 %v3058
        %3975 = vmatprep.subr.bf16.mxu0 %v3063
        %3976 = vmatpush1.bf16.msra.mxu0 %v3062
        %3977 = vmatprep.subr.bf16.mxu0 %v3067
        %3978 = vmatpush1.bf16.msra.mxu0 %v3066
        %3979 = vmatprep.subr.bf16.mxu0 %v3071
        %3980 = vmatpush1.bf16.msra.mxu0 %v3070
        %3981 = vmatprep.subr.bf16.mxu0 %v3075
        %3982 = vmatpush1.bf16.msra.mxu0 %v3074
        %3983 = vmatprep.subr.bf16.mxu0 %v3079
        %3984 = vmatpush1.bf16.msra.mxu0 %v3078
        %3985 = vmatprep.subr.bf16.mxu0 %v3083
        %3986 = vmatpush1.bf16.msra.mxu0 %v3082
        %3987 = vmatprep.subr.bf16.mxu0 %v3087
        %3988 = vmatpush1.bf16.msra.mxu0 %v3086
        %3989 = vmatprep.subr.bf16.mxu0 %v3091
        %3990 = vmatpush1.bf16.msra.mxu0 %v3090
        %3991 = vmatprep.subr.bf16.mxu0 %v3095
        %3992 = vmatpush1.bf16.msra.mxu0 %v3094
        %3993 = vmatprep.subr.bf16.mxu0 %v3099
        %3994 = vmatpush1.bf16.msra.mxu0 %v3098
        %3995 = vmatprep.subr.bf16.mxu0 %v3103
        %3996 = vmatpush1.bf16.msra.mxu0 %v3102
        %3997 = vmatprep.subr.bf16.mxu0 %v3107
        %3998 = vmatpush1.bf16.msra.mxu0 %v3106
        %3999 = vmatprep.subr.bf16.mxu0 %v3111
        %4000 = vmatpush1.bf16.msra.mxu0 %v3110
        %4001 = vmatprep.mubr.bf16.mxu0 %v1173
        %4002 = vmatmul.mubr.bf16.gmra.mrb[0].mxu0 %v1172
        %v4003 = vpop.f32.mrb[0].mxu0
        %v4004 = vadd.f32 %v3961, %v4003
        %v4005 = vpop.f32.mrb[0].mxu0
        %v4006 = vadd.f32 %v3963, %v4005
        %v4007 = vpop.f32.mrb[0].mxu0
        %v4008 = vadd.f32 %v3965, %v4007
        %v4009 = vpop.f32.mrb[0].mxu0
        %v4010 = vadd.f32 %v3967, %v4009
        %4011 = vdwg.mxu0
        %4012 = vmatprep.subr.bf16.mxu0 %v3115
        %4013 = vmatpush1.bf16.msra.mxu0 %v3114
        %4014 = vmatprep.subr.bf16.mxu0 %v3119
        %4015 = vmatpush1.bf16.msra.mxu0 %v3118
        %4016 = vmatprep.subr.bf16.mxu0 %v3123
        %4017 = vmatpush1.bf16.msra.mxu0 %v3122
        %4018 = vmatprep.subr.bf16.mxu0 %v3127
        %4019 = vmatpush1.bf16.msra.mxu0 %v3126
        %4020 = vmatprep.subr.bf16.mxu0 %v3131
        %4021 = vmatpush1.bf16.msra.mxu0 %v3130
        %4022 = vmatprep.subr.bf16.mxu0 %v3135
        %4023 = vmatpush1.bf16.msra.mxu0 %v3134
        %4024 = vmatprep.subr.bf16.mxu0 %v3139
        %4025 = vmatpush1.bf16.msra.mxu0 %v3138
        %4026 = vmatprep.subr.bf16.mxu0 %v3143
        %4027 = vmatpush1.bf16.msra.mxu0 %v3142
        %4028 = vmatprep.subr.bf16.mxu0 %v3147
        %4029 = vmatpush1.bf16.msra.mxu0 %v3146
        %4030 = vmatprep.subr.bf16.mxu0 %v3151
        %4031 = vmatpush1.bf16.msra.mxu0 %v3150
        %4032 = vmatprep.subr.bf16.mxu0 %v3155
        %4033 = vmatpush1.bf16.msra.mxu0 %v3154
        %4034 = vmatprep.subr.bf16.mxu0 %v3159
        %4035 = vmatpush1.bf16.msra.mxu0 %v3158
        %4036 = vmatprep.subr.bf16.mxu0 %v3163
        %4037 = vmatpush1.bf16.msra.mxu0 %v3162
        %4038 = vmatprep.subr.bf16.mxu0 %v3167
        %4039 = vmatpush1.bf16.msra.mxu0 %v3166
        %4040 = vmatprep.subr.bf16.mxu0 %v3171
        %4041 = vmatpush1.bf16.msra.mxu0 %v3170
        %4042 = vmatprep.subr.bf16.mxu0 %v3175
        %4043 = vmatpush1.bf16.msra.mxu0 %v3174
        %4044 = vmatprep.mubr.bf16.mxu0 %v1175
        %4045 = vmatmul.mubr.bf16.gmra.mrb[0].mxu0 %v1174
        %v4046 = vpop.f32.mrb[0].mxu0
        %v4047 = vadd.f32 %v4004, %v4046
        %v4048 = vpop.f32.mrb[0].mxu0
        %v4049 = vadd.f32 %v4006, %v4048
        %v4050 = vpop.f32.mrb[0].mxu0
        %v4051 = vadd.f32 %v4008, %v4050
        %v4052 = vpop.f32.mrb[0].mxu0
        %v4053 = vadd.f32 %v4010, %v4052
        %4054 = vdwg.mxu0
        %4055 = vmatprep.subr.bf16.mxu0 %v3179
        %4056 = vmatpush1.bf16.msra.mxu0 %v3178
        %4057 = vmatprep.subr.bf16.mxu0 %v3183
        %4058 = vmatpush1.bf16.msra.mxu0 %v3182
        %4059 = vmatprep.subr.bf16.mxu0 %v3187
        %4060 = vmatpush1.bf16.msra.mxu0 %v3186
        %4061 = vmatprep.subr.bf16.mxu0 %v3191
        %4062 = vmatpush1.bf16.msra.mxu0 %v3190
        %4063 = vmatprep.subr.bf16.mxu0 %v3195
        %4064 = vmatpush1.bf16.msra.mxu0 %v3194
        %4065 = vmatprep.subr.bf16.mxu0 %v3199
        %4066 = vmatpush1.bf16.msra.mxu0 %v3198
        %4067 = vmatprep.subr.bf16.mxu0 %v3203
        %4068 = vmatpush1.bf16.msra.mxu0 %v3202
        %4069 = vmatprep.subr.bf16.mxu0 %v3207
        %4070 = vmatpush1.bf16.msra.mxu0 %v3206
        %4071 = vmatprep.subr.bf16.mxu0 %v3211
        %4072 = vmatpush1.bf16.msra.mxu0 %v3210
        %4073 = vmatprep.subr.bf16.mxu0 %v3215
        %4074 = vmatpush1.bf16.msra.mxu0 %v3214
        %4075 = vmatprep.subr.bf16.mxu0 %v3219
        %4076 = vmatpush1.bf16.msra.mxu0 %v3218
        %4077 = vmatprep.subr.bf16.mxu0 %v3223
        %4078 = vmatpush1.bf16.msra.mxu0 %v3222
        %4079 = vmatprep.subr.bf16.mxu0 %v3227
        %4080 = vmatpush1.bf16.msra.mxu0 %v3226
        %4081 = vmatprep.subr.bf16.mxu0 %v3231
        %4082 = vmatpush1.bf16.msra.mxu0 %v3230
        %4083 = vmatprep.subr.bf16.mxu0 %v3235
        %4084 = vmatpush1.bf16.msra.mxu0 %v3234
        %4085 = vmatprep.subr.bf16.mxu0 %v3239
        %4086 = vmatpush1.bf16.msra.mxu0 %v3238
        %4087 = vmatprep.mubr.bf16.mxu0 %v1177
        %4088 = vmatmul.mubr.bf16.gmra.mrb[0].mxu0 %v1176
        %v4089 = vpop.f32.mrb[0].mxu0
        %v4090 = vadd.f32 %v4047, %v4089
        %v4091 = vpop.f32.mrb[0].mxu0
        %v4092 = vadd.f32 %v4049, %v4091
        %v4093 = vpop.f32.mrb[0].mxu0
        %v4094 = vadd.f32 %v4051, %v4093
        %v4095 = vpop.f32.mrb[0].mxu0
        %v4096 = vadd.f32 %v4053, %v4095
        %4097 = vdwg.mxu0
        %4098 = vmatprep.subr.bf16.mxu0 %v2733
        %4099 = vmatpush1.bf16.msra.mxu0 %v2732
        %4100 = vmatprep.subr.bf16.mxu0 %v2737
        %4101 = vmatpush1.bf16.msra.mxu0 %v2736
        %4102 = vmatprep.subr.bf16.mxu0 %v2741
        %4103 = vmatpush1.bf16.msra.mxu0 %v2740
        %4104 = vmatprep.subr.bf16.mxu0 %v2745
        %4105 = vmatpush1.bf16.msra.mxu0 %v2744
        %4106 = vmatprep.subr.bf16.mxu0 %v2749
        %4107 = vmatpush1.bf16.msra.mxu0 %v2748
        %4108 = vmatprep.subr.bf16.mxu0 %v2753
        %4109 = vmatpush1.bf16.msra.mxu0 %v2752
        %4110 = vmatprep.subr.bf16.mxu0 %v2757
        %4111 = vmatpush1.bf16.msra.mxu0 %v2756
        %4112 = vmatprep.subr.bf16.mxu0 %v2761
        %4113 = vmatpush1.bf16.msra.mxu0 %v2760
        %4114 = vmatprep.subr.bf16.mxu0 %v2765
        %4115 = vmatpush1.bf16.msra.mxu0 %v2764
        %4116 = vmatprep.subr.bf16.mxu0 %v2769
        %4117 = vmatpush1.bf16.msra.mxu0 %v2768
        %4118 = vmatprep.subr.bf16.mxu0 %v2773
        %4119 = vmatpush1.bf16.msra.mxu0 %v2772
        %4120 = vmatprep.subr.bf16.mxu0 %v2777
        %4121 = vmatpush1.bf16.msra.mxu0 %v2776
        %4122 = vmatprep.subr.bf16.mxu0 %v2781
        %4123 = vmatpush1.bf16.msra.mxu0 %v2780
        %4124 = vmatprep.subr.bf16.mxu0 %v2785
        %4125 = vmatpush1.bf16.msra.mxu0 %v2784
        %4126 = vmatprep.subr.bf16.mxu0 %v2789
        %4127 = vmatpush1.bf16.msra.mxu0 %v2788
        %4128 = vmatprep.subr.bf16.mxu0 %v2793
        %4129 = vmatpush1.bf16.msra.mxu0 %v2792
        %4130 = vmatprep.mubr.bf16.mxu0 %v1163
        %4131 = vmatmul.mubr.bf16.gmra.mrb[0].mxu0 %v1162
        %v4132 = vpop.f32.mrb[0].mxu0
        %v4133 = vadd.f32 0.0, %v4132
        %v4134 = vpop.f32.mrb[0].mxu0
        %v4135 = vadd.f32 0.0, %v4134
        %v4136 = vpop.f32.mrb[0].mxu0
        %v4137 = vadd.f32 0.0, %v4136
        %v4138 = vpop.f32.mrb[0].mxu0
        %v4139 = vadd.f32 0.0, %v4138
        %4140 = vdwg.mxu0
        %4141 = vmatprep.subr.bf16.mxu0 %v2797
        %4142 = vmatpush1.bf16.msra.mxu0 %v2796
        %4143 = vmatprep.subr.bf16.mxu0 %v2801
        %4144 = vmatpush1.bf16.msra.mxu0 %v2800
        %4145 = vmatprep.subr.bf16.mxu0 %v2805
        %4146 = vmatpush1.bf16.msra.mxu0 %v2804
        %4147 = vmatprep.subr.bf16.mxu0 %v2809
        %4148 = vmatpush1.bf16.msra.mxu0 %v2808
        %4149 = vmatprep.subr.bf16.mxu0 %v2813
        %4150 = vmatpush1.bf16.msra.mxu0 %v2812
        %4151 = vmatprep.subr.bf16.mxu0 %v2817
        %4152 = vmatpush1.bf16.msra.mxu0 %v2816
        %4153 = vmatprep.subr.bf16.mxu0 %v2821
        %4154 = vmatpush1.bf16.msra.mxu0 %v2820
        %4155 = vmatprep.subr.bf16.mxu0 %v2825
        %4156 = vmatpush1.bf16.msra.mxu0 %v2824
        %4157 = vmatprep.subr.bf16.mxu0 %v2829
        %4158 = vmatpush1.bf16.msra.mxu0 %v2828
        %4159 = vmatprep.subr.bf16.mxu0 %v2833
        %4160 = vmatpush1.bf16.msra.mxu0 %v2832
        %4161 = vmatprep.subr.bf16.mxu0 %v2837
        %4162 = vmatpush1.bf16.msra.mxu0 %v2836
        %4163 = vmatprep.subr.bf16.mxu0 %v2841
        %4164 = vmatpush1.bf16.msra.mxu0 %v2840
        %4165 = vmatprep.subr.bf16.mxu0 %v2845
        %4166 = vmatpush1.bf16.msra.mxu0 %v2844
        %4167 = vmatprep.subr.bf16.mxu0 %v2849
        %4168 = vmatpush1.bf16.msra.mxu0 %v2848
        %4169 = vmatprep.subr.bf16.mxu0 %v2853
        %4170 = vmatpush1.bf16.msra.mxu0 %v2852
        %4171 = vmatprep.subr.bf16.mxu0 %v2857
        %4172 = vmatpush1.bf16.msra.mxu0 %v2856
        %4173 = vmatprep.mubr.bf16.mxu0 %v1165
        %4174 = vmatmul.mubr.bf16.gmra.mrb[0].mxu0 %v1164
        %v4175 = vpop.f32.mrb[0].mxu0
        %v4176 = vadd.f32 %v4133, %v4175
        %v4177 = vpop.f32.mrb[0].mxu0
        %v4178 = vadd.f32 %v4135, %v4177
        %v4179 = vpop.f32.mrb[0].mxu0
        %v4180 = vadd.f32 %v4137, %v4179
        %v4181 = vpop.f32.mrb[0].mxu0
        %v4182 = vadd.f32 %v4139, %v4181
        %4183 = vdwg.mxu0
        %4184 = vmatprep.subr.bf16.mxu0 %v2861
        %4185 = vmatpush1.bf16.msra.mxu0 %v2860
        %4186 = vmatprep.subr.bf16.mxu0 %v2865
        %4187 = vmatpush1.bf16.msra.mxu0 %v2864
        %4188 = vmatprep.subr.bf16.mxu0 %v2869
        %4189 = vmatpush1.bf16.msra.mxu0 %v2868
        %4190 = vmatprep.subr.bf16.mxu0 %v2873
        %4191 = vmatpush1.bf16.msra.mxu0 %v2872
        %4192 = vmatprep.subr.bf16.mxu0 %v2877
        %4193 = vmatpush1.bf16.msra.mxu0 %v2876
        %4194 = vmatprep.subr.bf16.mxu0 %v2881
        %4195 = vmatpush1.bf16.msra.mxu0 %v2880
        %4196 = vmatprep.subr.bf16.mxu0 %v2885
        %4197 = vmatpush1.bf16.msra.mxu0 %v2884
        %4198 = vmatprep.subr.bf16.mxu0 %v2889
        %4199 = vmatpush1.bf16.msra.mxu0 %v2888
        %4200 = vmatprep.subr.bf16.mxu0 %v2893
        %4201 = vmatpush1.bf16.msra.mxu0 %v2892
        %4202 = vmatprep.subr.bf16.mxu0 %v2897
        %4203 = vmatpush1.bf16.msra.mxu0 %v2896
        %4204 = vmatprep.subr.bf16.mxu0 %v2901
        %4205 = vmatpush1.bf16.msra.mxu0 %v2900
        %4206 = vmatprep.subr.bf16.mxu0 %v2905
        %4207 = vmatpush1.bf16.msra.mxu0 %v2904
        %4208 = vmatprep.subr.bf16.mxu0 %v2909
        %4209 = vmatpush1.bf16.msra.mxu0 %v2908
        %4210 = vmatprep.subr.bf16.mxu0 %v2913
        %4211 = vmatpush1.bf16.msra.mxu0 %v2912
        %4212 = vmatprep.subr.bf16.mxu0 %v2917
        %4213 = vmatpush1.bf16.msra.mxu0 %v2916
        %4214 = vmatprep.subr.bf16.mxu0 %v2921
        %4215 = vmatpush1.bf16.msra.mxu0 %v2920
        %4216 = vmatprep.mubr.bf16.mxu0 %v1167
        %4217 = vmatmul.mubr.bf16.gmra.mrb[0].mxu0 %v1166
        %v4218 = vpop.f32.mrb[0].mxu0
        %v4219 = vadd.f32 %v4176, %v4218
        %v4220 = vpop.f32.mrb[0].mxu0
        %v4221 = vadd.f32 %v4178, %v4220
        %v4222 = vpop.f32.mrb[0].mxu0
        %v4223 = vadd.f32 %v4180, %v4222
        %v4224 = vpop.f32.mrb[0].mxu0
        %v4225 = vadd.f32 %v4182, %v4224
        %4226 = vdwg.mxu0
        %4227 = vmatprep.subr.bf16.mxu0 %v2925
        %4228 = vmatpush1.bf16.msra.mxu0 %v2924
        %4229 = vmatprep.subr.bf16.mxu0 %v2929
        %4230 = vmatpush1.bf16.msra.mxu0 %v2928
        %4231 = vmatprep.subr.bf16.mxu0 %v2933
        %4232 = vmatpush1.bf16.msra.mxu0 %v2932
        %4233 = vmatprep.subr.bf16.mxu0 %v2937
        %4234 = vmatpush1.bf16.msra.mxu0 %v2936
        %4235 = vmatprep.subr.bf16.mxu0 %v2941
        %4236 = vmatpush1.bf16.msra.mxu0 %v2940
        %4237 = vmatprep.subr.bf16.mxu0 %v2945
        %4238 = vmatpush1.bf16.msra.mxu0 %v2944
        %4239 = vmatprep.subr.bf16.mxu0 %v2949
        %4240 = vmatpush1.bf16.msra.mxu0 %v2948
        %4241 = vmatprep.subr.bf16.mxu0 %v2953
        %4242 = vmatpush1.bf16.msra.mxu0 %v2952
        %4243 = vmatprep.subr.bf16.mxu0 %v2957
        %4244 = vmatpush1.bf16.msra.mxu0 %v2956
        %4245 = vmatprep.subr.bf16.mxu0 %v2961
        %4246 = vmatpush1.bf16.msra.mxu0 %v2960
        %4247 = vmatprep.subr.bf16.mxu0 %v2965
        %4248 = vmatpush1.bf16.msra.mxu0 %v2964
        %4249 = vmatprep.subr.bf16.mxu0 %v2969
        %4250 = vmatpush1.bf16.msra.mxu0 %v2968
        %4251 = vmatprep.subr.bf16.mxu0 %v2973
        %4252 = vmatpush1.bf16.msra.mxu0 %v2972
        %4253 = vmatprep.subr.bf16.mxu0 %v2977
        %4254 = vmatpush1.bf16.msra.mxu0 %v2976
        %4255 = vmatprep.subr.bf16.mxu0 %v2981
        %4256 = vmatpush1.bf16.msra.mxu0 %v2980
        %4257 = vmatprep.subr.bf16.mxu0 %v2985
        %4258 = vmatpush1.bf16.msra.mxu0 %v2984
        %4259 = vmatprep.mubr.bf16.mxu0 %v1169
        %4260 = vmatmul.mubr.bf16.gmra.mrb[0].mxu0 %v1168
        %v4261 = vpop.f32.mrb[0].mxu0
        %v4262 = vadd.f32 %v4219, %v4261
        %v4263 = vpop.f32.mrb[0].mxu0
        %v4264 = vadd.f32 %v4221, %v4263
        %v4265 = vpop.f32.mrb[0].mxu0
        %v4266 = vadd.f32 %v4223, %v4265
        %v4267 = vpop.f32.mrb[0].mxu0
        %v4268 = vadd.f32 %v4225, %v4267
        %4269 = vdwg.mxu0
        %4270 = vmatprep.subr.bf16.mxu0 %v2989
        %4271 = vmatpush1.bf16.msra.mxu0 %v2988
        %4272 = vmatprep.subr.bf16.mxu0 %v2993
        %4273 = vmatpush1.bf16.msra.mxu0 %v2992
        %4274 = vmatprep.subr.bf16.mxu0 %v2997
        %4275 = vmatpush1.bf16.msra.mxu0 %v2996
        %4276 = vmatprep.subr.bf16.mxu0 %v3001
        %4277 = vmatpush1.bf16.msra.mxu0 %v3000
        %4278 = vmatprep.subr.bf16.mxu0 %v3005
        %4279 = vmatpush1.bf16.msra.mxu0 %v3004
        %4280 = vmatprep.subr.bf16.mxu0 %v3009
        %4281 = vmatpush1.bf16.msra.mxu0 %v3008
        %4282 = vmatprep.subr.bf16.mxu0 %v3013
        %4283 = vmatpush1.bf16.msra.mxu0 %v3012
        %4284 = vmatprep.subr.bf16.mxu0 %v3017
        %4285 = vmatpush1.bf16.msra.mxu0 %v3016
        %4286 = vmatprep.subr.bf16.mxu0 %v3021
        %4287 = vmatpush1.bf16.msra.mxu0 %v3020
        %4288 = vmatprep.subr.bf16.mxu0 %v3025
        %4289 = vmatpush1.bf16.msra.mxu0 %v3024
        %4290 = vmatprep.subr.bf16.mxu0 %v3029
        %4291 = vmatpush1.bf16.msra.mxu0 %v3028
        %4292 = vmatprep.subr.bf16.mxu0 %v3033
        %4293 = vmatpush1.bf16.msra.mxu0 %v3032
        %4294 = vmatprep.subr.bf16.mxu0 %v3037
        %4295 = vmatpush1.bf16.msra.mxu0 %v3036
        %4296 = vmatprep.subr.bf16.mxu0 %v3041
        %4297 = vmatpush1.bf16.msra.mxu0 %v3040
        %4298 = vmatprep.subr.bf16.mxu0 %v3045
        %4299 = vmatpush1.bf16.msra.mxu0 %v3044
        %4300 = vmatprep.subr.bf16.mxu0 %v3049
        %4301 = vmatpush1.bf16.msra.mxu0 %v3048
        %4302 = vmatprep.mubr.bf16.mxu0 %v1171
        %4303 = vmatmul.mubr.bf16.gmra.mrb[0].mxu0 %v1170
        %v4304 = vpop.f32.mrb[0].mxu0
        %v4305 = vadd.f32 %v4262, %v4304
        %v4306 = vpop.f32.mrb[0].mxu0
        %v4307 = vadd.f32 %v4264, %v4306
        %v4308 = vpop.f32.mrb[0].mxu0
        %v4309 = vadd.f32 %v4266, %v4308
        %v4310 = vpop.f32.mrb[0].mxu0
        %v4311 = vadd.f32 %v4268, %v4310
        %4312 = vdwg.mxu0
        %4313 = vmatprep.subr.bf16.mxu0 %v3053
        %4314 = vmatpush1.bf16.msra.mxu0 %v3052
        %4315 = vmatprep.subr.bf16.mxu0 %v3057
        %4316 = vmatpush1.bf16.msra.mxu0 %v3056
        %4317 = vmatprep.subr.bf16.mxu0 %v3061
        %4318 = vmatpush1.bf16.msra.mxu0 %v3060
        %4319 = vmatprep.subr.bf16.mxu0 %v3065
        %4320 = vmatpush1.bf16.msra.mxu0 %v3064
        %4321 = vmatprep.subr.bf16.mxu0 %v3069
        %4322 = vmatpush1.bf16.msra.mxu0 %v3068
        %4323 = vmatprep.subr.bf16.mxu0 %v3073
        %4324 = vmatpush1.bf16.msra.mxu0 %v3072
        %4325 = vmatprep.subr.bf16.mxu0 %v3077
        %4326 = vmatpush1.bf16.msra.mxu0 %v3076
        %4327 = vmatprep.subr.bf16.mxu0 %v3081
        %4328 = vmatpush1.bf16.msra.mxu0 %v3080
        %4329 = vmatprep.subr.bf16.mxu0 %v3085
        %4330 = vmatpush1.bf16.msra.mxu0 %v3084
        %4331 = vmatprep.subr.bf16.mxu0 %v3089
        %4332 = vmatpush1.bf16.msra.mxu0 %v3088
        %4333 = vmatprep.subr.bf16.mxu0 %v3093
        %4334 = vmatpush1.bf16.msra.mxu0 %v3092
        %4335 = vmatprep.subr.bf16.mxu0 %v3097
        %4336 = vmatpush1.bf16.msra.mxu0 %v3096
        %4337 = vmatprep.subr.bf16.mxu0 %v3101
        %4338 = vmatpush1.bf16.msra.mxu0 %v3100
        %4339 = vmatprep.subr.bf16.mxu0 %v3105
        %4340 = vmatpush1.bf16.msra.mxu0 %v3104
        %4341 = vmatprep.subr.bf16.mxu0 %v3109
        %4342 = vmatpush1.bf16.msra.mxu0 %v3108
        %4343 = vmatprep.subr.bf16.mxu0 %v3113
        %4344 = vmatpush1.bf16.msra.mxu0 %v3112
        %4345 = vmatprep.mubr.bf16.mxu0 %v1173
        %4346 = vmatmul.mubr.bf16.gmra.mrb[0].mxu0 %v1172
        %v4347 = vpop.f32.mrb[0].mxu0
        %v4348 = vadd.f32 %v4305, %v4347
        %v4349 = vpop.f32.mrb[0].mxu0
        %v4350 = vadd.f32 %v4307, %v4349
        %v4351 = vpop.f32.mrb[0].mxu0
        %v4352 = vadd.f32 %v4309, %v4351
        %v4353 = vpop.f32.mrb[0].mxu0
        %v4354 = vadd.f32 %v4311, %v4353
        %4355 = vdwg.mxu0
        %4356 = vmatprep.subr.bf16.mxu0 %v3117
        %4357 = vmatpush1.bf16.msra.mxu0 %v3116
        %4358 = vmatprep.subr.bf16.mxu0 %v3121
        %4359 = vmatpush1.bf16.msra.mxu0 %v3120
        %4360 = vmatprep.subr.bf16.mxu0 %v3125
        %4361 = vmatpush1.bf16.msra.mxu0 %v3124
        %4362 = vmatprep.subr.bf16.mxu0 %v3129
        %4363 = vmatpush1.bf16.msra.mxu0 %v3128
        %4364 = vmatprep.subr.bf16.mxu0 %v3133
        %4365 = vmatpush1.bf16.msra.mxu0 %v3132
        %4366 = vmatprep.subr.bf16.mxu0 %v3137
        %4367 = vmatpush1.bf16.msra.mxu0 %v3136
        %4368 = vmatprep.subr.bf16.mxu0 %v3141
        %4369 = vmatpush1.bf16.msra.mxu0 %v3140
        %4370 = vmatprep.subr.bf16.mxu0 %v3145
        %4371 = vmatpush1.bf16.msra.mxu0 %v3144
        %4372 = vmatprep.subr.bf16.mxu0 %v3149
        %4373 = vmatpush1.bf16.msra.mxu0 %v3148
        %4374 = vmatprep.subr.bf16.mxu0 %v3153
        %4375 = vmatpush1.bf16.msra.mxu0 %v3152
        %4376 = vmatprep.subr.bf16.mxu0 %v3157
        %4377 = vmatpush1.bf16.msra.mxu0 %v3156
        %4378 = vmatprep.subr.bf16.mxu0 %v3161
        %4379 = vmatpush1.bf16.msra.mxu0 %v3160
        %4380 = vmatprep.subr.bf16.mxu0 %v3165
        %4381 = vmatpush1.bf16.msra.mxu0 %v3164
        %4382 = vmatprep.subr.bf16.mxu0 %v3169
        %4383 = vmatpush1.bf16.msra.mxu0 %v3168
        %4384 = vmatprep.subr.bf16.mxu0 %v3173
        %4385 = vmatpush1.bf16.msra.mxu0 %v3172
        %4386 = vmatprep.subr.bf16.mxu0 %v3177
        %4387 = vmatpush1.bf16.msra.mxu0 %v3176
        %4388 = vmatprep.mubr.bf16.mxu0 %v1175
        %4389 = vmatmul.mubr.bf16.gmra.mrb[0].mxu0 %v1174
        %v4390 = vpop.f32.mrb[0].mxu0
        %v4391 = vadd.f32 %v4348, %v4390
        %v4392 = vpop.f32.mrb[0].mxu0
        %v4393 = vadd.f32 %v4350, %v4392
        %v4394 = vpop.f32.mrb[0].mxu0
        %v4395 = vadd.f32 %v4352, %v4394
        %v4396 = vpop.f32.mrb[0].mxu0
        %v4397 = vadd.f32 %v4354, %v4396
        %4398 = vdwg.mxu0
        %4399 = vmatprep.subr.bf16.mxu0 %v3181
        %4400 = vmatpush1.bf16.msra.mxu0 %v3180
        %4401 = vmatprep.subr.bf16.mxu0 %v3185
        %4402 = vmatpush1.bf16.msra.mxu0 %v3184
        %4403 = vmatprep.subr.bf16.mxu0 %v3189
        %4404 = vmatpush1.bf16.msra.mxu0 %v3188
        %4405 = vmatprep.subr.bf16.mxu0 %v3193
        %4406 = vmatpush1.bf16.msra.mxu0 %v3192
        %4407 = vmatprep.subr.bf16.mxu0 %v3197
        %4408 = vmatpush1.bf16.msra.mxu0 %v3196
        %4409 = vmatprep.subr.bf16.mxu0 %v3201
        %4410 = vmatpush1.bf16.msra.mxu0 %v3200
        %4411 = vmatprep.subr.bf16.mxu0 %v3205
        %4412 = vmatpush1.bf16.msra.mxu0 %v3204
        %4413 = vmatprep.subr.bf16.mxu0 %v3209
        %4414 = vmatpush1.bf16.msra.mxu0 %v3208
        %4415 = vmatprep.subr.bf16.mxu0 %v3213
        %4416 = vmatpush1.bf16.msra.mxu0 %v3212
        %4417 = vmatprep.subr.bf16.mxu0 %v3217
        %4418 = vmatpush1.bf16.msra.mxu0 %v3216
        %4419 = vmatprep.subr.bf16.mxu0 %v3221
        %4420 = vmatpush1.bf16.msra.mxu0 %v3220
        %4421 = vmatprep.subr.bf16.mxu0 %v3225
        %4422 = vmatpush1.bf16.msra.mxu0 %v3224
        %4423 = vmatprep.subr.bf16.mxu0 %v3229
        %4424 = vmatpush1.bf16.msra.mxu0 %v3228
        %4425 = vmatprep.subr.bf16.mxu0 %v3233
        %4426 = vmatpush1.bf16.msra.mxu0 %v3232
        %4427 = vmatprep.subr.bf16.mxu0 %v3237
        %4428 = vmatpush1.bf16.msra.mxu0 %v3236
        %4429 = vmatprep.subr.bf16.mxu0 %v3241
        %4430 = vmatpush1.bf16.msra.mxu0 %v3240
        %4431 = vmatprep.mubr.bf16.mxu0 %v1177
        %4432 = vmatmul.mubr.bf16.gmra.mrb[0].mxu0 %v1176
        %v4433 = vpop.f32.mrb[0].mxu0
        %v4434 = vadd.f32 %v4391, %v4433
        %v4435 = vpop.f32.mrb[0].mxu0
        %v4436 = vadd.f32 %v4393, %v4435
        %v4437 = vpop.f32.mrb[0].mxu0
        %v4438 = vadd.f32 %v4395, %v4437
        %v4439 = vpop.f32.mrb[0].mxu0
        %v4440 = vadd.f32 %v4397, %v4439
        %4441 = vdwg.mxu0
        %v4442 = vadd.f32 %v575, %v4090
        %v4443 = vadd.f32 %v576, %v4092
        %v4444 = vadd.f32 %v577, %v4434
        %v4445 = vadd.f32 %v578, %v4436
        %v4446 = vadd.f32 %v579, %v4094
        %v4447 = vadd.f32 %v580, %v4096
        %v4448 = vadd.f32 %v581, %v4438
        %v4449 = vadd.f32 %v582, %v4440
        %4450 = vst [vmem:[#allocation2] sm:$0xff] %v4442
        %4451 = vst [vmem:[#allocation2 + $0x8] sm:$0xff] %v4443
        %4452 = vst [vmem:[#allocation2 + $0x10] sm:$0xff] %v4444
        %4453 = vst [vmem:[#allocation2 + $0x18] sm:$0xff] %v4445
        %4454 = vst [vmem:[#allocation2 + $0x20] sm:$0xff] %v4446
        %4455 = vst [vmem:[#allocation2 + $0x28] sm:$0xff] %v4447
        %4456 = vst [vmem:[#allocation2 + $0x30] sm:$0xff] %v4448
        %4457 = vst [vmem:[#allocation2 + $0x38] sm:$0xff] %v4449
      $region80: #{forward.1} parent=71 // pred_fallthru
        _
      %p4458 = scmp.ge.s32.totalorder %s29, 1
      // Predicated region
      $region81: #{forward.1} parent=71 // pred_check
        %p4459 = pneg %p4458
      $region82: #{forward.1} parent=71 // pred_check_branch
        %4461 = sbr.rel (%p4459) target = $region84
      $region83: #{forward.1} parent=71 // pred_region
        %v4462 = vld [vmem:[#allocation3] sm:$0xff]
        %v4463 = vld [vmem:[#allocation3 + $0x8] sm:$0xff]
        %v4464 = vld [vmem:[#allocation3 + $0x10] sm:$0xff]
        %v4465 = vld [vmem:[#allocation3 + $0x18] sm:$0xff]
        %v4466 = vld [vmem:[#allocation3 + $0x20] sm:$0xff]
        %v4467 = vld [vmem:[#allocation3 + $0x28] sm:$0xff]
        %v4468 = vld [vmem:[#allocation3 + $0x30] sm:$0xff]
        %v4469 = vld [vmem:[#allocation3 + $0x38] sm:$0xff]
        %v4470 = vld [vmem:[%s539] sm:$0xff]
        %v4471 = vld [vmem:[%s539 + $0x8] sm:$0xff]
        %v4472 = vld [vmem:[%s539 + $0x10] sm:$0xff]
        %v4473 = vld [vmem:[%s539 + $0x18] sm:$0xff]
        %s4474 = ssub.s32 %s29, 1
        %s4475 = smul.u32 %s4474, 256
        %s4476 = smul.addr %s4475, 4
        %s4477 = scalar_lea.vmem %s3, %s4476
        %v4478 = vld [vmem:[%s4477] sm:$0xff]
        %v4479 = vld [vmem:[%s4477 + $0x8] sm:$0xff]
        %v4480 = vld [vmem:[%s4477 + $0x10] sm:$0xff]
        %v4481 = vld [vmem:[%s4477 + $0x18] sm:$0xff]
        %v4482 = vld [vmem:[%s4477 + $0x20] sm:$0xff]
        %v4483 = vld [vmem:[%s4477 + $0x28] sm:$0xff]
        %v4484 = vld [vmem:[%s4477 + $0x30] sm:$0xff]
        %v4485 = vld [vmem:[%s4477 + $0x38] sm:$0xff]
        %v4486 = vld [vmem:[%s4477 + $0x40] sm:$0xff]
        %v4487 = vld [vmem:[%s4477 + $0x48] sm:$0xff]
        %v4488 = vld [vmem:[%s4477 + $0x50] sm:$0xff]
        %v4489 = vld [vmem:[%s4477 + $0x58] sm:$0xff]
        %v4490 = vld [vmem:[%s4477 + $0x60] sm:$0xff]
        %v4491 = vld [vmem:[%s4477 + $0x68] sm:$0xff]
        %v4492 = vld [vmem:[%s4477 + $0x70] sm:$0xff]
        %v4493 = vld [vmem:[%s4477 + $0x78] sm:$0xff]
        %v4494 = vld [vmem:[%s4477 + $0x80] sm:$0xff]
        %v4495 = vld [vmem:[%s4477 + $0x88] sm:$0xff]
        %v4496 = vld [vmem:[%s4477 + $0x90] sm:$0xff]
        %v4497 = vld [vmem:[%s4477 + $0x98] sm:$0xff]
        %v4498 = vld [vmem:[%s4477 + $0xa0] sm:$0xff]
        %v4499 = vld [vmem:[%s4477 + $0xa8] sm:$0xff]
        %v4500 = vld [vmem:[%s4477 + $0xb0] sm:$0xff]
        %v4501 = vld [vmem:[%s4477 + $0xb8] sm:$0xff]
        %v4502 = vld [vmem:[%s4477 + $0xc0] sm:$0xff]
        %v4503 = vld [vmem:[%s4477 + $0xc8] sm:$0xff]
        %v4504 = vld [vmem:[%s4477 + $0xd0] sm:$0xff]
        %v4505 = vld [vmem:[%s4477 + $0xd8] sm:$0xff]
        %v4506 = vld [vmem:[%s4477 + $0xe0] sm:$0xff]
        %v4507 = vld [vmem:[%s4477 + $0xe8] sm:$0xff]
        %v4508 = vld [vmem:[%s4477 + $0xf0] sm:$0xff]
        %v4509 = vld [vmem:[%s4477 + $0xf8] sm:$0xff]
        %v4510 = vld [vmem:[%s4477 + $0x100] sm:$0xff]
        %v4511 = vld [vmem:[%s4477 + $0x108] sm:$0xff]
        %v4512 = vld [vmem:[%s4477 + $0x110] sm:$0xff]
        %v4513 = vld [vmem:[%s4477 + $0x118] sm:$0xff]
        %v4514 = vld [vmem:[%s4477 + $0x120] sm:$0xff]
        %v4515 = vld [vmem:[%s4477 + $0x128] sm:$0xff]
        %v4516 = vld [vmem:[%s4477 + $0x130] sm:$0xff]
        %v4517 = vld [vmem:[%s4477 + $0x138] sm:$0xff]
        %v4518 = vld [vmem:[%s4477 + $0x140] sm:$0xff]
        %v4519 = vld [vmem:[%s4477 + $0x148] sm:$0xff]
        %v4520 = vld [vmem:[%s4477 + $0x150] sm:$0xff]
        %v4521 = vld [vmem:[%s4477 + $0x158] sm:$0xff]
        %v4522 = vld [vmem:[%s4477 + $0x160] sm:$0xff]
        %v4523 = vld [vmem:[%s4477 + $0x168] sm:$0xff]
        %v4524 = vld [vmem:[%s4477 + $0x170] sm:$0xff]
        %v4525 = vld [vmem:[%s4477 + $0x178] sm:$0xff]
        %v4526 = vld [vmem:[%s4477 + $0x180] sm:$0xff]
        %v4527 = vld [vmem:[%s4477 + $0x188] sm:$0xff]
        %v4528 = vld [vmem:[%s4477 + $0x190] sm:$0xff]
        %v4529 = vld [vmem:[%s4477 + $0x198] sm:$0xff]
        %v4530 = vld [vmem:[%s4477 + $0x1a0] sm:$0xff]
        %v4531 = vld [vmem:[%s4477 + $0x1a8] sm:$0xff]
        %v4532 = vld [vmem:[%s4477 + $0x1b0] sm:$0xff]
        %v4533 = vld [vmem:[%s4477 + $0x1b8] sm:$0xff]
        %v4534 = vld [vmem:[%s4477 + $0x1c0] sm:$0xff]
        %v4535 = vld [vmem:[%s4477 + $0x1c8] sm:$0xff]
        %v4536 = vld [vmem:[%s4477 + $0x1d0] sm:$0xff]
        %v4537 = vld [vmem:[%s4477 + $0x1d8] sm:$0xff]
        %v4538 = vld [vmem:[%s4477 + $0x1e0] sm:$0xff]
        %v4539 = vld [vmem:[%s4477 + $0x1e8] sm:$0xff]
        %v4540 = vld [vmem:[%s4477 + $0x1f0] sm:$0xff]
        %v4541 = vld [vmem:[%s4477 + $0x1f8] sm:$0xff]
        %v4542 = vld [vmem:[%s4477 + $0x200] sm:$0xff]
        %v4543 = vld [vmem:[%s4477 + $0x208] sm:$0xff]
        %v4544 = vld [vmem:[%s4477 + $0x210] sm:$0xff]
        %v4545 = vld [vmem:[%s4477 + $0x218] sm:$0xff]
        %v4546 = vld [vmem:[%s4477 + $0x220] sm:$0xff]
        %v4547 = vld [vmem:[%s4477 + $0x228] sm:$0xff]
        %v4548 = vld [vmem:[%s4477 + $0x230] sm:$0xff]
        %v4549 = vld [vmem:[%s4477 + $0x238] sm:$0xff]
        %v4550 = vld [vmem:[%s4477 + $0x240] sm:$0xff]
        %v4551 = vld [vmem:[%s4477 + $0x248] sm:$0xff]
        %v4552 = vld [vmem:[%s4477 + $0x250] sm:$0xff]
        %v4553 = vld [vmem:[%s4477 + $0x258] sm:$0xff]
        %v4554 = vld [vmem:[%s4477 + $0x260] sm:$0xff]
        %v4555 = vld [vmem:[%s4477 + $0x268] sm:$0xff]
        %v4556 = vld [vmem:[%s4477 + $0x270] sm:$0xff]
        %v4557 = vld [vmem:[%s4477 + $0x278] sm:$0xff]
        %v4558 = vld [vmem:[%s4477 + $0x280] sm:$0xff]
        %v4559 = vld [vmem:[%s4477 + $0x288] sm:$0xff]
        %v4560 = vld [vmem:[%s4477 + $0x290] sm:$0xff]
        %v4561 = vld [vmem:[%s4477 + $0x298] sm:$0xff]
        %v4562 = vld [vmem:[%s4477 + $0x2a0] sm:$0xff]
        %v4563 = vld [vmem:[%s4477 + $0x2a8] sm:$0xff]
        %v4564 = vld [vmem:[%s4477 + $0x2b0] sm:$0xff]
        %v4565 = vld [vmem:[%s4477 + $0x2b8] sm:$0xff]
        %v4566 = vld [vmem:[%s4477 + $0x2c0] sm:$0xff]
        %v4567 = vld [vmem:[%s4477 + $0x2c8] sm:$0xff]
        %v4568 = vld [vmem:[%s4477 + $0x2d0] sm:$0xff]
        %v4569 = vld [vmem:[%s4477 + $0x2d8] sm:$0xff]
        %v4570 = vld [vmem:[%s4477 + $0x2e0] sm:$0xff]
        %v4571 = vld [vmem:[%s4477 + $0x2e8] sm:$0xff]
        %v4572 = vld [vmem:[%s4477 + $0x2f0] sm:$0xff]
        %v4573 = vld [vmem:[%s4477 + $0x2f8] sm:$0xff]
        %v4574 = vld [vmem:[%s4477 + $0x300] sm:$0xff]
        %v4575 = vld [vmem:[%s4477 + $0x308] sm:$0xff]
        %v4576 = vld [vmem:[%s4477 + $0x310] sm:$0xff]
        %v4577 = vld [vmem:[%s4477 + $0x318] sm:$0xff]
        %v4578 = vld [vmem:[%s4477 + $0x320] sm:$0xff]
        %v4579 = vld [vmem:[%s4477 + $0x328] sm:$0xff]
        %v4580 = vld [vmem:[%s4477 + $0x330] sm:$0xff]
        %v4581 = vld [vmem:[%s4477 + $0x338] sm:$0xff]
        %v4582 = vld [vmem:[%s4477 + $0x340] sm:$0xff]
        %v4583 = vld [vmem:[%s4477 + $0x348] sm:$0xff]
        %v4584 = vld [vmem:[%s4477 + $0x350] sm:$0xff]
        %v4585 = vld [vmem:[%s4477 + $0x358] sm:$0xff]
        %v4586 = vld [vmem:[%s4477 + $0x360] sm:$0xff]
        %v4587 = vld [vmem:[%s4477 + $0x368] sm:$0xff]
        %v4588 = vld [vmem:[%s4477 + $0x370] sm:$0xff]
        %v4589 = vld [vmem:[%s4477 + $0x378] sm:$0xff]
        %v4590 = vld [vmem:[%s4477 + $0x380] sm:$0xff]
        %v4591 = vld [vmem:[%s4477 + $0x388] sm:$0xff]
        %v4592 = vld [vmem:[%s4477 + $0x390] sm:$0xff]
        %v4593 = vld [vmem:[%s4477 + $0x398] sm:$0xff]
        %v4594 = vld [vmem:[%s4477 + $0x3a0] sm:$0xff]
        %v4595 = vld [vmem:[%s4477 + $0x3a8] sm:$0xff]
        %v4596 = vld [vmem:[%s4477 + $0x3b0] sm:$0xff]
        %v4597 = vld [vmem:[%s4477 + $0x3b8] sm:$0xff]
        %v4598 = vld [vmem:[%s4477 + $0x3c0] sm:$0xff]
        %v4599 = vld [vmem:[%s4477 + $0x3c8] sm:$0xff]
        %v4600 = vld [vmem:[%s4477 + $0x3d0] sm:$0xff]
        %v4601 = vld [vmem:[%s4477 + $0x3d8] sm:$0xff]
        %v4602 = vld [vmem:[%s4477 + $0x3e0] sm:$0xff]
        %v4603 = vld [vmem:[%s4477 + $0x3e8] sm:$0xff]
        %v4604 = vld [vmem:[%s4477 + $0x3f0] sm:$0xff]
        %v4605 = vld [vmem:[%s4477 + $0x3f8] sm:$0xff]
        %v4610 = vunpack.c.l.b16 %v4470
        %v4611 = vunpack.c.h.b16 %v4470
        %v4612 = vunpack.c.l.b16 %v4471
        %v4613 = vunpack.c.h.b16 %v4471
        %v4614 = vunpack.c.l.b16 %v4472
        %v4615 = vunpack.c.h.b16 %v4472
        %v4616 = vunpack.c.l.b16 %v4473
        %v4617 = vunpack.c.h.b16 %v4473
        %v4618 = vpack.c.b16 %v4614, %v4610
        %v4619 = vpack.c.b16 %v4615, %v4611
        %v4620 = vpack.c.b16 %v4616, %v4612
        %v4621 = vpack.c.b16 %v4617, %v4613
        %v4754 = vunpack.c.l.b16 %v4478
        %v4755 = vunpack.c.h.b16 %v4478
        %v4756 = vunpack.c.l.b16 %v4479
        %v4757 = vunpack.c.h.b16 %v4479
        %v4758 = vunpack.c.l.b16 %v4480
        %v4759 = vunpack.c.h.b16 %v4480
        %v4760 = vunpack.c.l.b16 %v4481
        %v4761 = vunpack.c.h.b16 %v4481
        %v4762 = vunpack.c.l.b16 %v4482
        %v4763 = vunpack.c.h.b16 %v4482
        %v4764 = vunpack.c.l.b16 %v4483
        %v4765 = vunpack.c.h.b16 %v4483
        %v4766 = vunpack.c.l.b16 %v4484
        %v4767 = vunpack.c.h.b16 %v4484
        %v4768 = vunpack.c.l.b16 %v4485
        %v4769 = vunpack.c.h.b16 %v4485
        %v4770 = vunpack.c.l.b16 %v4486
        %v4771 = vunpack.c.h.b16 %v4486
        %v4772 = vunpack.c.l.b16 %v4487
        %v4773 = vunpack.c.h.b16 %v4487
        %v4774 = vunpack.c.l.b16 %v4488
        %v4775 = vunpack.c.h.b16 %v4488
        %v4776 = vunpack.c.l.b16 %v4489
        %v4777 = vunpack.c.h.b16 %v4489
        %v4778 = vunpack.c.l.b16 %v4490
        %v4779 = vunpack.c.h.b16 %v4490
        %v4780 = vunpack.c.l.b16 %v4491
        %v4781 = vunpack.c.h.b16 %v4491
        %v4782 = vunpack.c.l.b16 %v4492
        %v4783 = vunpack.c.h.b16 %v4492
        %v4784 = vunpack.c.l.b16 %v4493
        %v4785 = vunpack.c.h.b16 %v4493
        %v4786 = vunpack.c.l.b16 %v4494
        %v4787 = vunpack.c.h.b16 %v4494
        %v4788 = vunpack.c.l.b16 %v4495
        %v4789 = vunpack.c.h.b16 %v4495
        %v4790 = vunpack.c.l.b16 %v4496
        %v4791 = vunpack.c.h.b16 %v4496
        %v4792 = vunpack.c.l.b16 %v4497
        %v4793 = vunpack.c.h.b16 %v4497
        %v4794 = vunpack.c.l.b16 %v4498
        %v4795 = vunpack.c.h.b16 %v4498
        %v4796 = vunpack.c.l.b16 %v4499
        %v4797 = vunpack.c.h.b16 %v4499
        %v4798 = vunpack.c.l.b16 %v4500
        %v4799 = vunpack.c.h.b16 %v4500
        %v4800 = vunpack.c.l.b16 %v4501
        %v4801 = vunpack.c.h.b16 %v4501
        %v4802 = vunpack.c.l.b16 %v4502
        %v4803 = vunpack.c.h.b16 %v4502
        %v4804 = vunpack.c.l.b16 %v4503
        %v4805 = vunpack.c.h.b16 %v4503
        %v4806 = vunpack.c.l.b16 %v4504
        %v4807 = vunpack.c.h.b16 %v4504
        %v4808 = vunpack.c.l.b16 %v4505
        %v4809 = vunpack.c.h.b16 %v4505
        %v4810 = vunpack.c.l.b16 %v4506
        %v4811 = vunpack.c.h.b16 %v4506
        %v4812 = vunpack.c.l.b16 %v4507
        %v4813 = vunpack.c.h.b16 %v4507
        %v4814 = vunpack.c.l.b16 %v4508
        %v4815 = vunpack.c.h.b16 %v4508
        %v4816 = vunpack.c.l.b16 %v4509
        %v4817 = vunpack.c.h.b16 %v4509
        %v4818 = vunpack.c.l.b16 %v4510
        %v4819 = vunpack.c.h.b16 %v4510
        %v4820 = vunpack.c.l.b16 %v4511
        %v4821 = vunpack.c.h.b16 %v4511
        %v4822 = vunpack.c.l.b16 %v4512
        %v4823 = vunpack.c.h.b16 %v4512
        %v4824 = vunpack.c.l.b16 %v4513
        %v4825 = vunpack.c.h.b16 %v4513
        %v4826 = vunpack.c.l.b16 %v4514
        %v4827 = vunpack.c.h.b16 %v4514
        %v4828 = vunpack.c.l.b16 %v4515
        %v4829 = vunpack.c.h.b16 %v4515
        %v4830 = vunpack.c.l.b16 %v4516
        %v4831 = vunpack.c.h.b16 %v4516
        %v4832 = vunpack.c.l.b16 %v4517
        %v4833 = vunpack.c.h.b16 %v4517
        %v4834 = vunpack.c.l.b16 %v4518
        %v4835 = vunpack.c.h.b16 %v4518
        %v4836 = vunpack.c.l.b16 %v4519
        %v4837 = vunpack.c.h.b16 %v4519
        %v4838 = vunpack.c.l.b16 %v4520
        %v4839 = vunpack.c.h.b16 %v4520
        %v4840 = vunpack.c.l.b16 %v4521
        %v4841 = vunpack.c.h.b16 %v4521
        %v4842 = vunpack.c.l.b16 %v4522
        %v4843 = vunpack.c.h.b16 %v4522
        %v4844 = vunpack.c.l.b16 %v4523
        %v4845 = vunpack.c.h.b16 %v4523
        %v4846 = vunpack.c.l.b16 %v4524
        %v4847 = vunpack.c.h.b16 %v4524
        %v4848 = vunpack.c.l.b16 %v4525
        %v4849 = vunpack.c.h.b16 %v4525
        %v4850 = vunpack.c.l.b16 %v4526
        %v4851 = vunpack.c.h.b16 %v4526
        %v4852 = vunpack.c.l.b16 %v4527
        %v4853 = vunpack.c.h.b16 %v4527
        %v4854 = vunpack.c.l.b16 %v4528
        %v4855 = vunpack.c.h.b16 %v4528
        %v4856 = vunpack.c.l.b16 %v4529
        %v4857 = vunpack.c.h.b16 %v4529
        %v4858 = vunpack.c.l.b16 %v4530
        %v4859 = vunpack.c.h.b16 %v4530
        %v4860 = vunpack.c.l.b16 %v4531
        %v4861 = vunpack.c.h.b16 %v4531
        %v4862 = vunpack.c.l.b16 %v4532
        %v4863 = vunpack.c.h.b16 %v4532
        %v4864 = vunpack.c.l.b16 %v4533
        %v4865 = vunpack.c.h.b16 %v4533
        %v4866 = vunpack.c.l.b16 %v4534
        %v4867 = vunpack.c.h.b16 %v4534
        %v4868 = vunpack.c.l.b16 %v4535
        %v4869 = vunpack.c.h.b16 %v4535
        %v4870 = vunpack.c.l.b16 %v4536
        %v4871 = vunpack.c.h.b16 %v4536
        %v4872 = vunpack.c.l.b16 %v4537
        %v4873 = vunpack.c.h.b16 %v4537
        %v4874 = vunpack.c.l.b16 %v4538
        %v4875 = vunpack.c.h.b16 %v4538
        %v4876 = vunpack.c.l.b16 %v4539
        %v4877 = vunpack.c.h.b16 %v4539
        %v4878 = vunpack.c.l.b16 %v4540
        %v4879 = vunpack.c.h.b16 %v4540
        %v4880 = vunpack.c.l.b16 %v4541
        %v4881 = vunpack.c.h.b16 %v4541
        %v4882 = vunpack.c.l.b16 %v4542
        %v4883 = vunpack.c.h.b16 %v4542
        %v4884 = vunpack.c.l.b16 %v4543
        %v4885 = vunpack.c.h.b16 %v4543
        %v4886 = vunpack.c.l.b16 %v4544
        %v4887 = vunpack.c.h.b16 %v4544
        %v4888 = vunpack.c.l.b16 %v4545
        %v4889 = vunpack.c.h.b16 %v4545
        %v4890 = vunpack.c.l.b16 %v4546
        %v4891 = vunpack.c.h.b16 %v4546
        %v4892 = vunpack.c.l.b16 %v4547
        %v4893 = vunpack.c.h.b16 %v4547
        %v4894 = vunpack.c.l.b16 %v4548
        %v4895 = vunpack.c.h.b16 %v4548
        %v4896 = vunpack.c.l.b16 %v4549
        %v4897 = vunpack.c.h.b16 %v4549
        %v4898 = vunpack.c.l.b16 %v4550
        %v4899 = vunpack.c.h.b16 %v4550
        %v4900 = vunpack.c.l.b16 %v4551
        %v4901 = vunpack.c.h.b16 %v4551
        %v4902 = vunpack.c.l.b16 %v4552
        %v4903 = vunpack.c.h.b16 %v4552
        %v4904 = vunpack.c.l.b16 %v4553
        %v4905 = vunpack.c.h.b16 %v4553
        %v4906 = vunpack.c.l.b16 %v4554
        %v4907 = vunpack.c.h.b16 %v4554
        %v4908 = vunpack.c.l.b16 %v4555
        %v4909 = vunpack.c.h.b16 %v4555
        %v4910 = vunpack.c.l.b16 %v4556
        %v4911 = vunpack.c.h.b16 %v4556
        %v4912 = vunpack.c.l.b16 %v4557
        %v4913 = vunpack.c.h.b16 %v4557
        %v4914 = vunpack.c.l.b16 %v4558
        %v4915 = vunpack.c.h.b16 %v4558
        %v4916 = vunpack.c.l.b16 %v4559
        %v4917 = vunpack.c.h.b16 %v4559
        %v4918 = vunpack.c.l.b16 %v4560
        %v4919 = vunpack.c.h.b16 %v4560
        %v4920 = vunpack.c.l.b16 %v4561
        %v4921 = vunpack.c.h.b16 %v4561
        %v4922 = vunpack.c.l.b16 %v4562
        %v4923 = vunpack.c.h.b16 %v4562
        %v4924 = vunpack.c.l.b16 %v4563
        %v4925 = vunpack.c.h.b16 %v4563
        %v4926 = vunpack.c.l.b16 %v4564
        %v4927 = vunpack.c.h.b16 %v4564
        %v4928 = vunpack.c.l.b16 %v4565
        %v4929 = vunpack.c.h.b16 %v4565
        %v4930 = vunpack.c.l.b16 %v4566
        %v4931 = vunpack.c.h.b16 %v4566
        %v4932 = vunpack.c.l.b16 %v4567
        %v4933 = vunpack.c.h.b16 %v4567
        %v4934 = vunpack.c.l.b16 %v4568
        %v4935 = vunpack.c.h.b16 %v4568
        %v4936 = vunpack.c.l.b16 %v4569
        %v4937 = vunpack.c.h.b16 %v4569
        %v4938 = vunpack.c.l.b16 %v4570
        %v4939 = vunpack.c.h.b16 %v4570
        %v4940 = vunpack.c.l.b16 %v4571
        %v4941 = vunpack.c.h.b16 %v4571
        %v4942 = vunpack.c.l.b16 %v4572
        %v4943 = vunpack.c.h.b16 %v4572
        %v4944 = vunpack.c.l.b16 %v4573
        %v4945 = vunpack.c.h.b16 %v4573
        %v4946 = vunpack.c.l.b16 %v4574
        %v4947 = vunpack.c.h.b16 %v4574
        %v4948 = vunpack.c.l.b16 %v4575
        %v4949 = vunpack.c.h.b16 %v4575
        %v4950 = vunpack.c.l.b16 %v4576
        %v4951 = vunpack.c.h.b16 %v4576
        %v4952 = vunpack.c.l.b16 %v4577
        %v4953 = vunpack.c.h.b16 %v4577
        %v4954 = vunpack.c.l.b16 %v4578
        %v4955 = vunpack.c.h.b16 %v4578
        %v4956 = vunpack.c.l.b16 %v4579
        %v4957 = vunpack.c.h.b16 %v4579
        %v4958 = vunpack.c.l.b16 %v4580
        %v4959 = vunpack.c.h.b16 %v4580
        %v4960 = vunpack.c.l.b16 %v4581
        %v4961 = vunpack.c.h.b16 %v4581
        %v4962 = vunpack.c.l.b16 %v4582
        %v4963 = vunpack.c.h.b16 %v4582
        %v4964 = vunpack.c.l.b16 %v4583
        %v4965 = vunpack.c.h.b16 %v4583
        %v4966 = vunpack.c.l.b16 %v4584
        %v4967 = vunpack.c.h.b16 %v4584
        %v4968 = vunpack.c.l.b16 %v4585
        %v4969 = vunpack.c.h.b16 %v4585
        %v4970 = vunpack.c.l.b16 %v4586
        %v4971 = vunpack.c.h.b16 %v4586
        %v4972 = vunpack.c.l.b16 %v4587
        %v4973 = vunpack.c.h.b16 %v4587
        %v4974 = vunpack.c.l.b16 %v4588
        %v4975 = vunpack.c.h.b16 %v4588
        %v4976 = vunpack.c.l.b16 %v4589
        %v4977 = vunpack.c.h.b16 %v4589
        %v4978 = vunpack.c.l.b16 %v4590
        %v4979 = vunpack.c.h.b16 %v4590
        %v4980 = vunpack.c.l.b16 %v4591
        %v4981 = vunpack.c.h.b16 %v4591
        %v4982 = vunpack.c.l.b16 %v4592
        %v4983 = vunpack.c.h.b16 %v4592
        %v4984 = vunpack.c.l.b16 %v4593
        %v4985 = vunpack.c.h.b16 %v4593
        %v4986 = vunpack.c.l.b16 %v4594
        %v4987 = vunpack.c.h.b16 %v4594
        %v4988 = vunpack.c.l.b16 %v4595
        %v4989 = vunpack.c.h.b16 %v4595
        %v4990 = vunpack.c.l.b16 %v4596
        %v4991 = vunpack.c.h.b16 %v4596
        %v4992 = vunpack.c.l.b16 %v4597
        %v4993 = vunpack.c.h.b16 %v4597
        %v4994 = vunpack.c.l.b16 %v4598
        %v4995 = vunpack.c.h.b16 %v4598
        %v4996 = vunpack.c.l.b16 %v4599
        %v4997 = vunpack.c.h.b16 %v4599
        %v4998 = vunpack.c.l.b16 %v4600
        %v4999 = vunpack.c.h.b16 %v4600
        %v5000 = vunpack.c.l.b16 %v4601
        %v5001 = vunpack.c.h.b16 %v4601
        %v5002 = vunpack.c.l.b16 %v4602
        %v5003 = vunpack.c.h.b16 %v4602
        %v5004 = vunpack.c.l.b16 %v4603
        %v5005 = vunpack.c.h.b16 %v4603
        %v5006 = vunpack.c.l.b16 %v4604
        %v5007 = vunpack.c.h.b16 %v4604
        %v5008 = vunpack.c.l.b16 %v4605
        %v5009 = vunpack.c.h.b16 %v4605
        %v5010 = vpack.c.b16 %v4758, %v4754
        %v5011 = vpack.c.b16 %v4759, %v4755
        %v5012 = vpack.c.b16 %v4760, %v4756
        %v5013 = vpack.c.b16 %v4761, %v4757
        %v5014 = vpack.c.b16 %v4766, %v4762
        %v5015 = vpack.c.b16 %v4767, %v4763
        %v5016 = vpack.c.b16 %v4768, %v4764
        %v5017 = vpack.c.b16 %v4769, %v4765
        %v5018 = vpack.c.b16 %v4774, %v4770
        %v5019 = vpack.c.b16 %v4775, %v4771
        %v5020 = vpack.c.b16 %v4776, %v4772
        %v5021 = vpack.c.b16 %v4777, %v4773
        %v5022 = vpack.c.b16 %v4782, %v4778
        %v5023 = vpack.c.b16 %v4783, %v4779
        %v5024 = vpack.c.b16 %v4784, %v4780
        %v5025 = vpack.c.b16 %v4785, %v4781
        %v5026 = vpack.c.b16 %v4790, %v4786
        %v5027 = vpack.c.b16 %v4791, %v4787
        %v5028 = vpack.c.b16 %v4792, %v4788
        %v5029 = vpack.c.b16 %v4793, %v4789
        %v5030 = vpack.c.b16 %v4798, %v4794
        %v5031 = vpack.c.b16 %v4799, %v4795
        %v5032 = vpack.c.b16 %v4800, %v4796
        %v5033 = vpack.c.b16 %v4801, %v4797
        %v5034 = vpack.c.b16 %v4806, %v4802
        %v5035 = vpack.c.b16 %v4807, %v4803
        %v5036 = vpack.c.b16 %v4808, %v4804
        %v5037 = vpack.c.b16 %v4809, %v4805
        %v5038 = vpack.c.b16 %v4814, %v4810
        %v5039 = vpack.c.b16 %v4815, %v4811
        %v5040 = vpack.c.b16 %v4816, %v4812
        %v5041 = vpack.c.b16 %v4817, %v4813
        %v5042 = vpack.c.b16 %v4822, %v4818
        %v5043 = vpack.c.b16 %v4823, %v4819
        %v5044 = vpack.c.b16 %v4824, %v4820
        %v5045 = vpack.c.b16 %v4825, %v4821
        %v5046 = vpack.c.b16 %v4830, %v4826
        %v5047 = vpack.c.b16 %v4831, %v4827
        %v5048 = vpack.c.b16 %v4832, %v4828
        %v5049 = vpack.c.b16 %v4833, %v4829
        %v5050 = vpack.c.b16 %v4838, %v4834
        %v5051 = vpack.c.b16 %v4839, %v4835
        %v5052 = vpack.c.b16 %v4840, %v4836
        %v5053 = vpack.c.b16 %v4841, %v4837
        %v5054 = vpack.c.b16 %v4846, %v4842
        %v5055 = vpack.c.b16 %v4847, %v4843
        %v5056 = vpack.c.b16 %v4848, %v4844
        %v5057 = vpack.c.b16 %v4849, %v4845
        %v5058 = vpack.c.b16 %v4854, %v4850
        %v5059 = vpack.c.b16 %v4855, %v4851
        %v5060 = vpack.c.b16 %v4856, %v4852
        %v5061 = vpack.c.b16 %v4857, %v4853
        %v5062 = vpack.c.b16 %v4862, %v4858
        %v5063 = vpack.c.b16 %v4863, %v4859
        %v5064 = vpack.c.b16 %v4864, %v4860
        %v5065 = vpack.c.b16 %v4865, %v4861
        %v5066 = vpack.c.b16 %v4870, %v4866
        %v5067 = vpack.c.b16 %v4871, %v4867
        %v5068 = vpack.c.b16 %v4872, %v4868
        %v5069 = vpack.c.b16 %v4873, %v4869
        %v5070 = vpack.c.b16 %v4878, %v4874
        %v5071 = vpack.c.b16 %v4879, %v4875
        %v5072 = vpack.c.b16 %v4880, %v4876
        %v5073 = vpack.c.b16 %v4881, %v4877
        %v5074 = vpack.c.b16 %v4886, %v4882
        %v5075 = vpack.c.b16 %v4887, %v4883
        %v5076 = vpack.c.b16 %v4888, %v4884
        %v5077 = vpack.c.b16 %v4889, %v4885
        %v5078 = vpack.c.b16 %v4894, %v4890
        %v5079 = vpack.c.b16 %v4895, %v4891
        %v5080 = vpack.c.b16 %v4896, %v4892
        %v5081 = vpack.c.b16 %v4897, %v4893
        %v5082 = vpack.c.b16 %v4902, %v4898
        %v5083 = vpack.c.b16 %v4903, %v4899
        %v5084 = vpack.c.b16 %v4904, %v4900
        %v5085 = vpack.c.b16 %v4905, %v4901
        %v5086 = vpack.c.b16 %v4910, %v4906
        %v5087 = vpack.c.b16 %v4911, %v4907
        %v5088 = vpack.c.b16 %v4912, %v4908
        %v5089 = vpack.c.b16 %v4913, %v4909
        %v5090 = vpack.c.b16 %v4918, %v4914
        %v5091 = vpack.c.b16 %v4919, %v4915
        %v5092 = vpack.c.b16 %v4920, %v4916
        %v5093 = vpack.c.b16 %v4921, %v4917
        %v5094 = vpack.c.b16 %v4926, %v4922
        %v5095 = vpack.c.b16 %v4927, %v4923
        %v5096 = vpack.c.b16 %v4928, %v4924
        %v5097 = vpack.c.b16 %v4929, %v4925
        %v5098 = vpack.c.b16 %v4934, %v4930
        %v5099 = vpack.c.b16 %v4935, %v4931
        %v5100 = vpack.c.b16 %v4936, %v4932
        %v5101 = vpack.c.b16 %v4937, %v4933
        %v5102 = vpack.c.b16 %v4942, %v4938
        %v5103 = vpack.c.b16 %v4943, %v4939
        %v5104 = vpack.c.b16 %v4944, %v4940
        %v5105 = vpack.c.b16 %v4945, %v4941
        %v5106 = vpack.c.b16 %v4950, %v4946
        %v5107 = vpack.c.b16 %v4951, %v4947
        %v5108 = vpack.c.b16 %v4952, %v4948
        %v5109 = vpack.c.b16 %v4953, %v4949
        %v5110 = vpack.c.b16 %v4958, %v4954
        %v5111 = vpack.c.b16 %v4959, %v4955
        %v5112 = vpack.c.b16 %v4960, %v4956
        %v5113 = vpack.c.b16 %v4961, %v4957
        %v5114 = vpack.c.b16 %v4966, %v4962
        %v5115 = vpack.c.b16 %v4967, %v4963
        %v5116 = vpack.c.b16 %v4968, %v4964
        %v5117 = vpack.c.b16 %v4969, %v4965
        %v5118 = vpack.c.b16 %v4974, %v4970
        %v5119 = vpack.c.b16 %v4975, %v4971
        %v5120 = vpack.c.b16 %v4976, %v4972
        %v5121 = vpack.c.b16 %v4977, %v4973
        %v5122 = vpack.c.b16 %v4982, %v4978
        %v5123 = vpack.c.b16 %v4983, %v4979
        %v5124 = vpack.c.b16 %v4984, %v4980
        %v5125 = vpack.c.b16 %v4985, %v4981
        %v5126 = vpack.c.b16 %v4990, %v4986
        %v5127 = vpack.c.b16 %v4991, %v4987
        %v5128 = vpack.c.b16 %v4992, %v4988
        %v5129 = vpack.c.b16 %v4993, %v4989
        %v5130 = vpack.c.b16 %v4998, %v4994
        %v5131 = vpack.c.b16 %v4999, %v4995
        %v5132 = vpack.c.b16 %v5000, %v4996
        %v5133 = vpack.c.b16 %v5001, %v4997
        %v5134 = vpack.c.b16 %v5006, %v5002
        %v5135 = vpack.c.b16 %v5007, %v5003
        %v5136 = vpack.c.b16 %v5008, %v5004
        %v5137 = vpack.c.b16 %v5009, %v5005
        %5266 = vmatprep.subr.bf16.mxu0 %v5011
        %5267 = vmatpush1.bf16.msra.mxu0 %v5010
        %5268 = vmatprep.subr.bf16.mxu0 %v5015
        %5269 = vmatpush1.bf16.msra.mxu0 %v5014
        %5270 = vmatprep.subr.bf16.mxu0 %v5019
        %5271 = vmatpush1.bf16.msra.mxu0 %v5018
        %5272 = vmatprep.subr.bf16.mxu0 %v5023
        %5273 = vmatpush1.bf16.msra.mxu0 %v5022
        %5274 = vmatprep.subr.bf16.mxu0 %v5027
        %5275 = vmatpush1.bf16.msra.mxu0 %v5026
        %5276 = vmatprep.subr.bf16.mxu0 %v5031
        %5277 = vmatpush1.bf16.msra.mxu0 %v5030
        %5278 = vmatprep.subr.bf16.mxu0 %v5035
        %5279 = vmatpush1.bf16.msra.mxu0 %v5034
        %5280 = vmatprep.subr.bf16.mxu0 %v5039
        %5281 = vmatpush1.bf16.msra.mxu0 %v5038
        %5282 = vmatprep.subr.bf16.mxu0 %v5043
        %5283 = vmatpush1.bf16.msra.mxu0 %v5042
        %5284 = vmatprep.subr.bf16.mxu0 %v5047
        %5285 = vmatpush1.bf16.msra.mxu0 %v5046
        %5286 = vmatprep.subr.bf16.mxu0 %v5051
        %5287 = vmatpush1.bf16.msra.mxu0 %v5050
        %5288 = vmatprep.subr.bf16.mxu0 %v5055
        %5289 = vmatpush1.bf16.msra.mxu0 %v5054
        %5290 = vmatprep.subr.bf16.mxu0 %v5059
        %5291 = vmatpush1.bf16.msra.mxu0 %v5058
        %5292 = vmatprep.subr.bf16.mxu0 %v5063
        %5293 = vmatpush1.bf16.msra.mxu0 %v5062
        %5294 = vmatprep.subr.bf16.mxu0 %v5067
        %5295 = vmatpush1.bf16.msra.mxu0 %v5066
        %5296 = vmatprep.subr.bf16.mxu0 %v5071
        %5297 = vmatpush1.bf16.msra.mxu0 %v5070
        %5298 = vmatprep.mubr.bf16.mxu0 %v4619
        %5299 = vmatmul.mubr.bf16.gmra.mrb[0].mxu0 %v4618
        %v5300 = vpop.f32.mrb[0].mxu0
        %v5301 = vadd.f32 0.0, %v5300
        %v5302 = vpop.f32.mrb[0].mxu0
        %v5303 = vadd.f32 0.0, %v5302
        %v5304 = vpop.f32.mrb[0].mxu0
        %v5305 = vadd.f32 0.0, %v5304
        %v5306 = vpop.f32.mrb[0].mxu0
        %v5307 = vadd.f32 0.0, %v5306
        %5308 = vdwg.mxu0
        %5309 = vmatprep.subr.bf16.mxu0 %v5075
        %5310 = vmatpush1.bf16.msra.mxu0 %v5074
        %5311 = vmatprep.subr.bf16.mxu0 %v5079
        %5312 = vmatpush1.bf16.msra.mxu0 %v5078
        %5313 = vmatprep.subr.bf16.mxu0 %v5083
        %5314 = vmatpush1.bf16.msra.mxu0 %v5082
        %5315 = vmatprep.subr.bf16.mxu0 %v5087
        %5316 = vmatpush1.bf16.msra.mxu0 %v5086
        %5317 = vmatprep.subr.bf16.mxu0 %v5091
        %5318 = vmatpush1.bf16.msra.mxu0 %v5090
        %5319 = vmatprep.subr.bf16.mxu0 %v5095
        %5320 = vmatpush1.bf16.msra.mxu0 %v5094
        %5321 = vmatprep.subr.bf16.mxu0 %v5099
        %5322 = vmatpush1.bf16.msra.mxu0 %v5098
        %5323 = vmatprep.subr.bf16.mxu0 %v5103
        %5324 = vmatpush1.bf16.msra.mxu0 %v5102
        %5325 = vmatprep.subr.bf16.mxu0 %v5107
        %5326 = vmatpush1.bf16.msra.mxu0 %v5106
        %5327 = vmatprep.subr.bf16.mxu0 %v5111
        %5328 = vmatpush1.bf16.msra.mxu0 %v5110
        %5329 = vmatprep.subr.bf16.mxu0 %v5115
        %5330 = vmatpush1.bf16.msra.mxu0 %v5114
        %5331 = vmatprep.subr.bf16.mxu0 %v5119
        %5332 = vmatpush1.bf16.msra.mxu0 %v5118
        %5333 = vmatprep.subr.bf16.mxu0 %v5123
        %5334 = vmatpush1.bf16.msra.mxu0 %v5122
        %5335 = vmatprep.subr.bf16.mxu0 %v5127
        %5336 = vmatpush1.bf16.msra.mxu0 %v5126
        %5337 = vmatprep.subr.bf16.mxu0 %v5131
        %5338 = vmatpush1.bf16.msra.mxu0 %v5130
        %5339 = vmatprep.subr.bf16.mxu0 %v5135
        %5340 = vmatpush1.bf16.msra.mxu0 %v5134
        %5341 = vmatprep.mubr.bf16.mxu0 %v4621
        %5342 = vmatmul.mubr.bf16.gmra.mrb[0].mxu0 %v4620
        %v5343 = vpop.f32.mrb[0].mxu0
        %v5344 = vadd.f32 %v5301, %v5343
        %v5345 = vpop.f32.mrb[0].mxu0
        %v5346 = vadd.f32 %v5303, %v5345
        %v5347 = vpop.f32.mrb[0].mxu0
        %v5348 = vadd.f32 %v5305, %v5347
        %v5349 = vpop.f32.mrb[0].mxu0
        %v5350 = vadd.f32 %v5307, %v5349
        %5351 = vdwg.mxu0
        %5352 = vmatprep.subr.bf16.mxu0 %v5013
        %5353 = vmatpush1.bf16.msra.mxu0 %v5012
        %5354 = vmatprep.subr.bf16.mxu0 %v5017
        %5355 = vmatpush1.bf16.msra.mxu0 %v5016
        %5356 = vmatprep.subr.bf16.mxu0 %v5021
        %5357 = vmatpush1.bf16.msra.mxu0 %v5020
        %5358 = vmatprep.subr.bf16.mxu0 %v5025
        %5359 = vmatpush1.bf16.msra.mxu0 %v5024
        %5360 = vmatprep.subr.bf16.mxu0 %v5029
        %5361 = vmatpush1.bf16.msra.mxu0 %v5028
        %5362 = vmatprep.subr.bf16.mxu0 %v5033
        %5363 = vmatpush1.bf16.msra.mxu0 %v5032
        %5364 = vmatprep.subr.bf16.mxu0 %v5037
        %5365 = vmatpush1.bf16.msra.mxu0 %v5036
        %5366 = vmatprep.subr.bf16.mxu0 %v5041
        %5367 = vmatpush1.bf16.msra.mxu0 %v5040
        %5368 = vmatprep.subr.bf16.mxu0 %v5045
        %5369 = vmatpush1.bf16.msra.mxu0 %v5044
        %5370 = vmatprep.subr.bf16.mxu0 %v5049
        %5371 = vmatpush1.bf16.msra.mxu0 %v5048
        %5372 = vmatprep.subr.bf16.mxu0 %v5053
        %5373 = vmatpush1.bf16.msra.mxu0 %v5052
        %5374 = vmatprep.subr.bf16.mxu0 %v5057
        %5375 = vmatpush1.bf16.msra.mxu0 %v5056
        %5376 = vmatprep.subr.bf16.mxu0 %v5061
        %5377 = vmatpush1.bf16.msra.mxu0 %v5060
        %5378 = vmatprep.subr.bf16.mxu0 %v5065
        %5379 = vmatpush1.bf16.msra.mxu0 %v5064
        %5380 = vmatprep.subr.bf16.mxu0 %v5069
        %5381 = vmatpush1.bf16.msra.mxu0 %v5068
        %5382 = vmatprep.subr.bf16.mxu0 %v5073
        %5383 = vmatpush1.bf16.msra.mxu0 %v5072
        %5384 = vmatprep.mubr.bf16.mxu0 %v4619
        %5385 = vmatmul.mubr.bf16.gmra.mrb[0].mxu0 %v4618
        %v5386 = vpop.f32.mrb[0].mxu0
        %v5387 = vadd.f32 0.0, %v5386
        %v5388 = vpop.f32.mrb[0].mxu0
        %v5389 = vadd.f32 0.0, %v5388
        %v5390 = vpop.f32.mrb[0].mxu0
        %v5391 = vadd.f32 0.0, %v5390
        %v5392 = vpop.f32.mrb[0].mxu0
        %v5393 = vadd.f32 0.0, %v5392
        %5394 = vdwg.mxu0
        %5395 = vmatprep.subr.bf16.mxu0 %v5077
        %5396 = vmatpush1.bf16.msra.mxu0 %v5076
        %5397 = vmatprep.subr.bf16.mxu0 %v5081
        %5398 = vmatpush1.bf16.msra.mxu0 %v5080
        %5399 = vmatprep.subr.bf16.mxu0 %v5085
        %5400 = vmatpush1.bf16.msra.mxu0 %v5084
        %5401 = vmatprep.subr.bf16.mxu0 %v5089
        %5402 = vmatpush1.bf16.msra.mxu0 %v5088
        %5403 = vmatprep.subr.bf16.mxu0 %v5093
        %5404 = vmatpush1.bf16.msra.mxu0 %v5092
        %5405 = vmatprep.subr.bf16.mxu0 %v5097
        %5406 = vmatpush1.bf16.msra.mxu0 %v5096
        %5407 = vmatprep.subr.bf16.mxu0 %v5101
        %5408 = vmatpush1.bf16.msra.mxu0 %v5100
        %5409 = vmatprep.subr.bf16.mxu0 %v5105
        %5410 = vmatpush1.bf16.msra.mxu0 %v5104
        %5411 = vmatprep.subr.bf16.mxu0 %v5109
        %5412 = vmatpush1.bf16.msra.mxu0 %v5108
        %5413 = vmatprep.subr.bf16.mxu0 %v5113
        %5414 = vmatpush1.bf16.msra.mxu0 %v5112
        %5415 = vmatprep.subr.bf16.mxu0 %v5117
        %5416 = vmatpush1.bf16.msra.mxu0 %v5116
        %5417 = vmatprep.subr.bf16.mxu0 %v5121
        %5418 = vmatpush1.bf16.msra.mxu0 %v5120
        %5419 = vmatprep.subr.bf16.mxu0 %v5125
        %5420 = vmatpush1.bf16.msra.mxu0 %v5124
        %5421 = vmatprep.subr.bf16.mxu0 %v5129
        %5422 = vmatpush1.bf16.msra.mxu0 %v5128
        %5423 = vmatprep.subr.bf16.mxu0 %v5133
        %5424 = vmatpush1.bf16.msra.mxu0 %v5132
        %5425 = vmatprep.subr.bf16.mxu0 %v5137
        %5426 = vmatpush1.bf16.msra.mxu0 %v5136
        %5427 = vmatprep.mubr.bf16.mxu0 %v4621
        %5428 = vmatmul.mubr.bf16.gmra.mrb[0].mxu0 %v4620
        %v5429 = vpop.f32.mrb[0].mxu0
        %v5430 = vadd.f32 %v5387, %v5429
        %v5431 = vpop.f32.mrb[0].mxu0
        %v5432 = vadd.f32 %v5389, %v5431
        %v5433 = vpop.f32.mrb[0].mxu0
        %v5434 = vadd.f32 %v5391, %v5433
        %v5435 = vpop.f32.mrb[0].mxu0
        %v5436 = vadd.f32 %v5393, %v5435
        %5437 = vdwg.mxu0
        %v5438 = vadd.f32 %v4462, %v5344
        %v5439 = vadd.f32 %v4463, %v5346
        %v5440 = vadd.f32 %v4464, %v5430
        %v5441 = vadd.f32 %v4465, %v5432
        %v5442 = vadd.f32 %v4466, %v5348
        %v5443 = vadd.f32 %v4467, %v5350
        %v5444 = vadd.f32 %v4468, %v5434
        %v5445 = vadd.f32 %v4469, %v5436
        %5446 = vst [vmem:[#allocation3] sm:$0xff] %v5438
        %5447 = vst [vmem:[#allocation3 + $0x8] sm:$0xff] %v5439
        %5448 = vst [vmem:[#allocation3 + $0x10] sm:$0xff] %v5440
        %5449 = vst [vmem:[#allocation3 + $0x18] sm:$0xff] %v5441
        %5450 = vst [vmem:[#allocation3 + $0x20] sm:$0xff] %v5442
        %5451 = vst [vmem:[#allocation3 + $0x28] sm:$0xff] %v5443
        %5452 = vst [vmem:[#allocation3 + $0x30] sm:$0xff] %v5444
        %5453 = vst [vmem:[#allocation3 + $0x38] sm:$0xff] %v5445
      $region84: #{forward.1} parent=71 // pred_fallthru
        _
      %p5454 = scmp.eq.s32.totalorder %s29, 1
      // Predicated region
      $region85: #{forward.1} parent=71 // pred_check
        %p5455 = pneg %p5454
      $region86: #{forward.1} parent=71 // pred_check_branch
        %5457 = sbr.rel (%p5455) target = $region88
      $region87: #{forward.1} parent=71 // pred_region
        %v5458 = vld [vmem:[#allocation2] sm:$0xff]
        %v5459 = vld [vmem:[#allocation2 + $0x8] sm:$0xff]
        %v5460 = vld [vmem:[#allocation2 + $0x10] sm:$0xff]
        %v5461 = vld [vmem:[#allocation2 + $0x18] sm:$0xff]
        %v5462 = vld [vmem:[#allocation2 + $0x20] sm:$0xff]
        %v5463 = vld [vmem:[#allocation2 + $0x28] sm:$0xff]
        %v5464 = vld [vmem:[#allocation2 + $0x30] sm:$0xff]
        %v5465 = vld [vmem:[#allocation2 + $0x38] sm:$0xff]
        %v5466 = vld [vmem:[%s4] sm:$0xf]
        %v5468 = vlaneseq
        %v5469 = vshrl.u32 %v5468, 7
        %v5470 = vsub.s32 0, %v5469
        %v5471 = vrot.slane %v5466, %v5470
        %v5472 = vlaneseq
        %v5473 = vshrl.u32 %v5472, 7
        %v5474 = vsub.s32 1, %v5473
        %v5475 = vrot.slane %v5466, %v5474
        %v5476 = vlaneseq
        %v5477 = vshrl.u32 %v5476, 7
        %v5478 = vsub.s32 2, %v5477
        %v5479 = vrot.slane %v5466, %v5478
        %v5480 = vlaneseq
        %v5481 = vshrl.u32 %v5480, 7
        %v5482 = vsub.s32 3, %v5481
        %v5483 = vrot.slane %v5466, %v5482
        %v5488 = vadd.f32 %v5458, %v5471
        %v5489 = vadd.f32 %v5459, %v5475
        %v5490 = vadd.f32 %v5460, %v5479
        %v5491 = vadd.f32 %v5461, %v5483
        %v5492 = vadd.f32 %v5462, %v5471
        %v5493 = vadd.f32 %v5463, %v5475
        %v5494 = vadd.f32 %v5464, %v5479
        %v5495 = vadd.f32 %v5465, %v5483
        %v5496 = vmax.f32 %v5488, 0.0
        %v5497 = vmax.f32 %v5489, 0.0
        %v5498 = vmax.f32 %v5490, 0.0
        %v5499 = vmax.f32 %v5491, 0.0
        %v5500 = vmax.f32 %v5492, 0.0
        %v5501 = vmax.f32 %v5493, 0.0
        %v5502 = vmax.f32 %v5494, 0.0
        %v5503 = vmax.f32 %v5495, 0.0
        %v5504 = vld [vmem:[#allocation3] sm:$0xff]
        %v5505 = vld [vmem:[#allocation3 + $0x8] sm:$0xff]
        %v5506 = vld [vmem:[#allocation3 + $0x10] sm:$0xff]
        %v5507 = vld [vmem:[#allocation3 + $0x18] sm:$0xff]
        %v5508 = vld [vmem:[#allocation3 + $0x20] sm:$0xff]
        %v5509 = vld [vmem:[#allocation3 + $0x28] sm:$0xff]
        %v5510 = vld [vmem:[#allocation3 + $0x30] sm:$0xff]
        %v5511 = vld [vmem:[#allocation3 + $0x38] sm:$0xff]
        %v5512 = vld [vmem:[%s5] sm:$0xf]
        %v5514 = vlaneseq
        %v5515 = vshrl.u32 %v5514, 7
        %v5516 = vsub.s32 0, %v5515
        %v5517 = vrot.slane %v5512, %v5516
        %v5518 = vlaneseq
        %v5519 = vshrl.u32 %v5518, 7
        %v5520 = vsub.s32 1, %v5519
        %v5521 = vrot.slane %v5512, %v5520
        %v5522 = vlaneseq
        %v5523 = vshrl.u32 %v5522, 7
        %v5524 = vsub.s32 2, %v5523
        %v5525 = vrot.slane %v5512, %v5524
        %v5526 = vlaneseq
        %v5527 = vshrl.u32 %v5526, 7
        %v5528 = vsub.s32 3, %v5527
        %v5529 = vrot.slane %v5512, %v5528
        %v5534 = vadd.f32 %v5504, %v5517
        %v5535 = vadd.f32 %v5505, %v5521
        %v5536 = vadd.f32 %v5506, %v5525
        %v5537 = vadd.f32 %v5507, %v5529
        %v5538 = vadd.f32 %v5508, %v5517
        %v5539 = vadd.f32 %v5509, %v5521
        %v5540 = vadd.f32 %v5510, %v5525
        %v5541 = vadd.f32 %v5511, %v5529
        %v5542 = vmax.f32 %v5534, 0.0
        %v5543 = vmax.f32 %v5535, 0.0
        %v5544 = vmax.f32 %v5536, 0.0
        %v5545 = vmax.f32 %v5537, 0.0
        %v5546 = vmax.f32 %v5538, 0.0
        %v5547 = vmax.f32 %v5539, 0.0
        %v5548 = vmax.f32 %v5540, 0.0
        %v5549 = vmax.f32 %v5541, 0.0
        %v5550 = vld [vmem:[%s6] sm:$0xff]
        %v5551 = vld [vmem:[%s6 + $0x8] sm:$0xff]
        %v5552 = vld [vmem:[%s6 + $0x10] sm:$0xff]
        %v5553 = vld [vmem:[%s6 + $0x18] sm:$0xff]
        %v5554 = vld [vmem:[%s6 + $0x20] sm:$0xff]
        %v5555 = vld [vmem:[%s6 + $0x28] sm:$0xff]
        %v5556 = vld [vmem:[%s6 + $0x30] sm:$0xff]
        %v5557 = vld [vmem:[%s6 + $0x38] sm:$0xff]
        %v5558 = vld [vmem:[%s6 + $0x40] sm:$0xff]
        %v5559 = vld [vmem:[%s6 + $0x48] sm:$0xff]
        %v5560 = vld [vmem:[%s6 + $0x50] sm:$0xff]
        %v5561 = vld [vmem:[%s6 + $0x58] sm:$0xff]
        %v5562 = vld [vmem:[%s6 + $0x60] sm:$0xff]
        %v5563 = vld [vmem:[%s6 + $0x68] sm:$0xff]
        %v5564 = vld [vmem:[%s6 + $0x70] sm:$0xff]
        %v5565 = vld [vmem:[%s6 + $0x78] sm:$0xff]
        %v5566 = vld [vmem:[%s6 + $0x80] sm:$0xff]
        %v5567 = vld [vmem:[%s6 + $0x88] sm:$0xff]
        %v5568 = vld [vmem:[%s6 + $0x90] sm:$0xff]
        %v5569 = vld [vmem:[%s6 + $0x98] sm:$0xff]
        %v5570 = vld [vmem:[%s6 + $0xa0] sm:$0xff]
        %v5571 = vld [vmem:[%s6 + $0xa8] sm:$0xff]
        %v5572 = vld [vmem:[%s6 + $0xb0] sm:$0xff]
        %v5573 = vld [vmem:[%s6 + $0xb8] sm:$0xff]
        %v5574 = vld [vmem:[%s6 + $0xc0] sm:$0xff]
        %v5575 = vld [vmem:[%s6 + $0xc8] sm:$0xff]
        %v5576 = vld [vmem:[%s6 + $0xd0] sm:$0xff]
        %v5577 = vld [vmem:[%s6 + $0xd8] sm:$0xff]
        %v5578 = vld [vmem:[%s6 + $0xe0] sm:$0xff]
        %v5579 = vld [vmem:[%s6 + $0xe8] sm:$0xff]
        %v5580 = vld [vmem:[%s6 + $0xf0] sm:$0xff]
        %v5581 = vld [vmem:[%s6 + $0xf8] sm:$0xff]
        %v5582 = vld [vmem:[%s6 + $0x100] sm:$0xff]
        %v5583 = vld [vmem:[%s6 + $0x108] sm:$0xff]
        %v5584 = vld [vmem:[%s6 + $0x110] sm:$0xff]
        %v5585 = vld [vmem:[%s6 + $0x118] sm:$0xff]
        %v5586 = vld [vmem:[%s6 + $0x120] sm:$0xff]
        %v5587 = vld [vmem:[%s6 + $0x128] sm:$0xff]
        %v5588 = vld [vmem:[%s6 + $0x130] sm:$0xff]
        %v5589 = vld [vmem:[%s6 + $0x138] sm:$0xff]
        %v5590 = vld [vmem:[%s6 + $0x140] sm:$0xff]
        %v5591 = vld [vmem:[%s6 + $0x148] sm:$0xff]
        %v5592 = vld [vmem:[%s6 + $0x150] sm:$0xff]
        %v5593 = vld [vmem:[%s6 + $0x158] sm:$0xff]
        %v5594 = vld [vmem:[%s6 + $0x160] sm:$0xff]
        %v5595 = vld [vmem:[%s6 + $0x168] sm:$0xff]
        %v5596 = vld [vmem:[%s6 + $0x170] sm:$0xff]
        %v5597 = vld [vmem:[%s6 + $0x178] sm:$0xff]
        %v5598 = vld [vmem:[%s6 + $0x180] sm:$0xff]
        %v5599 = vld [vmem:[%s6 + $0x188] sm:$0xff]
        %v5600 = vld [vmem:[%s6 + $0x190] sm:$0xff]
        %v5601 = vld [vmem:[%s6 + $0x198] sm:$0xff]
        %v5602 = vld [vmem:[%s6 + $0x1a0] sm:$0xff]
        %v5603 = vld [vmem:[%s6 + $0x1a8] sm:$0xff]
        %v5604 = vld [vmem:[%s6 + $0x1b0] sm:$0xff]
        %v5605 = vld [vmem:[%s6 + $0x1b8] sm:$0xff]
        %v5606 = vld [vmem:[%s6 + $0x1c0] sm:$0xff]
        %v5607 = vld [vmem:[%s6 + $0x1c8] sm:$0xff]
        %v5608 = vld [vmem:[%s6 + $0x1d0] sm:$0xff]
        %v5609 = vld [vmem:[%s6 + $0x1d8] sm:$0xff]
        %v5610 = vld [vmem:[%s6 + $0x1e0] sm:$0xff]
        %v5611 = vld [vmem:[%s6 + $0x1e8] sm:$0xff]
        %v5612 = vld [vmem:[%s6 + $0x1f0] sm:$0xff]
        %v5613 = vld [vmem:[%s6 + $0x1f8] sm:$0xff]
        %v5614 = vld [vmem:[%s7] sm:$0xff]
        %v5615 = vld [vmem:[%s7 + $0x8] sm:$0xff]
        %v5616 = vld [vmem:[%s7 + $0x10] sm:$0xff]
        %v5617 = vld [vmem:[%s7 + $0x18] sm:$0xff]
        %v5618 = vld [vmem:[%s7 + $0x20] sm:$0xff]
        %v5619 = vld [vmem:[%s7 + $0x28] sm:$0xff]
        %v5620 = vld [vmem:[%s7 + $0x30] sm:$0xff]
        %v5621 = vld [vmem:[%s7 + $0x38] sm:$0xff]
        %v5622 = vld [vmem:[%s7 + $0x40] sm:$0xff]
        %v5623 = vld [vmem:[%s7 + $0x48] sm:$0xff]
        %v5624 = vld [vmem:[%s7 + $0x50] sm:$0xff]
        %v5625 = vld [vmem:[%s7 + $0x58] sm:$0xff]
        %v5626 = vld [vmem:[%s7 + $0x60] sm:$0xff]
        %v5627 = vld [vmem:[%s7 + $0x68] sm:$0xff]
        %v5628 = vld [vmem:[%s7 + $0x70] sm:$0xff]
        %v5629 = vld [vmem:[%s7 + $0x78] sm:$0xff]
        %v5630 = vld [vmem:[%s7 + $0x80] sm:$0xff]
        %v5631 = vld [vmem:[%s7 + $0x88] sm:$0xff]
        %v5632 = vld [vmem:[%s7 + $0x90] sm:$0xff]
        %v5633 = vld [vmem:[%s7 + $0x98] sm:$0xff]
        %v5634 = vld [vmem:[%s7 + $0xa0] sm:$0xff]
        %v5635 = vld [vmem:[%s7 + $0xa8] sm:$0xff]
        %v5636 = vld [vmem:[%s7 + $0xb0] sm:$0xff]
        %v5637 = vld [vmem:[%s7 + $0xb8] sm:$0xff]
        %v5638 = vld [vmem:[%s7 + $0xc0] sm:$0xff]
        %v5639 = vld [vmem:[%s7 + $0xc8] sm:$0xff]
        %v5640 = vld [vmem:[%s7 + $0xd0] sm:$0xff]
        %v5641 = vld [vmem:[%s7 + $0xd8] sm:$0xff]
        %v5642 = vld [vmem:[%s7 + $0xe0] sm:$0xff]
        %v5643 = vld [vmem:[%s7 + $0xe8] sm:$0xff]
        %v5644 = vld [vmem:[%s7 + $0xf0] sm:$0xff]
        %v5645 = vld [vmem:[%s7 + $0xf8] sm:$0xff]
        %v5646 = vld [vmem:[%s7 + $0x100] sm:$0xff]
        %v5647 = vld [vmem:[%s7 + $0x108] sm:$0xff]
        %v5648 = vld [vmem:[%s7 + $0x110] sm:$0xff]
        %v5649 = vld [vmem:[%s7 + $0x118] sm:$0xff]
        %v5650 = vld [vmem:[%s7 + $0x120] sm:$0xff]
        %v5651 = vld [vmem:[%s7 + $0x128] sm:$0xff]
        %v5652 = vld [vmem:[%s7 + $0x130] sm:$0xff]
        %v5653 = vld [vmem:[%s7 + $0x138] sm:$0xff]
        %v5654 = vld [vmem:[%s7 + $0x140] sm:$0xff]
        %v5655 = vld [vmem:[%s7 + $0x148] sm:$0xff]
        %v5656 = vld [vmem:[%s7 + $0x150] sm:$0xff]
        %v5657 = vld [vmem:[%s7 + $0x158] sm:$0xff]
        %v5658 = vld [vmem:[%s7 + $0x160] sm:$0xff]
        %v5659 = vld [vmem:[%s7 + $0x168] sm:$0xff]
        %v5660 = vld [vmem:[%s7 + $0x170] sm:$0xff]
        %v5661 = vld [vmem:[%s7 + $0x178] sm:$0xff]
        %v5662 = vld [vmem:[%s7 + $0x180] sm:$0xff]
        %v5663 = vld [vmem:[%s7 + $0x188] sm:$0xff]
        %v5664 = vld [vmem:[%s7 + $0x190] sm:$0xff]
        %v5665 = vld [vmem:[%s7 + $0x198] sm:$0xff]
        %v5666 = vld [vmem:[%s7 + $0x1a0] sm:$0xff]
        %v5667 = vld [vmem:[%s7 + $0x1a8] sm:$0xff]
        %v5668 = vld [vmem:[%s7 + $0x1b0] sm:$0xff]
        %v5669 = vld [vmem:[%s7 + $0x1b8] sm:$0xff]
        %v5670 = vld [vmem:[%s7 + $0x1c0] sm:$0xff]
        %v5671 = vld [vmem:[%s7 + $0x1c8] sm:$0xff]
        %v5672 = vld [vmem:[%s7 + $0x1d0] sm:$0xff]
        %v5673 = vld [vmem:[%s7 + $0x1d8] sm:$0xff]
        %v5674 = vld [vmem:[%s7 + $0x1e0] sm:$0xff]
        %v5675 = vld [vmem:[%s7 + $0x1e8] sm:$0xff]
        %v5676 = vld [vmem:[%s7 + $0x1f0] sm:$0xff]
        %v5677 = vld [vmem:[%s7 + $0x1f8] sm:$0xff]
        %5678 = vmatprep.subr.mxu0 0.0
        %5679 = vmatpush1.msra.mxu0 %v5614
        %5680 = vmatprep.subr.mxu0 0.0
        %5681 = vmatpush1.msra.mxu0 %v5615
        %5682 = vmatprep.subr.mxu0 0.0
        %5683 = vmatpush1.msra.mxu0 %v5616
        %5684 = vmatprep.subr.mxu0 0.0
        %5685 = vmatpush1.msra.mxu0 %v5617
        %5686 = vmatprep.subr.mxu0 0.0
        %5687 = vmatpush1.msra.mxu0 %v5618
        %5688 = vmatprep.subr.mxu0 0.0
        %5689 = vmatpush1.msra.mxu0 %v5619
        %5690 = vmatprep.subr.mxu0 0.0
        %5691 = vmatpush1.msra.mxu0 %v5620
        %5692 = vmatprep.subr.mxu0 0.0
        %5693 = vmatpush1.msra.mxu0 %v5621
        %5694 = vmatprep.subr.mxu0 0.0
        %5695 = vmatpush1.msra.mxu0 %v5622
        %5696 = vmatprep.subr.mxu0 0.0
        %5697 = vmatpush1.msra.mxu0 %v5623
        %5698 = vmatprep.subr.mxu0 0.0
        %5699 = vmatpush1.msra.mxu0 %v5624
        %5700 = vmatprep.subr.mxu0 0.0
        %5701 = vmatpush1.msra.mxu0 %v5625
        %5702 = vmatprep.subr.mxu0 0.0
        %5703 = vmatpush1.msra.mxu0 %v5626
        %5704 = vmatprep.subr.mxu0 0.0
        %5705 = vmatpush1.msra.mxu0 %v5627
        %5706 = vmatprep.subr.mxu0 0.0
        %5707 = vmatpush1.msra.mxu0 %v5628
        %5708 = vmatprep.subr.mxu0 0.0
        %5709 = vmatpush1.msra.mxu0 %v5629
        %5710 = vmatprep.subr.mxu0 0.0
        %5711 = vmatpush1.msra.mxu0 %v5630
        %5712 = vmatprep.subr.mxu0 0.0
        %5713 = vmatpush1.msra.mxu0 %v5631
        %5714 = vmatprep.subr.mxu0 0.0
        %5715 = vmatpush1.msra.mxu0 %v5632
        %5716 = vmatprep.subr.mxu0 0.0
        %5717 = vmatpush1.msra.mxu0 %v5633
        %5718 = vmatprep.subr.mxu0 0.0
        %5719 = vmatpush1.msra.mxu0 %v5634
        %5720 = vmatprep.subr.mxu0 0.0
        %5721 = vmatpush1.msra.mxu0 %v5635
        %5722 = vmatprep.subr.mxu0 0.0
        %5723 = vmatpush1.msra.mxu0 %v5636
        %5724 = vmatprep.subr.mxu0 0.0
        %5725 = vmatpush1.msra.mxu0 %v5637
        %5726 = vmatprep.subr.mxu0 0.0
        %5727 = vmatpush1.msra.mxu0 %v5638
        %5728 = vmatprep.subr.mxu0 0.0
        %5729 = vmatpush1.msra.mxu0 %v5639
        %5730 = vmatprep.subr.mxu0 0.0
        %5731 = vmatpush1.msra.mxu0 %v5640
        %5732 = vmatprep.subr.mxu0 0.0
        %5733 = vmatpush1.msra.mxu0 %v5641
        %5734 = vmatprep.subr.mxu0 0.0
        %5735 = vmatpush1.msra.mxu0 %v5642
        %5736 = vmatprep.subr.mxu0 0.0
        %5737 = vmatpush1.msra.mxu0 %v5643
        %5738 = vmatprep.subr.mxu0 0.0
        %5739 = vmatpush1.msra.mxu0 %v5644
        %5740 = vmatprep.subr.mxu0 0.0
        %5741 = vmatpush1.msra.mxu0 %v5645
        %5742 = vmatprep.mubr.f32.mxu0 %v5543
        %5743 = vmatmul.mubr.f32.gmra.mrb[0].mxu0 %v5542
        %v5744 = vpop.f32.mrb[0].mxu0
        %v5745 = vadd.f32 0.0, %v5744
        %v5746 = vpop.f32.mrb[0].mxu0
        %5747 = vmatprep.mubr.f32.mxu0 %v5547
        %5748 = vmatmul.mubr.f32.gmra.mrb[0].mxu0 %v5546
        %v5749 = vpop.f32.mrb[0].mxu0
        %v5750 = vadd.f32 0.0, %v5749
        %v5751 = vpop.f32.mrb[0].mxu0
        %5752 = vdwg.mxu0
        %5753 = vmatprep.subr.mxu0 0.0
        %5754 = vmatpush1.msra.mxu0 %v5646
        %5755 = vmatprep.subr.mxu0 0.0
        %5756 = vmatpush1.msra.mxu0 %v5647
        %5757 = vmatprep.subr.mxu0 0.0
        %5758 = vmatpush1.msra.mxu0 %v5648
        %5759 = vmatprep.subr.mxu0 0.0
        %5760 = vmatpush1.msra.mxu0 %v5649
        %5761 = vmatprep.subr.mxu0 0.0
        %5762 = vmatpush1.msra.mxu0 %v5650
        %5763 = vmatprep.subr.mxu0 0.0
        %5764 = vmatpush1.msra.mxu0 %v5651
        %5765 = vmatprep.subr.mxu0 0.0
        %5766 = vmatpush1.msra.mxu0 %v5652
        %5767 = vmatprep.subr.mxu0 0.0
        %5768 = vmatpush1.msra.mxu0 %v5653
        %5769 = vmatprep.subr.mxu0 0.0
        %5770 = vmatpush1.msra.mxu0 %v5654
        %5771 = vmatprep.subr.mxu0 0.0
        %5772 = vmatpush1.msra.mxu0 %v5655
        %5773 = vmatprep.subr.mxu0 0.0
        %5774 = vmatpush1.msra.mxu0 %v5656
        %5775 = vmatprep.subr.mxu0 0.0
        %5776 = vmatpush1.msra.mxu0 %v5657
        %5777 = vmatprep.subr.mxu0 0.0
        %5778 = vmatpush1.msra.mxu0 %v5658
        %5779 = vmatprep.subr.mxu0 0.0
        %5780 = vmatpush1.msra.mxu0 %v5659
        %5781 = vmatprep.subr.mxu0 0.0
        %5782 = vmatpush1.msra.mxu0 %v5660
        %5783 = vmatprep.subr.mxu0 0.0
        %5784 = vmatpush1.msra.mxu0 %v5661
        %5785 = vmatprep.subr.mxu0 0.0
        %5786 = vmatpush1.msra.mxu0 %v5662
        %5787 = vmatprep.subr.mxu0 0.0
        %5788 = vmatpush1.msra.mxu0 %v5663
        %5789 = vmatprep.subr.mxu0 0.0
        %5790 = vmatpush1.msra.mxu0 %v5664
        %5791 = vmatprep.subr.mxu0 0.0
        %5792 = vmatpush1.msra.mxu0 %v5665
        %5793 = vmatprep.subr.mxu0 0.0
        %5794 = vmatpush1.msra.mxu0 %v5666
        %5795 = vmatprep.subr.mxu0 0.0
        %5796 = vmatpush1.msra.mxu0 %v5667
        %5797 = vmatprep.subr.mxu0 0.0
        %5798 = vmatpush1.msra.mxu0 %v5668
        %5799 = vmatprep.subr.mxu0 0.0
        %5800 = vmatpush1.msra.mxu0 %v5669
        %5801 = vmatprep.subr.mxu0 0.0
        %5802 = vmatpush1.msra.mxu0 %v5670
        %5803 = vmatprep.subr.mxu0 0.0
        %5804 = vmatpush1.msra.mxu0 %v5671
        %5805 = vmatprep.subr.mxu0 0.0
        %5806 = vmatpush1.msra.mxu0 %v5672
        %5807 = vmatprep.subr.mxu0 0.0
        %5808 = vmatpush1.msra.mxu0 %v5673
        %5809 = vmatprep.subr.mxu0 0.0
        %5810 = vmatpush1.msra.mxu0 %v5674
        %5811 = vmatprep.subr.mxu0 0.0
        %5812 = vmatpush1.msra.mxu0 %v5675
        %5813 = vmatprep.subr.mxu0 0.0
        %5814 = vmatpush1.msra.mxu0 %v5676
        %5815 = vmatprep.subr.mxu0 0.0
        %5816 = vmatpush1.msra.mxu0 %v5677
        %5817 = vmatprep.mubr.f32.mxu0 %v5545
        %5818 = vmatmul.mubr.f32.gmra.mrb[0].mxu0 %v5544
        %v5819 = vpop.f32.mrb[0].mxu0
        %v5820 = vadd.f32 %v5745, %v5819
        %v5821 = vpop.f32.mrb[0].mxu0
        %5822 = vmatprep.mubr.f32.mxu0 %v5549
        %5823 = vmatmul.mubr.f32.gmra.mrb[0].mxu0 %v5548
        %v5824 = vpop.f32.mrb[0].mxu0
        %v5825 = vadd.f32 %v5750, %v5824
        %v5826 = vpop.f32.mrb[0].mxu0
        %5827 = vdwg.mxu0
        %5828 = vmatprep.subr.mxu0 0.0
        %5829 = vmatpush1.msra.mxu0 %v5550
        %5830 = vmatprep.subr.mxu0 0.0
        %5831 = vmatpush1.msra.mxu0 %v5551
        %5832 = vmatprep.subr.mxu0 0.0
        %5833 = vmatpush1.msra.mxu0 %v5552
        %5834 = vmatprep.subr.mxu0 0.0
        %5835 = vmatpush1.msra.mxu0 %v5553
        %5836 = vmatprep.subr.mxu0 0.0
        %5837 = vmatpush1.msra.mxu0 %v5554
        %5838 = vmatprep.subr.mxu0 0.0
        %5839 = vmatpush1.msra.mxu0 %v5555
        %5840 = vmatprep.subr.mxu0 0.0
        %5841 = vmatpush1.msra.mxu0 %v5556
        %5842 = vmatprep.subr.mxu0 0.0
        %5843 = vmatpush1.msra.mxu0 %v5557
        %5844 = vmatprep.subr.mxu0 0.0
        %5845 = vmatpush1.msra.mxu0 %v5558
        %5846 = vmatprep.subr.mxu0 0.0
        %5847 = vmatpush1.msra.mxu0 %v5559
        %5848 = vmatprep.subr.mxu0 0.0
        %5849 = vmatpush1.msra.mxu0 %v5560
        %5850 = vmatprep.subr.mxu0 0.0
        %5851 = vmatpush1.msra.mxu0 %v5561
        %5852 = vmatprep.subr.mxu0 0.0
        %5853 = vmatpush1.msra.mxu0 %v5562
        %5854 = vmatprep.subr.mxu0 0.0
        %5855 = vmatpush1.msra.mxu0 %v5563
        %5856 = vmatprep.subr.mxu0 0.0
        %5857 = vmatpush1.msra.mxu0 %v5564
        %5858 = vmatprep.subr.mxu0 0.0
        %5859 = vmatpush1.msra.mxu0 %v5565
        %5860 = vmatprep.subr.mxu0 0.0
        %5861 = vmatpush1.msra.mxu0 %v5566
        %5862 = vmatprep.subr.mxu0 0.0
        %5863 = vmatpush1.msra.mxu0 %v5567
        %5864 = vmatprep.subr.mxu0 0.0
        %5865 = vmatpush1.msra.mxu0 %v5568
        %5866 = vmatprep.subr.mxu0 0.0
        %5867 = vmatpush1.msra.mxu0 %v5569
        %5868 = vmatprep.subr.mxu0 0.0
        %5869 = vmatpush1.msra.mxu0 %v5570
        %5870 = vmatprep.subr.mxu0 0.0
        %5871 = vmatpush1.msra.mxu0 %v5571
        %5872 = vmatprep.subr.mxu0 0.0
        %5873 = vmatpush1.msra.mxu0 %v5572
        %5874 = vmatprep.subr.mxu0 0.0
        %5875 = vmatpush1.msra.mxu0 %v5573
        %5876 = vmatprep.subr.mxu0 0.0
        %5877 = vmatpush1.msra.mxu0 %v5574
        %5878 = vmatprep.subr.mxu0 0.0
        %5879 = vmatpush1.msra.mxu0 %v5575
        %5880 = vmatprep.subr.mxu0 0.0
        %5881 = vmatpush1.msra.mxu0 %v5576
        %5882 = vmatprep.subr.mxu0 0.0
        %5883 = vmatpush1.msra.mxu0 %v5577
        %5884 = vmatprep.subr.mxu0 0.0
        %5885 = vmatpush1.msra.mxu0 %v5578
        %5886 = vmatprep.subr.mxu0 0.0
        %5887 = vmatpush1.msra.mxu0 %v5579
        %5888 = vmatprep.subr.mxu0 0.0
        %5889 = vmatpush1.msra.mxu0 %v5580
        %5890 = vmatprep.subr.mxu0 0.0
        %5891 = vmatpush1.msra.mxu0 %v5581
        %5892 = vmatprep.mubr.f32.mxu0 %v5497
        %5893 = vmatmul.mubr.f32.gmra.mrb[0].mxu0 %v5496
        %v5894 = vpop.f32.mrb[0].mxu0
        %v5895 = vadd.f32 %v5820, %v5894
        %v5896 = vpop.f32.mrb[0].mxu0
        %5897 = vmatprep.mubr.f32.mxu0 %v5501
        %5898 = vmatmul.mubr.f32.gmra.mrb[0].mxu0 %v5500
        %v5899 = vpop.f32.mrb[0].mxu0
        %v5900 = vadd.f32 %v5825, %v5899
        %v5901 = vpop.f32.mrb[0].mxu0
        %5902 = vdwg.mxu0
        %5903 = vmatprep.subr.mxu0 0.0
        %5904 = vmatpush1.msra.mxu0 %v5582
        %5905 = vmatprep.subr.mxu0 0.0
        %5906 = vmatpush1.msra.mxu0 %v5583
        %5907 = vmatprep.subr.mxu0 0.0
        %5908 = vmatpush1.msra.mxu0 %v5584
        %5909 = vmatprep.subr.mxu0 0.0
        %5910 = vmatpush1.msra.mxu0 %v5585
        %5911 = vmatprep.subr.mxu0 0.0
        %5912 = vmatpush1.msra.mxu0 %v5586
        %5913 = vmatprep.subr.mxu0 0.0
        %5914 = vmatpush1.msra.mxu0 %v5587
        %5915 = vmatprep.subr.mxu0 0.0
        %5916 = vmatpush1.msra.mxu0 %v5588
        %5917 = vmatprep.subr.mxu0 0.0
        %5918 = vmatpush1.msra.mxu0 %v5589
        %5919 = vmatprep.subr.mxu0 0.0
        %5920 = vmatpush1.msra.mxu0 %v5590
        %5921 = vmatprep.subr.mxu0 0.0
        %5922 = vmatpush1.msra.mxu0 %v5591
        %5923 = vmatprep.subr.mxu0 0.0
        %5924 = vmatpush1.msra.mxu0 %v5592
        %5925 = vmatprep.subr.mxu0 0.0
        %5926 = vmatpush1.msra.mxu0 %v5593
        %5927 = vmatprep.subr.mxu0 0.0
        %5928 = vmatpush1.msra.mxu0 %v5594
        %5929 = vmatprep.subr.mxu0 0.0
        %5930 = vmatpush1.msra.mxu0 %v5595
        %5931 = vmatprep.subr.mxu0 0.0
        %5932 = vmatpush1.msra.mxu0 %v5596
        %5933 = vmatprep.subr.mxu0 0.0
        %5934 = vmatpush1.msra.mxu0 %v5597
        %5935 = vmatprep.subr.mxu0 0.0
        %5936 = vmatpush1.msra.mxu0 %v5598
        %5937 = vmatprep.subr.mxu0 0.0
        %5938 = vmatpush1.msra.mxu0 %v5599
        %5939 = vmatprep.subr.mxu0 0.0
        %5940 = vmatpush1.msra.mxu0 %v5600
        %5941 = vmatprep.subr.mxu0 0.0
        %5942 = vmatpush1.msra.mxu0 %v5601
        %5943 = vmatprep.subr.mxu0 0.0
        %5944 = vmatpush1.msra.mxu0 %v5602
        %5945 = vmatprep.subr.mxu0 0.0
        %5946 = vmatpush1.msra.mxu0 %v5603
        %5947 = vmatprep.subr.mxu0 0.0
        %5948 = vmatpush1.msra.mxu0 %v5604
        %5949 = vmatprep.subr.mxu0 0.0
        %5950 = vmatpush1.msra.mxu0 %v5605
        %5951 = vmatprep.subr.mxu0 0.0
        %5952 = vmatpush1.msra.mxu0 %v5606
        %5953 = vmatprep.subr.mxu0 0.0
        %5954 = vmatpush1.msra.mxu0 %v5607
        %5955 = vmatprep.subr.mxu0 0.0
        %5956 = vmatpush1.msra.mxu0 %v5608
        %5957 = vmatprep.subr.mxu0 0.0
        %5958 = vmatpush1.msra.mxu0 %v5609
        %5959 = vmatprep.subr.mxu0 0.0
        %5960 = vmatpush1.msra.mxu0 %v5610
        %5961 = vmatprep.subr.mxu0 0.0
        %5962 = vmatpush1.msra.mxu0 %v5611
        %5963 = vmatprep.subr.mxu0 0.0
        %5964 = vmatpush1.msra.mxu0 %v5612
        %5965 = vmatprep.subr.mxu0 0.0
        %5966 = vmatpush1.msra.mxu0 %v5613
        %5967 = vmatprep.mubr.f32.mxu0 %v5499
        %5968 = vmatmul.mubr.f32.gmra.mrb[0].mxu0 %v5498
        %v5969 = vpop.f32.mrb[0].mxu0
        %v5970 = vadd.f32 %v5895, %v5969
        %v5971 = vpop.f32.mrb[0].mxu0
        %5972 = vmatprep.mubr.f32.mxu0 %v5503
        %5973 = vmatmul.mubr.f32.gmra.mrb[0].mxu0 %v5502
        %v5974 = vpop.f32.mrb[0].mxu0
        %v5975 = vadd.f32 %v5900, %v5974
        %v5976 = vpop.f32.mrb[0].mxu0
        %5977 = vdwg.mxu0
        %v5978 = vld [vmem:[%s8] sm:$0x1]
        %v5980 = vlaneseq
        %v5981 = vshrl.u32 %v5980, 7
        %v5982 = vsub.s32 0, %v5981
        %v5983 = vrot.slane %v5978, %v5982
        %v5985 = vadd.f32 %v5970, %v5983
        %v5986 = vadd.f32 %v5975, %v5983
        %v5987 = vmax.f32 %v5985, 0.0
        %v5988 = vmax.f32 %v5986, 0.0
        %v5989 = vld [vmem:[%s9] sm:$0xff]
        %v5990 = vld [vmem:[%s9 + $0x8] sm:$0xff]
        %v5991 = vld [vmem:[%s9 + $0x10] sm:$0xff]
        %v5992 = vld [vmem:[%s9 + $0x18] sm:$0xff]
        %v5993 = vld [vmem:[%s9 + $0x20] sm:$0xff]
        %v5994 = vld [vmem:[%s9 + $0x28] sm:$0xff]
        %v5995 = vld [vmem:[%s9 + $0x30] sm:$0xff]
        %v5996 = vld [vmem:[%s9 + $0x38] sm:$0xff]
        %v5997 = vld [vmem:[%s9 + $0x40] sm:$0xff]
        %v5998 = vld [vmem:[%s9 + $0x48] sm:$0xff]
        %v5999 = vld [vmem:[%s9 + $0x50] sm:$0xff]
        %v6000 = vld [vmem:[%s9 + $0x58] sm:$0xff]
        %v6001 = vld [vmem:[%s9 + $0x60] sm:$0xff]
        %v6002 = vld [vmem:[%s9 + $0x68] sm:$0xff]
        %v6003 = vld [vmem:[%s9 + $0x70] sm:$0xff]
        %v6004 = vld [vmem:[%s9 + $0x78] sm:$0xff]
        %v6005 = vld [vmem:[%s10] sm:$0x1]
        %v6007 = vlaneseq
        %v6008 = vshrl.u32 %v6007, 7
        %v6009 = vsub.s32 0, %v6008
        %v6010 = vrot.slane %v6005, %v6009
        %6012 = vmatprep.subr.mxu0 0.0
        %6013 = vmatpush1.msra.mxu0 %v5989
        %6014 = vmatprep.subr.mxu0 0.0
        %6015 = vmatpush1.msra.mxu0 %v5990
        %6016 = vmatprep.subr.mxu0 0.0
        %6017 = vmatpush1.msra.mxu0 %v5991
        %6018 = vmatprep.subr.mxu0 0.0
        %6019 = vmatpush1.msra.mxu0 %v5992
        %6020 = vmatprep.subr.mxu0 0.0
        %6021 = vmatpush1.msra.mxu0 %v5993
        %6022 = vmatprep.subr.mxu0 0.0
        %6023 = vmatpush1.msra.mxu0 %v5994
        %6024 = vmatprep.subr.mxu0 0.0
        %6025 = vmatpush1.msra.mxu0 %v5995
        %6026 = vmatprep.subr.mxu0 0.0
        %6027 = vmatpush1.msra.mxu0 %v5996
        %6028 = vmatprep.subr.mxu0 0.0
        %6029 = vmatpush1.msra.mxu0 %v5997
        %6030 = vmatprep.subr.mxu0 0.0
        %6031 = vmatpush1.msra.mxu0 %v5998
        %6032 = vmatprep.subr.mxu0 0.0
        %6033 = vmatpush1.msra.mxu0 %v5999
        %6034 = vmatprep.subr.mxu0 0.0
        %6035 = vmatpush1.msra.mxu0 %v6000
        %6036 = vmatprep.subr.mxu0 0.0
        %6037 = vmatpush1.msra.mxu0 %v6001
        %6038 = vmatprep.subr.mxu0 0.0
        %6039 = vmatpush1.msra.mxu0 %v6002
        %6040 = vmatprep.subr.mxu0 0.0
        %6041 = vmatpush1.msra.mxu0 %v6003
        %6042 = vmatprep.subr.mxu0 0.0
        %6043 = vmatpush1.msra.mxu0 %v6004
        %6044 = vmatprep.subr.mxu0 0.0
        %6045 = vmatpush1.msra.mxu0 0.0
        %6046 = vmatprep.subr.mxu0 0.0
        %6047 = vmatpush1.msra.mxu0 0.0
        %6048 = vmatprep.subr.mxu0 0.0
        %6049 = vmatpush1.msra.mxu0 0.0
        %6050 = vmatprep.subr.mxu0 0.0
        %6051 = vmatpush1.msra.mxu0 0.0
        %6052 = vmatprep.subr.mxu0 0.0
        %6053 = vmatpush1.msra.mxu0 0.0
        %6054 = vmatprep.subr.mxu0 0.0
        %6055 = vmatpush1.msra.mxu0 0.0
        %6056 = vmatprep.subr.mxu0 0.0
        %6057 = vmatpush1.msra.mxu0 0.0
        %6058 = vmatprep.subr.mxu0 0.0
        %6059 = vmatpush1.msra.mxu0 0.0
        %6060 = vmatprep.subr.mxu0 0.0
        %6061 = vmatpush1.msra.mxu0 0.0
        %6062 = vmatprep.subr.mxu0 0.0
        %6063 = vmatpush1.msra.mxu0 0.0
        %6064 = vmatprep.subr.mxu0 0.0
        %6065 = vmatpush1.msra.mxu0 0.0
        %6066 = vmatprep.subr.mxu0 0.0
        %6067 = vmatpush1.msra.mxu0 0.0
        %6068 = vmatprep.subr.mxu0 0.0
        %6069 = vmatpush1.msra.mxu0 0.0
        %6070 = vmatprep.subr.mxu0 0.0
        %6071 = vmatpush1.msra.mxu0 0.0
        %6072 = vmatprep.subr.mxu0 0.0
        %6073 = vmatpush1.msra.mxu0 0.0
        %6074 = vmatprep.subr.mxu0 0.0
        %6075 = vmatpush1.msra.mxu0 0.0
        %6076 = vmatprep.mubr.f32.mxu0 0.0
        %6077 = vmatmul.mubr.f32.gmra.mrb[0].mxu0 %v5987
        %v6078 = vpop.f32.mrb[0].mxu0
        %v6079 = vadd.f32 %v6010, %v6078
        %v6080 = vpop.f32.mrb[0].mxu0
        %6081 = vmatprep.mubr.f32.mxu0 0.0
        %6082 = vmatmul.mubr.f32.gmra.mrb[0].mxu0 %v5988
        %v6083 = vpop.f32.mrb[0].mxu0
        %v6084 = vadd.f32 %v6010, %v6083
        %v6085 = vpop.f32.mrb[0].mxu0
        %6086 = vdwg.mxu0
        %v6087 = vmax.f32 %v6079, 0.0
        %v6088 = vmax.f32 %v6084, 0.0
        %v6089 = vld [vmem:[%s11] sm:$0xff]
        %v6090 = vld [vmem:[%s11 + $0x8] sm:$0xff]
        %v6091 = vld [vmem:[%s11 + $0x10] sm:$0xff]
        %v6092 = vld [vmem:[%s11 + $0x18] sm:$0xff]
        %v6093 = vld [vmem:[%s11 + $0x20] sm:$0xff]
        %v6094 = vld [vmem:[%s11 + $0x28] sm:$0xff]
        %v6095 = vld [vmem:[%s11 + $0x30] sm:$0xff]
        %v6096 = vld [vmem:[%s11 + $0x38] sm:$0xff]
        %v6097 = vld [vmem:[%s12] sm:$0x1]
        %v6099 = vlaneseq
        %v6100 = vshrl.u32 %v6099, 7
        %v6101 = vsub.s32 0, %v6100
        %v6102 = vrot.slane %v6097, %v6101
        %vm6104 = vcmask 523264
        %v6106 = vsel %vm6104, %v6087, 0
        %v6109 = vsel %vm6104, %v6088, 0
        %6111 = vmatprep.subr.mxu0 0.0
        %6112 = vmatpush1.msra.mxu0 %v6089
        %6113 = vmatprep.subr.mxu0 0.0
        %6114 = vmatpush1.msra.mxu0 %v6090
        %6115 = vmatprep.subr.mxu0 0.0
        %6116 = vmatpush1.msra.mxu0 %v6091
        %6117 = vmatprep.subr.mxu0 0.0
        %6118 = vmatpush1.msra.mxu0 %v6092
        %6119 = vmatprep.subr.mxu0 0.0
        %6120 = vmatpush1.msra.mxu0 %v6093
        %6121 = vmatprep.subr.mxu0 0.0
        %6122 = vmatpush1.msra.mxu0 %v6094
        %6123 = vmatprep.subr.mxu0 0.0
        %6124 = vmatpush1.msra.mxu0 %v6095
        %6125 = vmatprep.subr.mxu0 0.0
        %6126 = vmatpush1.msra.mxu0 %v6096
        %6127 = vmatprep.subr.mxu0 0.0
        %6128 = vmatpush1.msra.mxu0 0.0
        %6129 = vmatprep.subr.mxu0 0.0
        %6130 = vmatpush1.msra.mxu0 0.0
        %6131 = vmatprep.subr.mxu0 0.0
        %6132 = vmatpush1.msra.mxu0 0.0
        %6133 = vmatprep.subr.mxu0 0.0
        %6134 = vmatpush1.msra.mxu0 0.0
        %6135 = vmatprep.subr.mxu0 0.0
        %6136 = vmatpush1.msra.mxu0 0.0
        %6137 = vmatprep.subr.mxu0 0.0
        %6138 = vmatpush1.msra.mxu0 0.0
        %6139 = vmatprep.subr.mxu0 0.0
        %6140 = vmatpush1.msra.mxu0 0.0
        %6141 = vmatprep.subr.mxu0 0.0
        %6142 = vmatpush1.msra.mxu0 0.0
        %6143 = vmatprep.subr.mxu0 0.0
        %6144 = vmatpush1.msra.mxu0 0.0
        %6145 = vmatprep.subr.mxu0 0.0
        %6146 = vmatpush1.msra.mxu0 0.0
        %6147 = vmatprep.subr.mxu0 0.0
        %6148 = vmatpush1.msra.mxu0 0.0
        %6149 = vmatprep.subr.mxu0 0.0
        %6150 = vmatpush1.msra.mxu0 0.0
        %6151 = vmatprep.subr.mxu0 0.0
        %6152 = vmatpush1.msra.mxu0 0.0
        %6153 = vmatprep.subr.mxu0 0.0
        %6154 = vmatpush1.msra.mxu0 0.0
        %6155 = vmatprep.subr.mxu0 0.0
        %6156 = vmatpush1.msra.mxu0 0.0
        %6157 = vmatprep.subr.mxu0 0.0
        %6158 = vmatpush1.msra.mxu0 0.0
        %6159 = vmatprep.subr.mxu0 0.0
        %6160 = vmatpush1.msra.mxu0 0.0
        %6161 = vmatprep.subr.mxu0 0.0
        %6162 = vmatpush1.msra.mxu0 0.0
        %6163 = vmatprep.subr.mxu0 0.0
        %6164 = vmatpush1.msra.mxu0 0.0
        %6165 = vmatprep.subr.mxu0 0.0
        %6166 = vmatpush1.msra.mxu0 0.0
        %6167 = vmatprep.subr.mxu0 0.0
        %6168 = vmatpush1.msra.mxu0 0.0
        %6169 = vmatprep.subr.mxu0 0.0
        %6170 = vmatpush1.msra.mxu0 0.0
        %6171 = vmatprep.subr.mxu0 0.0
        %6172 = vmatpush1.msra.mxu0 0.0
        %6173 = vmatprep.subr.mxu0 0.0
        %6174 = vmatpush1.msra.mxu0 0.0
        %6175 = vmatprep.mubr.f32.mxu0 0.0
        %6176 = vmatmul.mubr.f32.gmra.mrb[0].mxu0 %v6106
        %v6177 = vpop.f32.mrb[0].mxu0
        %v6178 = vadd.f32 %v6102, %v6177
        %v6179 = vpop.f32.mrb[0].mxu0
        %6180 = vmatprep.mubr.f32.mxu0 0.0
        %6181 = vmatmul.mubr.f32.gmra.mrb[0].mxu0 %v6109
        %v6182 = vpop.f32.mrb[0].mxu0
        %v6183 = vadd.f32 %v6102, %v6182
        %v6184 = vpop.f32.mrb[0].mxu0
        %6185 = vdwg.mxu0
        %vm6186 = vcmask 64512
        %6187 = vst.msk [vmem:[%s549] sm:$0xff] %vm6186, %v6178
        %6188 = vst.msk [vmem:[%s549 + $0x8] sm:$0xff] %vm6186, %v6183
      $region88: #{forward.1} parent=71 // pred_fallthru
        _
      %s6189 = smul.u32 2, %s28
      %p6190 = scmp.lt.s32.totalorder %s6189, 1
      %s6191 = scalar_select %p6190, %s6189, 1
      %s6192 = smul.addr %s6191, 8
      %s6193 = scalar_lea.vmem %s13, %s6192
      // Predicated region
      $region89: #{forward.1} parent=71 // pred_check
        %p6194 = pneg %p351
      $region90: #{forward.1} parent=71 // pred_check_branch
        %6196 = sbr.rel (%p6194) target = $region92
      $region91: #{forward.1} parent=71 // pred_region
        %s6197 = smul.u32 2, %s28
      $region92: #{forward.1} parent=71 // pred_fallthru
        _
      // Predicated region
      $region93: #{forward.1} parent=71 // pred_check
        %p6198 = pneg %p351
      $region94: #{forward.1} parent=71 // pred_check_branch
        %6200 = sbr.rel (%p6198) target = $region96
      $region95: #{forward.1} parent=71 // pred_region
        %s6201 = smul.u32 2, %s28
        %p6202 = scmp.lt.s32.totalorder %s6201, 1
        %s6203 = scalar_select %p6202, %s6201, 1
        %s6204 = smul.addr %s6203, 8
        %s6205 = scalar_lea.vmem %s13, %s6204
      $region96: #{forward.1} parent=71 // pred_fallthru
        _
    $region72: #{forward.1} parent=5 // pred_fallthru
      _
    %p6206 = scmp.le.s32.totalorder 2, %s19
    // Predicated region
    $region97: #{forward.1} parent=5 // pred_check
      %p6207 = pneg %p6206
    $region98: #{forward.1} parent=5 // pred_check_branch
      %6209 = sbr.rel (%p6207) target = $region100
    $region99: #{forward.1} parent=5 // pred_region
      %s6210 = ssub.s32 %s19, 2
    $region100: #{forward.1} parent=5 // pred_fallthru
      _
  $region6: #{forward.1} parent=0 // loop_footer
    %s23 = sadd.s32 1, %s19
  $region7: #{forward.1} parent=0 // loop_footer_branch
    %18 = sbr.rel target = $region3
  $region8: #{forward.1} parent=0 // loop_exit
    _

</llo_original>
